<compile_context>
chip_gen: v7x
topology: tpu7x:2x2x1
jax: 0.10.0
libtpu: 0.0.40
codegen_flags: <defaults>
</compile_context>

<pallas_src>
import functools

import jax
import jax.numpy as jnp
from jax import lax
from jax.experimental import pallas as pl
from jax.experimental.pallas import tpu as pltpu

EPS = 1e-5
LANE = 128


# --------------------------------------------------------------------------
# helpers
# --------------------------------------------------------------------------
def _round_up(x, m):
    return (x + m - 1) // m * m


def _pick_row_tile(m, target=256):
    """Largest multiple of 8 that divides m and is <= target (m % 8 == 0)."""
    t = max(8, min(m, target) - (min(m, target) % 8))
    while m % t:
        t -= 8
    return t


def _compiler_params():
    return pltpu.CompilerParams(
        dimension_semantics=("parallel",),          # shard grid across TCs (v7x)
        vmem_limit_bytes=32 * 1024 * 1024,          # headroom within v7x 64 MiB
    )


# --------------------------------------------------------------------------
# kernels
# --------------------------------------------------------------------------
def _conv1x1_kernel(*refs, fuse_input_bn):
    """1x1 conv (channel matmul) with fused per-tile BN-statistics epilogue.

    If fuse_input_bn, first applies the previous stage's BatchNorm as a
    precomputed per-channel (scale, shift) plus ReLU to the input tile.
    """
    if fuse_input_bn:
        x_ref, sc_ref, sh_ref, w_ref, y_ref, s_ref, ss_ref = refs
        a = jnp.maximum(x_ref[...] * sc_ref[...] + sh_ref[...], 0.0)
    else:
        x_ref, w_ref, y_ref, s_ref, ss_ref = refs
        a = x_ref[...]

    # bf16 MXU operands, f32 accumulation.
    y = jnp.dot(a.astype(jnp.bfloat16), w_ref[...],
                preferred_element_type=jnp.float32)
    y_ref[...] = y
    # Single-pass BN statistics (sum, sum of squares) per tile.
    s_ref[0] = jnp.sum(y, axis=0, keepdims=True)
    ss_ref[0] = jnp.sum(y * y, axis=0, keepdims=True)


def _conv3x3_kernel(y1_ref, sc_ref, sh_ref, w_ref, y_ref, s_ref, ss_ref,
                    pad_ref):
    """BN(stage-1)+ReLU, then 3x3 'SAME' conv as one im2col (K=9C) matmul."""
    _, H, W, C = y1_ref.shape

    # Apply previous stage's BN (precomputed scale/shift) + ReLU.
    a = jnp.maximum(y1_ref[0] * sc_ref[...] + sh_ref[...], 0.0)

    # Zero-padded staging: only the 1-element halo is cleared each step (the
    # interior is fully overwritten), so there is no full memset. Clearing
    # every step keeps the scratch valid under "parallel" megacore sharding.
    zero_row = jnp.zeros((1, W + 2, C), jnp.float32)
    zero_col = jnp.zeros((H + 2, 1, C), jnp.float32)
    pad_ref[0:1] = zero_row
    pad_ref[H + 1:H + 2] = zero_row
    pad_ref[:, 0:1] = zero_col
    pad_ref[:, W + 1:W + 2] = zero_col
    pad_ref[1:H + 1, 1:W + 1, :] = a

    # im2col: stack the 9 shifted taps along the contraction (lane) axis and
    # run ONE MXU matmul with K = 9*C instead of 9 accumulated K=C matmuls.
    taps = [pad_ref[dy:dy + H, dx:dx + W, :].reshape(H * W, C)
            for dy in range(3) for dx in range(3)]
    patches = jnp.concatenate(taps, axis=-1).astype(jnp.bfloat16)  # (H*W, 9C)

    y = jnp.dot(patches, w_ref[...], preferred_element_type=jnp.float32)
    y_ref[...] = y.reshape(1, H, W, C)
    s_ref[0] = jnp.sum(y, axis=0, keepdims=True)
    ss_ref[0] = jnp.sum(y * y, axis=0, keepdims=True)


def _bn_add_relu_kernel(y_ref, sc_ref, sh_ref, res_ref, o_ref):
    """Final BN (precomputed scale/shift) + identity residual + ReLU."""
    o_ref[...] = jnp.maximum(
        y_ref[...] * sc_ref[...] + sh_ref[...] + res_ref[...], 0.0
    ).astype(o_ref.dtype)


# --------------------------------------------------------------------------
# pallas_call wrappers (per stage)
# --------------------------------------------------------------------------
def _conv1x1_stage(x2d, w, scale=None, shift=None, *, row_tile=256):
    m, cin = x2d.shape
    cout = w.shape[1]
    tm = _pick_row_tile(m, row_tile)
    grid = (m // tm,)

    fuse = scale is not None
    kernel = functools.partial(_conv1x1_kernel, fuse_input_bn=fuse)

    in_specs = [pl.BlockSpec((tm, cin), lambda i: (i, 0))]
    args = [x2d]
    if fuse:
        in_specs += [pl.BlockSpec((1, cin), lambda i: (0, 0)),
                     pl.BlockSpec((1, cin), lambda i: (0, 0))]
        args += [scale, shift]
    in_specs += [pl.BlockSpec((cin, cout), lambda i: (0, 0))]
    args += [w]

    y, s, ss = pl.pallas_call(
        kernel,
        grid=grid,
        in_specs=in_specs,
        out_specs=(
            pl.BlockSpec((tm, cout), lambda i: (i, 0)),
            pl.BlockSpec((1, 1, cout), lambda i: (i, 0, 0)),
            pl.BlockSpec((1, 1, cout), lambda i: (i, 0, 0)),
        ),
        out_shape=(
            jax.ShapeDtypeStruct((m, cout), jnp.float32),
            jax.ShapeDtypeStruct((grid[0], 1, cout), jnp.float32),
            jax.ShapeDtypeStruct((grid[0], 1, cout), jnp.float32),
        ),
        compiler_params=_compiler_params(),
    )(*args)
    return y, s, ss


def _conv3x3_stage(y1, scale, shift, w_im2col):
    n, h, ww, c = y1.shape
    cout = w_im2col.shape[1]
    grid = (n,)

    y2, s, ss = pl.pallas_call(
        _conv3x3_kernel,
        grid=grid,
        in_specs=[
            pl.BlockSpec((1, h, ww, c), lambda i: (i, 0, 0, 0)),
            pl.BlockSpec((1, c), lambda i: (0, 0)),
            pl.BlockSpec((1, c), lambda i: (0, 0)),
            pl.BlockSpec((9 * c, cout), lambda i: (0, 0)),
        ],
        out_specs=(
            pl.BlockSpec((1, h, ww, cout), lambda i: (i, 0, 0, 0)),
            pl.BlockSpec((1, 1, cout), lambda i: (i, 0, 0)),
            pl.BlockSpec((1, 1, cout), lambda i: (i, 0, 0)),
        ),
        out_shape=(
            jax.ShapeDtypeStruct((n, h, ww, cout), jnp.float32),
            jax.ShapeDtypeStruct((n, 1, cout), jnp.float32),
            jax.ShapeDtypeStruct((n, 1, cout), jnp.float32),
        ),
        scratch_shapes=[pltpu.VMEM((h + 2, ww + 2, c), jnp.float32)],
        compiler_params=_compiler_params(),
    )(y1, scale, shift, w_im2col)
    return y2, s, ss


def _bn_add_relu_stage(y3, scale, shift, residual, out_dtype, *, row_tile=256):
    m, c = y3.shape
    tm = _pick_row_tile(m, row_tile)
    grid = (m // tm,)
    return pl.pallas_call(
        _bn_add_relu_kernel,
        grid=grid,
        in_specs=[
            pl.BlockSpec((tm, c), lambda i: (i, 0)),
            pl.BlockSpec((1, c), lambda i: (0, 0)),
            pl.BlockSpec((1, c), lambda i: (0, 0)),
            pl.BlockSpec((tm, c), lambda i: (i, 0)),
        ],
        out_specs=pl.BlockSpec((tm, c), lambda i: (i, 0)),
        out_shape=jax.ShapeDtypeStruct((m, c), out_dtype),
        compiler_params=_compiler_params(),
    )(y3, scale, shift, residual)


def _bn_scale_shift(sums, sumsqs, count, gamma, beta):
    """Reduce per-tile partial stats -> per-channel BN scale/shift (f32)."""
    s = jnp.sum(sums, axis=0)          # (1, C)
    ss = jnp.sum(sumsqs, axis=0)       # (1, C)
    mean = s / count
    var = jnp.maximum(ss / count - mean * mean, 0.0)   # biased (training mode)
    inv = lax.rsqrt(var + EPS)
    scale = gamma * inv
    shift = beta - mean * scale
    return scale, shift


# --------------------------------------------------------------------------
# public forward pass
# --------------------------------------------------------------------------
def bottleneck_pallas(x_nchw, params):
    """Bottleneck forward (stride=1, no downsample). NCHW in / NCHW out."""
    # TODO(synk): an NHWC end-to-end pipeline would drop these two boundary
    # transposes (each is an extra HBM round trip of the activations).
    x = jnp.transpose(x_nchw, (0, 2, 3, 1)).astype(jnp.float32)
    n, h, w, cin = x.shape
    planes = params["w1"].shape[1]
    cout = params["w3"].shape[1]
    assert cin == cout, "identity residual requires inplanes == 4*planes"
    m = n * h * w
    assert m % 8 == 0 and w % 8 == 0, "demo wrapper assumes 8-aligned sizes"

    cin_p = max(LANE, _round_up(cin, LANE))
    mid_p = max(LANE, _round_up(planes, LANE))
    out_p = max(LANE, _round_up(cout, LANE))

    def pad_vec(v, cp):
        return jnp.pad(v.astype(jnp.float32), ((0, 0), (0, cp - v.shape[1])))

    # Lane-dense (multiple of 128) channels; weights pre-cast to bf16.
    x_p = jnp.pad(x, ((0, 0), (0, 0), (0, 0), (0, cin_p - cin)))
    x2d = x_p.reshape(m, cin_p)
    w1 = jnp.pad(params["w1"],
                 ((0, cin_p - cin), (0, mid_p - planes))).astype(jnp.bfloat16)
    w2 = jnp.pad(params["w2"],
                 ((0, 0), (0, 0), (0, mid_p - planes), (0, mid_p - planes)))
    w2 = w2.reshape(9 * mid_p, mid_p).astype(jnp.bfloat16)    # im2col layout
    w3 = jnp.pad(params["w3"],
                 ((0, mid_p - planes), (0, out_p - cout))).astype(jnp.bfloat16)
    g1, b1 = pad_vec(params["g1"], mid_p), pad_vec(params["b1"], mid_p)
    g2, b2 = pad_vec(params["g2"], mid_p), pad_vec(params["b2"], mid_p)
    g3, b3 = pad_vec(params["g3"], out_p), pad_vec(params["b3"], out_p)

    # stage 1: conv1 (1x1) + bn1 statistics
    y1, s1, ss1 = _conv1x1_stage(x2d, w1)
    sc1, sh1 = _bn_scale_shift(s1, ss1, m, g1, b1)

    # stage 2: bn1+relu fused into conv2 (3x3 im2col) + bn2 statistics
    y2, s2, ss2 = _conv3x3_stage(y1.reshape(n, h, w, mid_p), sc1, sh1, w2)
    sc2, sh2 = _bn_scale_shift(s2, ss2, m, g2, b2)

    # stage 3: bn2+relu fused into conv3 (1x1) + bn3 statistics
    y3, s3, ss3 = _conv1x1_stage(y2.reshape(m, mid_p), w3, sc2, sh2)
    sc3, sh3 = _bn_scale_shift(s3, ss3, m, g3, b3)

    # stage 4: bn3 + identity residual + relu
    out = _bn_add_relu_stage(y3, sc3, sh3, x2d, x_nchw.dtype)
    out = out.reshape(n, h, w, out_p)[:, :, :, :cout]
    return jnp.transpose(out, (0, 3, 1, 2))


# --------------------------------------------------------------------------
# pure-JAX reference + parameters
# --------------------------------------------------------------------------
def bottleneck_reference(x_nchw, params, matmul_dtype=jnp.float32):
    """Reference (NHWC internally). matmul_dtype=bf16 mirrors the kernel's
    bf16 MXU operands for a tight numerical comparison."""
    x = jnp.transpose(x_nchw, (0, 2, 3, 1)).astype(jnp.float32)

    def bn(y, g, b):
        mean = jnp.mean(y, axis=(0, 1, 2), keepdims=True)
        var = jnp.mean((y - mean) ** 2, axis=(0, 1, 2), keepdims=True)
        return (y - mean) * lax.rsqrt(var + EPS) * g.reshape(1, 1, 1, -1) \
            + b.reshape(1, 1, 1, -1)

    def mm(a, wmat):
        return jnp.einsum("nhwc,cp->nhwp", a.astype(matmul_dtype),
                          wmat.astype(matmul_dtype),
                          preferred_element_type=jnp.float32)

    out = mm(x, params["w1"])
    out = jax.nn.relu(bn(out, params["g1"], params["b1"]))
    out = lax.conv_general_dilated(
        out.astype(matmul_dtype), params["w2"].astype(matmul_dtype),
        (1, 1), "SAME", dimension_numbers=("NHWC", "HWIO", "NHWC"),
        preferred_element_type=jnp.float32)
    out = jax.nn.relu(bn(out, params["g2"], params["b2"]))
    out = mm(out, params["w3"])
    out = bn(out, params["g3"], params["b3"])
    out = jax.nn.relu(out + x)
    return jnp.transpose(out, (0, 3, 1, 2))


def make_params(key, inplanes, planes):
    ks = jax.random.split(key, 9)
    cout = planes * 4
    assert inplanes == cout, "identity residual requires inplanes == 4*planes"
    return {
        # conv weights stored channels-last (in, out) / HWIO
        "w1": jax.random.normal(ks[0], (inplanes, planes), jnp.float32) * 0.2,
        "w2": jax.random.normal(ks[1], (3, 3, planes, planes), jnp.float32) * 0.2,
        "w3": jax.random.normal(ks[2], (planes, cout), jnp.float32) * 0.2,
        # BatchNorm affine params, stored as (1, C)
        "g1": 1.0 + 0.1 * jax.random.normal(ks[3], (1, planes), jnp.float32),
        "b1": 0.1 * jax.random.normal(ks[4], (1, planes), jnp.float32),
        "g2": 1.0 + 0.1 * jax.random.normal(ks[5], (1, planes), jnp.float32),
        "b2": 0.1 * jax.random.normal(ks[6], (1, planes), jnp.float32),
        "g3": 1.0 + 0.1 * jax.random.normal(ks[7], (1, cout), jnp.float32),
        "b3": 0.1 * jax.random.normal(ks[8], (1, cout), jnp.float32),
    }


if __name__ == "__main__":
    key = jax.random.PRNGKey(0)
    k_x, k_p = jax.random.split(key)

    n, inplanes, planes, h, w = 2, 16, 4, 16, 16
    x = jax.random.normal(k_x, (n, inplanes, h, w), jnp.float32)   # NCHW
    params = make_params(k_p, inplanes, planes)

    fwd = jax.jit(bottleneck_pallas)
    out = jax.block_until_ready(fwd(x, params))
    assert out.shape == (n, planes * 4, h, w)

    # Tight check vs a reference that mirrors the kernel's bf16 MXU operands.
    ref_bf16 = jax.block_until_ready(
        bottleneck_reference(x, params, matmul_dtype=jnp.bfloat16))
    err = jnp.max(jnp.abs(out - ref_bf16))
    assert jnp.allclose(out, ref_bf16, atol=1e-2, rtol=1e-2), \
        f"max abs err vs bf16 reference: {err}"

    # Sanity check vs the full-f32 reference (difference = bf16 matmul inputs).
    ref_f32 = jax.block_until_ready(bottleneck_reference(x, params))
    err32 = jnp.max(jnp.abs(out - ref_f32))
    assert jnp.allclose(out, ref_f32, atol=1e-1, rtol=1e-1), \
        f"max abs err vs f32 reference: {err32}"

    print("KERNEL_OK")
</pallas_src>

<mosaic_0001>
module attributes {stable_mosaic.version = 11 : i64} {
  func.func @_conv1x1_kernel(%arg0: i32, %arg1: memref<256x128xf32, #tpu.memory_space<vmem>>, %arg2: memref<128x128xbf16, #tpu.memory_space<vmem>>, %arg3: memref<256x128xf32, #tpu.memory_space<vmem>>, %arg4: memref<1x1x128xf32, #tpu.memory_space<vmem>>, %arg5: memref<1x1x128xf32, #tpu.memory_space<vmem>>) attributes {dimension_semantics = [#tpu.dimension_semantics<parallel>], iteration_bounds = array<i64: 2>, scalar_prefetch = 0 : i64, scratch_operands = 0 : i64, tpu.core_type = #tpu.core_type<tc>, window_params = [{transform_indices = @transform_0, window_bounds = array<i64: 256, 128>}, {pipeline_mode = #tpu.pipeline_mode<synchronous>, transform_indices = @transform_1, window_bounds = array<i64: 128, 128>}, {transform_indices = @transform_2, window_bounds = array<i64: 256, 128>}, {transform_indices = @transform_3, window_bounds = array<i64: 1, 1, 128>}, {transform_indices = @transform_4, window_bounds = array<i64: 1, 1, 128>}]} {
    %c0 = arith.constant 0 : index
    %c0_0 = arith.constant 0 : index
    %0 = vector.load %arg1[%c0, %c0_0] : memref<256x128xf32, #tpu.memory_space<vmem>>, vector<256x128xf32>
    %1 = arith.truncf %0 : vector<256x128xf32> to vector<256x128xbf16>
    %c0_1 = arith.constant 0 : index
    %c0_2 = arith.constant 0 : index
    %2 = vector.load %arg2[%c0_1, %c0_2] : memref<128x128xbf16, #tpu.memory_space<vmem>>, vector<128x128xbf16>
    %cst = arith.constant dense<0.000000e+00> : vector<256x128xf32>
    %3 = tpu.matmul %1, %2, %cst {dimension_numbers = #tpu.dot_dimension_numbers<[1], [0], [0], [1], [0, 0, 1, 1], [], []>} : vector<256x128xbf16>, vector<128x128xbf16>, vector<256x128xf32> -> vector<256x128xf32>
    %c0_3 = arith.constant 0 : index
    %c0_4 = arith.constant 0 : index
    %4 = vector.load %arg3[%c0_3, %c0_4] : memref<256x128xf32, #tpu.memory_space<vmem>>, vector<256x128xf32>
    tpu.vector_store %arg3[%c0_3, %c0_4], %3 {strides = array<i32>} : memref<256x128xf32, #tpu.memory_space<vmem>>, vector<256x128xf32>,
    %cst_5 = arith.constant dense<0.000000e+00> : vector<128xf32>
    %5 = vector.multi_reduction <add>, %3, %cst_5 [0] : vector<256x128xf32> to vector<128xf32>
    %6 = vector.shape_cast %5 : vector<128xf32> to vector<1x128xf32>
    %c0_6 = arith.constant 0 : index
    %c0_7 = arith.constant 0 : index
    %c0_8 = arith.constant 0 : index
    %7 = vector.load %arg4[%c0_6, %c0_7, %c0_8] : memref<1x1x128xf32, #tpu.memory_space<vmem>>, vector<1x1x128xf32>
    %8 = vector.shape_cast %7 : vector<1x1x128xf32> to vector<1x128xf32>
    %9 = vector.shape_cast %6 : vector<1x128xf32> to vector<1x1x128xf32>
    tpu.vector_store %arg4[%c0_6, %c0_7, %c0_8], %9 {strides = array<i32>} : memref<1x1x128xf32, #tpu.memory_space<vmem>>, vector<1x1x128xf32>,
    %10 = arith.mulf %3, %3 : vector<256x128xf32>
    %cst_9 = arith.constant dense<0.000000e+00> : vector<128xf32>
    %11 = vector.multi_reduction <add>, %10, %cst_9 [0] : vector<256x128xf32> to vector<128xf32>
    %12 = vector.shape_cast %11 : vector<128xf32> to vector<1x128xf32>
    %c0_10 = arith.constant 0 : index
    %c0_11 = arith.constant 0 : index
    %c0_12 = arith.constant 0 : index
    %13 = vector.load %arg5[%c0_10, %c0_11, %c0_12] : memref<1x1x128xf32, #tpu.memory_space<vmem>>, vector<1x1x128xf32>
    %14 = vector.shape_cast %13 : vector<1x1x128xf32> to vector<1x128xf32>
    %15 = vector.shape_cast %12 : vector<1x128xf32> to vector<1x1x128xf32>
    tpu.vector_store %arg5[%c0_10, %c0_11, %c0_12], %15 {strides = array<i32>} : memref<1x1x128xf32, #tpu.memory_space<vmem>>, vector<1x1x128xf32>,
    return
  }
  func.func @transform_0(%arg0: i32) -> (i32, i32) {
    %c0_i32 = arith.constant 0 : i32
    %c0_i32_0 = arith.constant 0 : i32
    return %arg0, %c0_i32 : i32, i32
  }
  func.func @transform_1(%arg0: i32) -> (i32, i32) {
    %c0_i32 = arith.constant 0 : i32
    %c0_i32_0 = arith.constant 0 : i32
    %c0_i32_1 = arith.constant 0 : i32
    return %c0_i32, %c0_i32_0 : i32, i32
  }
  func.func @transform_2(%arg0: i32) -> (i32, i32) {
    %c0_i32 = arith.constant 0 : i32
    %c0_i32_0 = arith.constant 0 : i32
    return %arg0, %c0_i32 : i32, i32
  }
  func.func @transform_3(%arg0: i32) -> (i32, i32, i32) {
    %c0_i32 = arith.constant 0 : i32
    %c0_i32_0 = arith.constant 0 : i32
    %c0_i32_1 = arith.constant 0 : i32
    return %arg0, %c0_i32, %c0_i32_0 : i32, i32, i32
  }
  func.func @transform_4(%arg0: i32) -> (i32, i32, i32) {
    %c0_i32 = arith.constant 0 : i32
    %c0_i32_0 = arith.constant 0 : i32
    %c0_i32_1 = arith.constant 0 : i32
    return %arg0, %c0_i32, %c0_i32_0 : i32, i32, i32
  }
}

module attributes {stable_mosaic.version = 11 : i64} {
  func.func @_conv3x3_kernel(%arg0: i32, %arg1: memref<1x16x16x128xf32, #tpu.memory_space<vmem>>, %arg2: memref<1x128xf32, #tpu.memory_space<vmem>>, %arg3: memref<1x128xf32, #tpu.memory_space<vmem>>, %arg4: memref<1152x128xbf16, #tpu.memory_space<vmem>>, %arg5: memref<1x16x16x128xf32, #tpu.memory_space<vmem>>, %arg6: memref<1x1x128xf32, #tpu.memory_space<vmem>>, %arg7: memref<1x1x128xf32, #tpu.memory_space<vmem>>, %arg8: memref<18x18x128xf32, #tpu.memory_space<vmem>>) attributes {dimension_semantics = [#tpu.dimension_semantics<parallel>], iteration_bounds = array<i64: 2>, scalar_prefetch = 0 : i64, scratch_operands = 1 : i64, tpu.core_type = #tpu.core_type<tc>, window_params = [{transform_indices = @transform_0, window_bounds = array<i64: 1, 16, 16, 128>}, {pipeline_mode = #tpu.pipeline_mode<synchronous>, transform_indices = @transform_1, window_bounds = array<i64: 1, 128>}, {pipeline_mode = #tpu.pipeline_mode<synchronous>, transform_indices = @transform_2, window_bounds = array<i64: 1, 128>}, {pipeline_mode = #tpu.pipeline_mode<synchronous>, transform_indices = @transform_3, window_bounds = array<i64: 1152, 128>}, {transform_indices = @transform_4, window_bounds = array<i64: 1, 16, 16, 128>}, {transform_indices = @transform_5, window_bounds = array<i64: 1, 1, 128>}, {transform_indices = @transform_6, window_bounds = array<i64: 1, 1, 128>}]} {
    %c0 = arith.constant 0 : index
    %c0_0 = arith.constant 0 : index
    %c0_1 = arith.constant 0 : index
    %c0_2 = arith.constant 0 : index
    %0 = vector.load %arg1[%c0, %c0_0, %c0_1, %c0_2] : memref<1x16x16x128xf32, #tpu.memory_space<vmem>>, vector<1x16x16x128xf32>
    %1 = vector.shape_cast %0 : vector<1x16x16x128xf32> to vector<16x16x128xf32>
    %c0_3 = arith.constant 0 : index
    %c0_4 = arith.constant 0 : index
    %2 = vector.load %arg2[%c0_3, %c0_4] : memref<1x128xf32, #tpu.memory_space<vmem>>, vector<1x128xf32>
    %3 = vector.shape_cast %2 : vector<1x128xf32> to vector<1x1x128xf32>
    %4 = vector.broadcast %3 : vector<1x1x128xf32> to vector<16x16x128xf32>
    %5 = arith.mulf %1, %4 : vector<16x16x128xf32>
    %c0_5 = arith.constant 0 : index
    %c0_6 = arith.constant 0 : index
    %6 = vector.load %arg3[%c0_5, %c0_6] : memref<1x128xf32, #tpu.memory_space<vmem>>, vector<1x128xf32>
    %7 = vector.shape_cast %6 : vector<1x128xf32> to vector<1x1x128xf32>
    %8 = vector.broadcast %7 : vector<1x1x128xf32> to vector<16x16x128xf32>
    %9 = arith.addf %5, %8 : vector<16x16x128xf32>
    %cst = arith.constant 0.000000e+00 : f32
    %10 = vector.broadcast %cst : f32 to vector<16x16x128xf32>
    %11 = arith.maximumf %9, %10 : vector<16x16x128xf32>
    %cst_7 = arith.constant 0.000000e+00 : f32
    %12 = vector.broadcast %cst_7 : f32 to vector<1x18x128xf32>
    %cst_8 = arith.constant 0.000000e+00 : f32
    %13 = vector.broadcast %cst_8 : f32 to vector<18x1x128xf32>
    %c0_9 = arith.constant 0 : index
    %c0_10 = arith.constant 0 : index
    %c0_11 = arith.constant 0 : index
    %14 = vector.load %arg8[%c0_9, %c0_10, %c0_11] : memref<18x18x128xf32, #tpu.memory_space<vmem>>, vector<1x18x128xf32>
    tpu.vector_store %arg8[%c0_9, %c0_10, %c0_11], %12 {strides = array<i32>} : memref<18x18x128xf32, #tpu.memory_space<vmem>>, vector<1x18x128xf32>,
    %c17 = arith.constant 17 : index
    %c0_12 = arith.constant 0 : index
    %c0_13 = arith.constant 0 : index
    %15 = vector.load %arg8[%c17, %c0_12, %c0_13] : memref<18x18x128xf32, #tpu.memory_space<vmem>>, vector<1x18x128xf32>
    tpu.vector_store %arg8[%c17, %c0_12, %c0_13], %12 {strides = array<i32>} : memref<18x18x128xf32, #tpu.memory_space<vmem>>, vector<1x18x128xf32>,
    %c0_14 = arith.constant 0 : index
    %c0_15 = arith.constant 0 : index
    %c0_16 = arith.constant 0 : index
    %16 = vector.load %arg8[%c0_14, %c0_15, %c0_16] : memref<18x18x128xf32, #tpu.memory_space<vmem>>, vector<18x1x128xf32>
    tpu.vector_store %arg8[%c0_14, %c0_15, %c0_16], %13 {strides = array<i32>} : memref<18x18x128xf32, #tpu.memory_space<vmem>>, vector<18x1x128xf32>,
    %c0_17 = arith.constant 0 : index
    %c17_18 = arith.constant 17 : index
    %c0_19 = arith.constant 0 : index
    %17 = vector.load %arg8[%c0_17, %c17_18, %c0_19] : memref<18x18x128xf32, #tpu.memory_space<vmem>>, vector<18x1x128xf32>
    tpu.vector_store %arg8[%c0_17, %c17_18, %c0_19], %13 {strides = array<i32>} : memref<18x18x128xf32, #tpu.memory_space<vmem>>, vector<18x1x128xf32>,
    %c1 = arith.constant 1 : index
    %c1_20 = arith.constant 1 : index
    %c0_21 = arith.constant 0 : index
    %18 = vector.load %arg8[%c1, %c1_20, %c0_21] : memref<18x18x128xf32, #tpu.memory_space<vmem>>, vector<16x16x128xf32>
    tpu.vector_store %arg8[%c1, %c1_20, %c0_21], %11 {strides = array<i32>} : memref<18x18x128xf32, #tpu.memory_space<vmem>>, vector<16x16x128xf32>,
    %c0_22 = arith.constant 0 : index
    %c0_23 = arith.constant 0 : index
    %c0_24 = arith.constant 0 : index
    %19 = vector.load %arg8[%c0_22, %c0_23, %c0_24] : memref<18x18x128xf32, #tpu.memory_space<vmem>>, vector<16x16x128xf32>
    %20 = vector.shape_cast %19 : vector<16x16x128xf32> to vector<256x128xf32>
    %c0_25 = arith.constant 0 : index
    %c1_26 = arith.constant 1 : index
    %c0_27 = arith.constant 0 : index
    %21 = vector.load %arg8[%c0_25, %c1_26, %c0_27] : memref<18x18x128xf32, #tpu.memory_space<vmem>>, vector<16x16x128xf32>
    %22 = vector.shape_cast %21 : vector<16x16x128xf32> to vector<256x128xf32>
    %c0_28 = arith.constant 0 : index
    %c2 = arith.constant 2 : index
    %c0_29 = arith.constant 0 : index
    %23 = vector.load %arg8[%c0_28, %c2, %c0_29] : memref<18x18x128xf32, #tpu.memory_space<vmem>>, vector<16x16x128xf32>
    %24 = vector.shape_cast %23 : vector<16x16x128xf32> to vector<256x128xf32>
    %c1_30 = arith.constant 1 : index
    %c0_31 = arith.constant 0 : index
    %c0_32 = arith.constant 0 : index
    %25 = vector.load %arg8[%c1_30, %c0_31, %c0_32] : memref<18x18x128xf32, #tpu.memory_space<vmem>>, vector<16x16x128xf32>
    %26 = vector.shape_cast %25 : vector<16x16x128xf32> to vector<256x128xf32>
    %c1_33 = arith.constant 1 : index
    %c1_34 = arith.constant 1 : index
    %c0_35 = arith.constant 0 : index
    %27 = vector.load %arg8[%c1_33, %c1_34, %c0_35] : memref<18x18x128xf32, #tpu.memory_space<vmem>>, vector<16x16x128xf32>
    %28 = vector.shape_cast %27 : vector<16x16x128xf32> to vector<256x128xf32>
    %c1_36 = arith.constant 1 : index
    %c2_37 = arith.constant 2 : index
    %c0_38 = arith.constant 0 : index
    %29 = vector.load %arg8[%c1_36, %c2_37, %c0_38] : memref<18x18x128xf32, #tpu.memory_space<vmem>>, vector<16x16x128xf32>
    %30 = vector.shape_cast %29 : vector<16x16x128xf32> to vector<256x128xf32>
    %c2_39 = arith.constant 2 : index
    %c0_40 = arith.constant 0 : index
    %c0_41 = arith.constant 0 : index
    %31 = vector.load %arg8[%c2_39, %c0_40, %c0_41] : memref<18x18x128xf32, #tpu.memory_space<vmem>>, vector<16x16x128xf32>
    %32 = vector.shape_cast %31 : vector<16x16x128xf32> to vector<256x128xf32>
    %c2_42 = arith.constant 2 : index
    %c1_43 = arith.constant 1 : index
    %c0_44 = arith.constant 0 : index
    %33 = vector.load %arg8[%c2_42, %c1_43, %c0_44] : memref<18x18x128xf32, #tpu.memory_space<vmem>>, vector<16x16x128xf32>
    %34 = vector.shape_cast %33 : vector<16x16x128xf32> to vector<256x128xf32>
    %c2_45 = arith.constant 2 : index
    %c2_46 = arith.constant 2 : index
    %c0_47 = arith.constant 0 : index
    %35 = vector.load %arg8[%c2_45, %c2_46, %c0_47] : memref<18x18x128xf32, #tpu.memory_space<vmem>>, vector<16x16x128xf32>
    %36 = vector.shape_cast %35 : vector<16x16x128xf32> to vector<256x128xf32>
    %37 = tpu.concatenate %20, %22, %24, %26, %28, %30, %32, %34, %36 in 1 : vector<256x128xf32>, vector<256x128xf32>, vector<256x128xf32>, vector<256x128xf32>, vector<256x128xf32>, vector<256x128xf32>, vector<256x128xf32>, vector<256x128xf32>, vector<256x128xf32> -> vector<256x1152xf32>
    %38 = arith.truncf %37 : vector<256x1152xf32> to vector<256x1152xbf16>
    %c0_48 = arith.constant 0 : index
    %c0_49 = arith.constant 0 : index
    %39 = vector.load %arg4[%c0_48, %c0_49] : memref<1152x128xbf16, #tpu.memory_space<vmem>>, vector<1152x128xbf16>
    %cst_50 = arith.constant dense<0.000000e+00> : vector<256x128xf32>
    %40 = tpu.matmul %38, %39, %cst_50 {dimension_numbers = #tpu.dot_dimension_numbers<[1], [0], [0], [1], [0, 0, 1, 1], [], []>} : vector<256x1152xbf16>, vector<1152x128xbf16>, vector<256x128xf32> -> vector<256x128xf32>
    %41 = vector.shape_cast %40 : vector<256x128xf32> to vector<1x16x16x128xf32>
    %c0_51 = arith.constant 0 : index
    %c0_52 = arith.constant 0 : index
    %c0_53 = arith.constant 0 : index
    %c0_54 = arith.constant 0 : index
    %42 = vector.load %arg5[%c0_51, %c0_52, %c0_53, %c0_54] : memref<1x16x16x128xf32, #tpu.memory_space<vmem>>, vector<1x16x16x128xf32>
    tpu.vector_store %arg5[%c0_51, %c0_52, %c0_53, %c0_54], %41 {strides = array<i32>} : memref<1x16x16x128xf32, #tpu.memory_space<vmem>>, vector<1x16x16x128xf32>,
    %cst_55 = arith.constant dense<0.000000e+00> : vector<128xf32>
    %43 = vector.multi_reduction <add>, %40, %cst_55 [0] : vector<256x128xf32> to vector<128xf32>
    %44 = vector.shape_cast %43 : vector<128xf32> to vector<1x128xf32>
    %c0_56 = arith.constant 0 : index
    %c0_57 = arith.constant 0 : index
    %c0_58 = arith.constant 0 : index
    %45 = vector.load %arg6[%c0_56, %c0_57, %c0_58] : memref<1x1x128xf32, #tpu.memory_space<vmem>>, vector<1x1x128xf32>
    %46 = vector.shape_cast %45 : vector<1x1x128xf32> to vector<1x128xf32>
    %47 = vector.shape_cast %44 : vector<1x128xf32> to vector<1x1x128xf32>
    tpu.vector_store %arg6[%c0_56, %c0_57, %c0_58], %47 {strides = array<i32>} : memref<1x1x128xf32, #tpu.memory_space<vmem>>, vector<1x1x128xf32>,
    %48 = arith.mulf %40, %40 : vector<256x128xf32>
    %cst_59 = arith.constant dense<0.000000e+00> : vector<128xf32>
    %49 = vector.multi_reduction <add>, %48, %cst_59 [0] : vector<256x128xf32> to vector<128xf32>
    %50 = vector.shape_cast %49 : vector<128xf32> to vector<1x128xf32>
    %c0_60 = arith.constant 0 : index
    %c0_61 = arith.constant 0 : index
    %c0_62 = arith.constant 0 : index
    %51 = vector.load %arg7[%c0_60, %c0_61, %c0_62] : memref<1x1x128xf32, #tpu.memory_space<vmem>>, vector<1x1x128xf32>
    %52 = vector.shape_cast %51 : vector<1x1x128xf32> to vector<1x128xf32>
    %53 = vector.shape_cast %50 : vector<1x128xf32> to vector<1x1x128xf32>
    tpu.vector_store %arg7[%c0_60, %c0_61, %c0_62], %53 {strides = array<i32>} : memref<1x1x128xf32, #tpu.memory_space<vmem>>, vector<1x1x128xf32>,
    return
  }
  func.func @transform_0(%arg0: i32) -> (i32, i32, i32, i32) {
    %c0_i32 = arith.constant 0 : i32
    %c0_i32_0 = arith.constant 0 : i32
    %c0_i32_1 = arith.constant 0 : i32
    %c0_i32_2 = arith.constant 0 : i32
    return %arg0, %c0_i32, %c0_i32_0, %c0_i32_1 : i32, i32, i32, i32
  }
  func.func @transform_1(%arg0: i32) -> (i32, i32) {
    %c0_i32 = arith.constant 0 : i32
    %c0_i32_0 = arith.constant 0 : i32
    %c0_i32_1 = arith.constant 0 : i32
    return %c0_i32, %c0_i32_0 : i32, i32
  }
  func.func @transform_2(%arg0: i32) -> (i32, i32) {
    %c0_i32 = arith.constant 0 : i32
    %c0_i32_0 = arith.constant 0 : i32
    %c0_i32_1 = arith.constant 0 : i32
    return %c0_i32, %c0_i32_0 : i32, i32
  }
  func.func @transform_3(%arg0: i32) -> (i32, i32) {
    %c0_i32 = arith.constant 0 : i32
    %c0_i32_0 = arith.constant 0 : i32
    %c0_i32_1 = arith.constant 0 : i32
    return %c0_i32, %c0_i32_0 : i32, i32
  }
  func.func @transform_4(%arg0: i32) -> (i32, i32, i32, i32) {
    %c0_i32 = arith.constant 0 : i32
    %c0_i32_0 = arith.constant 0 : i32
    %c0_i32_1 = arith.constant 0 : i32
    %c0_i32_2 = arith.constant 0 : i32
    return %arg0, %c0_i32, %c0_i32_0, %c0_i32_1 : i32, i32, i32, i32
  }
  func.func @transform_5(%arg0: i32) -> (i32, i32, i32) {
    %c0_i32 = arith.constant 0 : i32
    %c0_i32_0 = arith.constant 0 : i32
    %c0_i32_1 = arith.constant 0 : i32
    return %arg0, %c0_i32, %c0_i32_0 : i32, i32, i32
  }
  func.func @transform_6(%arg0: i32) -> (i32, i32, i32) {
    %c0_i32 = arith.constant 0 : i32
    %c0_i32_0 = arith.constant 0 : i32
    %c0_i32_1 = arith.constant 0 : i32
    return %arg0, %c0_i32, %c0_i32_0 : i32, i32, i32
  }
}

module attributes {stable_mosaic.version = 11 : i64} {
  func.func @_conv1x1_kernel(%arg0: i32, %arg1: memref<256x128xf32, #tpu.memory_space<vmem>>, %arg2: memref<1x128xf32, #tpu.memory_space<vmem>>, %arg3: memref<1x128xf32, #tpu.memory_space<vmem>>, %arg4: memref<128x128xbf16, #tpu.memory_space<vmem>>, %arg5: memref<256x128xf32, #tpu.memory_space<vmem>>, %arg6: memref<1x1x128xf32, #tpu.memory_space<vmem>>, %arg7: memref<1x1x128xf32, #tpu.memory_space<vmem>>) attributes {dimension_semantics = [#tpu.dimension_semantics<parallel>], iteration_bounds = array<i64: 2>, scalar_prefetch = 0 : i64, scratch_operands = 0 : i64, tpu.core_type = #tpu.core_type<tc>, window_params = [{transform_indices = @transform_0, window_bounds = array<i64: 256, 128>}, {pipeline_mode = #tpu.pipeline_mode<synchronous>, transform_indices = @transform_1, window_bounds = array<i64: 1, 128>}, {pipeline_mode = #tpu.pipeline_mode<synchronous>, transform_indices = @transform_2, window_bounds = array<i64: 1, 128>}, {pipeline_mode = #tpu.pipeline_mode<synchronous>, transform_indices = @transform_3, window_bounds = array<i64: 128, 128>}, {transform_indices = @transform_4, window_bounds = array<i64: 256, 128>}, {transform_indices = @transform_5, window_bounds = array<i64: 1, 1, 128>}, {transform_indices = @transform_6, window_bounds = array<i64: 1, 1, 128>}]} {
    %c0 = arith.constant 0 : index
    %c0_0 = arith.constant 0 : index
    %0 = vector.load %arg1[%c0, %c0_0] : memref<256x128xf32, #tpu.memory_space<vmem>>, vector<256x128xf32>
    %c0_1 = arith.constant 0 : index
    %c0_2 = arith.constant 0 : index
    %1 = vector.load %arg2[%c0_1, %c0_2] : memref<1x128xf32, #tpu.memory_space<vmem>>, vector<1x128xf32>
    %2 = vector.broadcast %1 : vector<1x128xf32> to vector<256x128xf32>
    %3 = arith.mulf %0, %2 : vector<256x128xf32>
    %c0_3 = arith.constant 0 : index
    %c0_4 = arith.constant 0 : index
    %4 = vector.load %arg3[%c0_3, %c0_4] : memref<1x128xf32, #tpu.memory_space<vmem>>, vector<1x128xf32>
    %5 = vector.broadcast %4 : vector<1x128xf32> to vector<256x128xf32>
    %6 = arith.addf %3, %5 : vector<256x128xf32>
    %cst = arith.constant 0.000000e+00 : f32
    %7 = vector.broadcast %cst : f32 to vector<256x128xf32>
    %8 = arith.maximumf %6, %7 : vector<256x128xf32>
    %9 = arith.truncf %8 : vector<256x128xf32> to vector<256x128xbf16>
    %c0_5 = arith.constant 0 : index
    %c0_6 = arith.constant 0 : index
    %10 = vector.load %arg4[%c0_5, %c0_6] : memref<128x128xbf16, #tpu.memory_space<vmem>>, vector<128x128xbf16>
    %cst_7 = arith.constant dense<0.000000e+00> : vector<256x128xf32>
    %11 = tpu.matmul %9, %10, %cst_7 {dimension_numbers = #tpu.dot_dimension_numbers<[1], [0], [0], [1], [0, 0, 1, 1], [], []>} : vector<256x128xbf16>, vector<128x128xbf16>, vector<256x128xf32> -> vector<256x128xf32>
    %c0_8 = arith.constant 0 : index
    %c0_9 = arith.constant 0 : index
    %12 = vector.load %arg5[%c0_8, %c0_9] : memref<256x128xf32, #tpu.memory_space<vmem>>, vector<256x128xf32>
    tpu.vector_store %arg5[%c0_8, %c0_9], %11 {strides = array<i32>} : memref<256x128xf32, #tpu.memory_space<vmem>>, vector<256x128xf32>,
    %cst_10 = arith.constant dense<0.000000e+00> : vector<128xf32>
    %13 = vector.multi_reduction <add>, %11, %cst_10 [0] : vector<256x128xf32> to vector<128xf32>
    %14 = vector.shape_cast %13 : vector<128xf32> to vector<1x128xf32>
    %c0_11 = arith.constant 0 : index
    %c0_12 = arith.constant 0 : index
    %c0_13 = arith.constant 0 : index
    %15 = vector.load %arg6[%c0_11, %c0_12, %c0_13] : memref<1x1x128xf32, #tpu.memory_space<vmem>>, vector<1x1x128xf32>
    %16 = vector.shape_cast %15 : vector<1x1x128xf32> to vector<1x128xf32>
    %17 = vector.shape_cast %14 : vector<1x128xf32> to vector<1x1x128xf32>
    tpu.vector_store %arg6[%c0_11, %c0_12, %c0_13], %17 {strides = array<i32>} : memref<1x1x128xf32, #tpu.memory_space<vmem>>, vector<1x1x128xf32>,
    %18 = arith.mulf %11, %11 : vector<256x128xf32>
    %cst_14 = arith.constant dense<0.000000e+00> : vector<128xf32>
    %19 = vector.multi_reduction <add>, %18, %cst_14 [0] : vector<256x128xf32> to vector<128xf32>
    %20 = vector.shape_cast %19 : vector<128xf32> to vector<1x128xf32>
    %c0_15 = arith.constant 0 : index
    %c0_16 = arith.constant 0 : index
    %c0_17 = arith.constant 0 : index
    %21 = vector.load %arg7[%c0_15, %c0_16, %c0_17] : memref<1x1x128xf32, #tpu.memory_space<vmem>>, vector<1x1x128xf32>
    %22 = vector.shape_cast %21 : vector<1x1x128xf32> to vector<1x128xf32>
    %23 = vector.shape_cast %20 : vector<1x128xf32> to vector<1x1x128xf32>
    tpu.vector_store %arg7[%c0_15, %c0_16, %c0_17], %23 {strides = array<i32>} : memref<1x1x128xf32, #tpu.memory_space<vmem>>, vector<1x1x128xf32>,
    return
  }
  func.func @transform_0(%arg0: i32) -> (i32, i32) {
    %c0_i32 = arith.constant 0 : i32
    %c0_i32_0 = arith.constant 0 : i32
    return %arg0, %c0_i32 : i32, i32
  }
  func.func @transform_1(%arg0: i32) -> (i32, i32) {
    %c0_i32 = arith.constant 0 : i32
    %c0_i32_0 = arith.constant 0 : i32
    %c0_i32_1 = arith.constant 0 : i32
    return %c0_i32, %c0_i32_0 : i32, i32
  }
  func.func @transform_2(%arg0: i32) -> (i32, i32) {
    %c0_i32 = arith.constant 0 : i32
    %c0_i32_0 = arith.constant 0 : i32
    %c0_i32_1 = arith.constant 0 : i32
    return %c0_i32, %c0_i32_0 : i32, i32
  }
  func.func @transform_3(%arg0: i32) -> (i32, i32) {
    %c0_i32 = arith.constant 0 : i32
    %c0_i32_0 = arith.constant 0 : i32
    %c0_i32_1 = arith.constant 0 : i32
    return %c0_i32, %c0_i32_0 : i32, i32
  }
  func.func @transform_4(%arg0: i32) -> (i32, i32) {
    %c0_i32 = arith.constant 0 : i32
    %c0_i32_0 = arith.constant 0 : i32
    return %arg0, %c0_i32 : i32, i32
  }
  func.func @transform_5(%arg0: i32) -> (i32, i32, i32) {
    %c0_i32 = arith.constant 0 : i32
    %c0_i32_0 = arith.constant 0 : i32
    %c0_i32_1 = arith.constant 0 : i32
    return %arg0, %c0_i32, %c0_i32_0 : i32, i32, i32
  }
  func.func @transform_6(%arg0: i32) -> (i32, i32, i32) {
    %c0_i32 = arith.constant 0 : i32
    %c0_i32_0 = arith.constant 0 : i32
    %c0_i32_1 = arith.constant 0 : i32
    return %arg0, %c0_i32, %c0_i32_0 : i32, i32, i32
  }
}

module attributes {stable_mosaic.version = 11 : i64} {
  func.func @_bn_add_relu_kernel(%arg0: i32, %arg1: memref<256x128xf32, #tpu.memory_space<vmem>>, %arg2: memref<1x128xf32, #tpu.memory_space<vmem>>, %arg3: memref<1x128xf32, #tpu.memory_space<vmem>>, %arg4: memref<256x128xf32, #tpu.memory_space<vmem>>, %arg5: memref<256x128xf32, #tpu.memory_space<vmem>>) attributes {dimension_semantics = [#tpu.dimension_semantics<parallel>], iteration_bounds = array<i64: 2>, scalar_prefetch = 0 : i64, scratch_operands = 0 : i64, tpu.core_type = #tpu.core_type<tc>, window_params = [{transform_indices = @transform_0, window_bounds = array<i64: 256, 128>}, {pipeline_mode = #tpu.pipeline_mode<synchronous>, transform_indices = @transform_1, window_bounds = array<i64: 1, 128>}, {pipeline_mode = #tpu.pipeline_mode<synchronous>, transform_indices = @transform_2, window_bounds = array<i64: 1, 128>}, {transform_indices = @transform_3, window_bounds = array<i64: 256, 128>}, {transform_indices = @transform_4, window_bounds = array<i64: 256, 128>}]} {
    %c0 = arith.constant 0 : index
    %c0_0 = arith.constant 0 : index
    %0 = vector.load %arg1[%c0, %c0_0] : memref<256x128xf32, #tpu.memory_space<vmem>>, vector<256x128xf32>
    %c0_1 = arith.constant 0 : index
    %c0_2 = arith.constant 0 : index
    %1 = vector.load %arg2[%c0_1, %c0_2] : memref<1x128xf32, #tpu.memory_space<vmem>>, vector<1x128xf32>
    %2 = vector.broadcast %1 : vector<1x128xf32> to vector<256x128xf32>
    %3 = arith.mulf %0, %2 : vector<256x128xf32>
    %c0_3 = arith.constant 0 : index
    %c0_4 = arith.constant 0 : index
    %4 = vector.load %arg3[%c0_3, %c0_4] : memref<1x128xf32, #tpu.memory_space<vmem>>, vector<1x128xf32>
    %5 = vector.broadcast %4 : vector<1x128xf32> to vector<256x128xf32>
    %6 = arith.addf %3, %5 : vector<256x128xf32>
    %c0_5 = arith.constant 0 : index
    %c0_6 = arith.constant 0 : index
    %7 = vector.load %arg4[%c0_5, %c0_6] : memref<256x128xf32, #tpu.memory_space<vmem>>, vector<256x128xf32>
    %8 = arith.addf %6, %7 : vector<256x128xf32>
    %cst = arith.constant 0.000000e+00 : f32
    %9 = vector.broadcast %cst : f32 to vector<256x128xf32>
    %10 = arith.maximumf %8, %9 : vector<256x128xf32>
    %c0_7 = arith.constant 0 : index
    %c0_8 = arith.constant 0 : index
    %11 = vector.load %arg5[%c0_7, %c0_8] : memref<256x128xf32, #tpu.memory_space<vmem>>, vector<256x128xf32>
    tpu.vector_store %arg5[%c0_7, %c0_8], %10 {strides = array<i32>} : memref<256x128xf32, #tpu.memory_space<vmem>>, vector<256x128xf32>,
    return
  }
  func.func @transform_0(%arg0: i32) -> (i32, i32) {
    %c0_i32 = arith.constant 0 : i32
    %c0_i32_0 = arith.constant 0 : i32
    return %arg0, %c0_i32 : i32, i32
  }
  func.func @transform_1(%arg0: i32) -> (i32, i32) {
    %c0_i32 = arith.constant 0 : i32
    %c0_i32_0 = arith.constant 0 : i32
    %c0_i32_1 = arith.constant 0 : i32
    return %c0_i32, %c0_i32_0 : i32, i32
  }
  func.func @transform_2(%arg0: i32) -> (i32, i32) {
    %c0_i32 = arith.constant 0 : i32
    %c0_i32_0 = arith.constant 0 : i32
    %c0_i32_1 = arith.constant 0 : i32
    return %c0_i32, %c0_i32_0 : i32, i32
  }
  func.func @transform_3(%arg0: i32) -> (i32, i32) {
    %c0_i32 = arith.constant 0 : i32
    %c0_i32_0 = arith.constant 0 : i32
    return %arg0, %c0_i32 : i32, i32
  }
  func.func @transform_4(%arg0: i32) -> (i32, i32) {
    %c0_i32 = arith.constant 0 : i32
    %c0_i32_0 = arith.constant 0 : i32
    return %arg0, %c0_i32 : i32, i32
  }
}

</mosaic_0001>

<llo_original>
// kernel: bottleneck_pallas.4
$region0: #{bottleneck_pallas.4}
  #allocation0 [shape = 'u32[]', space=smem, size = 0x4, offset = 0x4, fixed_abs, tag = 'smem constant byte address 0x4 - core index']
  #allocation1 [shape = 'u32[144,128]{1,0:T(1,128)}', space=vmem, size = 0x12000, scoped, tag = 'internal scratch']
  %s0 = inlined_call_operand.vmem [shape: f32[512,128], index: 0, kind: input, shape index: {}]
  %s1 = inlined_call_operand.vmem [shape: bf16[128,128], index: 1, kind: input, shape index: {}]
  %s2 = inlined_call_operand.vmem [shape: f32[512,128], index: 2, kind: output, shape index: {0}]
  %s3 = inlined_call_operand.vmem [shape: f32[2,1,128], index: 3, kind: output, shape index: {1}]
  %s4 = inlined_call_operand.vmem [shape: f32[2,1,128], index: 4, kind: output, shape index: {2}]
  %5 = xla_tuple %s2, %s3, %s4
  %s6 = sld [smem:[#allocation0]]
  $region57: #{bottleneck_pallas.4} parent=0
    _
  %s8 = ssub.s32 1, %s6
  %s9 = scalar_select 0, %s8, %s6
  loop: start=0, step=1, limit=4
  $region2: #{bottleneck_pallas.4} parent=0 // loop_pre_header
    _
  $region3: #{bottleneck_pallas.4} parent=0 // loop_header
    %s11 = sphi 0, %s15
    %p12 = scmp.ge.s32.totalorder %s11, 4
    %s21 = sphi 0, %s23
    %s24 = sphi 0, %s21
    %s25 = sphi 0, %s24
    %s41 = sphi 0, %s25
    %s45 = sphi 0, %s45
    %s47 = sphi 0, %s45
    %s48 = sphi 0, %s47
    %s62 = sphi 0, %s48
    %s68 = sphi 0, %s70
    %s71 = sphi 0, %s68
    %s72 = sphi 0, %s71
    %s88 = sphi 0, %s72
    %s94 = sphi 0, %s96
    %s97 = sphi 0, %s94
    %s98 = sphi 0, %s97
    %s114 = sphi 0, %s98
    %s120 = sphi 0, %s122
    %s123 = sphi 0, %s120
    %s124 = sphi 0, %s123
    %s140 = sphi 0, %s124
  $region4: #{bottleneck_pallas.4} parent=0 // loop_header_branch
    %14 = sbr.rel (%p12) target = $region8
  $region5: #{bottleneck_pallas.4} parent=0 // loop_body
    %s16 = ssub.s32 %s11, 1
    %s17 = ssub.s32 %s11, 2
    %s18 = sadd.s32 %s11, 1
    %s19 = ssub.s32 %s11, %s18
    %p20 = scmp.eq.s32.totalorder %s19, 0
    %s22 = sadd.s32 %s21, 1
    %s23 = scalar_select %p20, %s21, %s22
    %p26 = pneg %p20
    %p27 = scmp.eq.s32.totalorder %s11, 1
    %p28 = por %p26, %p27
    %p29 = scmp.ne.s32.totalorder %s21, %s24
    %p30 = scmp.eq.s32.totalorder %s11, 0
    %p31 = por %p29, %p30
    %p32 = scmp.ne.s32.totalorder %s21, %s24
    %p33 = scmp.eq.s32.totalorder %s16, 1
    %p34 = por %p32, %p33
    %p35 = scmp.ne.s32.totalorder %s24, %s25
    %p36 = scmp.eq.s32.totalorder %s16, 0
    %p37 = por %p35, %p36
    %p38 = scmp.ne.s32.totalorder %s24, %s25
    %p39 = scmp.eq.s32.totalorder %s17, 1
    %p40 = por %p38, %p39
    %p42 = scmp.ne.s32.totalorder %s25, %s41
    %p43 = scmp.eq.s32.totalorder %s17, 0
    %p44 = por %p42, %p43
    %s46 = sadd.s32 %s45, 1
    %p49 = scmp.eq.s32.totalorder %s11, 1
    %p50 = scmp.ne.s32.totalorder %s45, %s47
    %p51 = scmp.eq.s32.totalorder %s11, 0
    %p52 = por %p50, %p51
    %p53 = scmp.ne.s32.totalorder %s45, %s47
    %p54 = scmp.eq.s32.totalorder %s16, 1
    %p55 = por %p53, %p54
    %p56 = scmp.ne.s32.totalorder %s47, %s48
    %p57 = scmp.eq.s32.totalorder %s16, 0
    %p58 = por %p56, %p57
    %p59 = scmp.ne.s32.totalorder %s47, %s48
    %p60 = scmp.eq.s32.totalorder %s17, 1
    %p61 = por %p59, %p60
    %p63 = scmp.ne.s32.totalorder %s48, %s62
    %p64 = scmp.eq.s32.totalorder %s17, 0
    %p65 = por %p63, %p64
    %s66 = ssub.s32 %s11, %s18
    %p67 = scmp.eq.s32.totalorder %s66, 0
    %s69 = sadd.s32 %s68, 1
    %s70 = scalar_select %p67, %s68, %s69
    %p73 = pneg %p67
    %p74 = scmp.eq.s32.totalorder %s11, 1
    %p75 = por %p73, %p74
    %p76 = scmp.ne.s32.totalorder %s68, %s71
    %p77 = scmp.eq.s32.totalorder %s11, 0
    %p78 = por %p76, %p77
    %p79 = scmp.ne.s32.totalorder %s68, %s71
    %p80 = scmp.eq.s32.totalorder %s16, 1
    %p81 = por %p79, %p80
    %p82 = scmp.ne.s32.totalorder %s71, %s72
    %p83 = scmp.eq.s32.totalorder %s16, 0
    %p84 = por %p82, %p83
    %p85 = scmp.ne.s32.totalorder %s71, %s72
    %p86 = scmp.eq.s32.totalorder %s17, 1
    %p87 = por %p85, %p86
    %p89 = scmp.ne.s32.totalorder %s72, %s88
    %p90 = scmp.eq.s32.totalorder %s17, 0
    %p91 = por %p89, %p90
    %s92 = ssub.s32 %s11, %s18
    %p93 = scmp.eq.s32.totalorder %s92, 0
    %s95 = sadd.s32 %s94, 1
    %s96 = scalar_select %p93, %s94, %s95
    %p99 = pneg %p93
    %p100 = scmp.eq.s32.totalorder %s11, 1
    %p101 = por %p99, %p100
    %p102 = scmp.ne.s32.totalorder %s94, %s97
    %p103 = scmp.eq.s32.totalorder %s11, 0
    %p104 = por %p102, %p103
    %p105 = scmp.ne.s32.totalorder %s94, %s97
    %p106 = scmp.eq.s32.totalorder %s16, 1
    %p107 = por %p105, %p106
    %p108 = scmp.ne.s32.totalorder %s97, %s98
    %p109 = scmp.eq.s32.totalorder %s16, 0
    %p110 = por %p108, %p109
    %p111 = scmp.ne.s32.totalorder %s97, %s98
    %p112 = scmp.eq.s32.totalorder %s17, 1
    %p113 = por %p111, %p112
    %p115 = scmp.ne.s32.totalorder %s98, %s114
    %p116 = scmp.eq.s32.totalorder %s17, 0
    %p117 = por %p115, %p116
    %s118 = ssub.s32 %s11, %s18
    %p119 = scmp.eq.s32.totalorder %s118, 0
    %s121 = sadd.s32 %s120, 1
    %s122 = scalar_select %p119, %s120, %s121
    %p125 = pneg %p119
    %p126 = scmp.eq.s32.totalorder %s11, 1
    %p127 = por %p125, %p126
    %p128 = scmp.ne.s32.totalorder %s120, %s123
    %p129 = scmp.eq.s32.totalorder %s11, 0
    %p130 = por %p128, %p129
    %p131 = scmp.ne.s32.totalorder %s120, %s123
    %p132 = scmp.eq.s32.totalorder %s16, 1
    %p133 = por %p131, %p132
    %p134 = scmp.ne.s32.totalorder %s123, %s124
    %p135 = scmp.eq.s32.totalorder %s16, 0
    %p136 = por %p134, %p135
    %p137 = scmp.ne.s32.totalorder %s123, %s124
    %p138 = scmp.eq.s32.totalorder %s17, 1
    %p139 = por %p137, %p138
    %p141 = scmp.ne.s32.totalorder %s124, %s140
    %p142 = scmp.eq.s32.totalorder %s17, 0
    %p143 = por %p141, %p142
    %p144 = scmp.le.s32.totalorder 1, %s11
    %p145 = scmp.lt.s32.totalorder %s11, 3
    %p146 = pnand %p144, %p145
    %p147 = pneg %p146
    // Predicated region
    $region9: #{bottleneck_pallas.4} parent=5 // pred_check
      _
    $region10: #{bottleneck_pallas.4} parent=5 // pred_check_branch
      %149 = sbr.rel (%p146) target = $region12
    $region11: #{bottleneck_pallas.4} parent=5 // pred_region
      %s150 = ssub.s32 %s11, 1
      // Predicated region
      $region13: #{bottleneck_pallas.4} parent=11 // pred_check
        %p151 = pneg %p58
      $region14: #{bottleneck_pallas.4} parent=11 // pred_check_branch
        %153 = sbr.rel (%p151) target = $region16
      $region15: #{bottleneck_pallas.4} parent=11 // pred_region
        _
      $region16: #{bottleneck_pallas.4} parent=11 // pred_fallthru
        _
    $region12: #{bottleneck_pallas.4} parent=5 // pred_fallthru
      _
    %p154 = scmp.lt.s32.totalorder %s11, 2
    // Predicated region
    $region17: #{bottleneck_pallas.4} parent=5 // pred_check
      %p155 = pneg %p154
    $region18: #{bottleneck_pallas.4} parent=5 // pred_check_branch
      %157 = sbr.rel (%p155) target = $region20
    $region19: #{bottleneck_pallas.4} parent=5 // pred_region
      // Predicated region
      $region21: #{bottleneck_pallas.4} parent=19 // pred_check
        %p158 = pneg %p31
      $region22: #{bottleneck_pallas.4} parent=19 // pred_check_branch
        %160 = sbr.rel (%p158) target = $region24
      $region23: #{bottleneck_pallas.4} parent=19 // pred_region
        %s161 = smul.u32 32, %s11
        %p162 = scmp.lt.s32.totalorder %s161, 63
        %s163 = scalar_select %p162, %s161, 63
        %s164 = smul.addr %s163, 8
        %s165 = scalar_lea.vmem %s0, %s164
        %s166 = smul.u32 32, %s11
      $region24: #{bottleneck_pallas.4} parent=19 // pred_fallthru
        _
    $region20: #{bottleneck_pallas.4} parent=5 // pred_fallthru
      _
    %p167 = scmp.le.s32.totalorder 1, %s11
    %p168 = scmp.lt.s32.totalorder %s11, 3
    %p169 = pnand %p167, %p168
    %p170 = pneg %p169
    // Predicated region
    $region25: #{bottleneck_pallas.4} parent=5 // pred_check
      _
    $region26: #{bottleneck_pallas.4} parent=5 // pred_check_branch
      %172 = sbr.rel (%p169) target = $region28
    $region27: #{bottleneck_pallas.4} parent=5 // pred_region
      %s173 = ssub.s32 %s11, 1
      %s174 = smul.u32 32, %s16
      %p175 = scmp.lt.s32.totalorder %s174, 63
      %s176 = scalar_select %p175, %s174, 63
      %s177 = smul.addr %s176, 8
      %s178 = scalar_lea.vmem %s0, %s177
      %p179 = pneg %p37
      %p180 = pneg %p34
      %p181 = pneg %p58
      %p182 = pneg %p55
      %p183 = pneg %p84
      %p184 = pneg %p81
      %s185 = smul.u32 32, %s16
      %p186 = scmp.lt.s32.totalorder %s185, 63
      %s187 = scalar_select %p186, %s185, 63
      %s188 = smul.addr %s187, 8
      %s189 = scalar_lea.vmem %s2, %s188
      %p190 = pneg %p110
      %p191 = pneg %p107
      %p192 = scmp.lt.s32.totalorder %s16, 1
      %s193 = scalar_select %p192, %s16, 1
      %s194 = scalar_lea.vmem %s3, %s193
      %p195 = pneg %p136
      %p196 = pneg %p133
      %p197 = scmp.lt.s32.totalorder %s16, 1
      %s198 = scalar_select %p197, %s16, 1
      %s199 = scalar_lea.vmem %s4, %s198
      %s200 = smul.u32 32, %s16
      %p201 = scmp.lt.s32.totalorder %s200, 63
      %s202 = scalar_select %p201, %s200, 63
      %s203 = smul.addr %s202, 8
      %s204 = scalar_lea.vmem %s0, %s203
      %s205 = smul.u32 32, %s16
      %s206 = smul.u32 32, %s16
      %p207 = scmp.lt.s32.totalorder %s206, 63
      %s208 = scalar_select %p207, %s206, 63
      %s209 = smul.addr %s208, 8
      %s210 = scalar_lea.vmem %s2, %s209
      %s211 = smul.u32 32, %s16
      %p212 = scmp.lt.s32.totalorder %s16, 1
      %s213 = scalar_select %p212, %s16, 1
      %s214 = scalar_lea.vmem %s3, %s213
      %p215 = scmp.lt.s32.totalorder %s16, 1
      %s216 = scalar_select %p215, %s16, 1
      %s217 = scalar_lea.vmem %s4, %s216
      %v219 = vld [vmem:[%s204] sm:$0xff]
      %v220 = vld [vmem:[%s204 + $0x8] sm:$0xff]
      %v221 = vld [vmem:[%s204 + $0x10] sm:$0xff]
      %v222 = vld [vmem:[%s204 + $0x18] sm:$0xff]
      %v223 = vld [vmem:[%s204 + $0x20] sm:$0xff]
      %v224 = vld [vmem:[%s204 + $0x28] sm:$0xff]
      %v225 = vld [vmem:[%s204 + $0x30] sm:$0xff]
      %v226 = vld [vmem:[%s204 + $0x38] sm:$0xff]
      %v227 = vld [vmem:[%s204 + $0x40] sm:$0xff]
      %v228 = vld [vmem:[%s204 + $0x48] sm:$0xff]
      %v229 = vld [vmem:[%s204 + $0x50] sm:$0xff]
      %v230 = vld [vmem:[%s204 + $0x58] sm:$0xff]
      %v231 = vld [vmem:[%s204 + $0x60] sm:$0xff]
      %v232 = vld [vmem:[%s204 + $0x68] sm:$0xff]
      %v233 = vld [vmem:[%s204 + $0x70] sm:$0xff]
      %v234 = vld [vmem:[%s204 + $0x78] sm:$0xff]
      %v235 = vld [vmem:[%s204 + $0x80] sm:$0xff]
      %v236 = vld [vmem:[%s204 + $0x88] sm:$0xff]
      %v237 = vld [vmem:[%s204 + $0x90] sm:$0xff]
      %v238 = vld [vmem:[%s204 + $0x98] sm:$0xff]
      %v239 = vld [vmem:[%s204 + $0xa0] sm:$0xff]
      %v240 = vld [vmem:[%s204 + $0xa8] sm:$0xff]
      %v241 = vld [vmem:[%s204 + $0xb0] sm:$0xff]
      %v242 = vld [vmem:[%s204 + $0xb8] sm:$0xff]
      %v243 = vld [vmem:[%s204 + $0xc0] sm:$0xff]
      %v244 = vld [vmem:[%s204 + $0xc8] sm:$0xff]
      %v245 = vld [vmem:[%s204 + $0xd0] sm:$0xff]
      %v246 = vld [vmem:[%s204 + $0xd8] sm:$0xff]
      %v247 = vld [vmem:[%s204 + $0xe0] sm:$0xff]
      %v248 = vld [vmem:[%s204 + $0xe8] sm:$0xff]
      %v249 = vld [vmem:[%s204 + $0xf0] sm:$0xff]
      %v250 = vld [vmem:[%s204 + $0xf8] sm:$0xff]
      %v251 = vpack.c.bf16 %v220, %v219
      %v252 = vpack.c.bf16 %v222, %v221
      %v253 = vpack.c.bf16 %v224, %v223
      %v254 = vpack.c.bf16 %v226, %v225
      %v255 = vpack.c.bf16 %v228, %v227
      %v256 = vpack.c.bf16 %v230, %v229
      %v257 = vpack.c.bf16 %v232, %v231
      %v258 = vpack.c.bf16 %v234, %v233
      %v259 = vpack.c.bf16 %v236, %v235
      %v260 = vpack.c.bf16 %v238, %v237
      %v261 = vpack.c.bf16 %v240, %v239
      %v262 = vpack.c.bf16 %v242, %v241
      %v263 = vpack.c.bf16 %v244, %v243
      %v264 = vpack.c.bf16 %v246, %v245
      %v265 = vpack.c.bf16 %v248, %v247
      %v266 = vpack.c.bf16 %v250, %v249
      %v267 = vld [vmem:[%s1] sm:$0xf]
      %v268 = vld [vmem:[%s1 + $0x4] sm:$0xf]
      %v269 = vld [vmem:[%s1 + $0x8] sm:$0xf]
      %v270 = vld [vmem:[%s1 + $0xc] sm:$0xf]
      %v271 = vld [vmem:[%s1 + $0x10] sm:$0xf]
      %v272 = vld [vmem:[%s1 + $0x14] sm:$0xf]
      %v273 = vld [vmem:[%s1 + $0x18] sm:$0xf]
      %v274 = vld [vmem:[%s1 + $0x1c] sm:$0xf]
      %v275 = vld [vmem:[%s1 + $0x20] sm:$0xf]
      %v276 = vld [vmem:[%s1 + $0x24] sm:$0xf]
      %v277 = vld [vmem:[%s1 + $0x28] sm:$0xf]
      %v278 = vld [vmem:[%s1 + $0x2c] sm:$0xf]
      %v279 = vld [vmem:[%s1 + $0x30] sm:$0xf]
      %v280 = vld [vmem:[%s1 + $0x34] sm:$0xf]
      %v281 = vld [vmem:[%s1 + $0x38] sm:$0xf]
      %v282 = vld [vmem:[%s1 + $0x3c] sm:$0xf]
      %v299 = vunpack.c.l.b16 %v267
      %v300 = vunpack.c.l.b16 %v268
      %v301 = vunpack.c.l.b16 %v269
      %v302 = vunpack.c.l.b16 %v270
      %v303 = vunpack.c.l.b16 %v271
      %v304 = vunpack.c.l.b16 %v272
      %v305 = vunpack.c.l.b16 %v273
      %v306 = vunpack.c.l.b16 %v274
      %v307 = vunpack.c.l.b16 %v275
      %v308 = vunpack.c.l.b16 %v276
      %v309 = vunpack.c.l.b16 %v277
      %v310 = vunpack.c.l.b16 %v278
      %v311 = vunpack.c.l.b16 %v279
      %v312 = vunpack.c.l.b16 %v280
      %v313 = vunpack.c.l.b16 %v281
      %v314 = vunpack.c.l.b16 %v282
      %v315 = vpack.c.b16 %v300, %v299
      %v316 = vpack.c.b16 %v302, %v301
      %v317 = vpack.c.b16 %v304, %v303
      %v318 = vpack.c.b16 %v306, %v305
      %v319 = vpack.c.b16 %v308, %v307
      %v320 = vpack.c.b16 %v310, %v309
      %v321 = vpack.c.b16 %v312, %v311
      %v322 = vpack.c.b16 %v314, %v313
      %331 = vmatprep.subr.bf16.mxu0 0
      %332 = vmatpush1.bf16.msra.mxu0 %v315
      %333 = vmatprep.subr.bf16.mxu0 0
      %334 = vmatpush1.bf16.msra.mxu0 %v316
      %335 = vmatprep.subr.bf16.mxu0 0
      %336 = vmatpush1.bf16.msra.mxu0 %v317
      %337 = vmatprep.subr.bf16.mxu0 0
      %338 = vmatpush1.bf16.msra.mxu0 %v318
      %339 = vmatprep.subr.bf16.mxu0 0
      %340 = vmatpush1.bf16.msra.mxu0 %v319
      %341 = vmatprep.subr.bf16.mxu0 0
      %342 = vmatpush1.bf16.msra.mxu0 %v320
      %343 = vmatprep.subr.bf16.mxu0 0
      %344 = vmatpush1.bf16.msra.mxu0 %v321
      %345 = vmatprep.subr.bf16.mxu0 0
      %346 = vmatpush1.bf16.msra.mxu0 %v322
      %347 = vmatprep.subr.bf16.mxu0 0
      %348 = vmatpush1.bf16.msra.mxu0 0
      %349 = vmatprep.subr.bf16.mxu0 0
      %350 = vmatpush1.bf16.msra.mxu0 0
      %351 = vmatprep.subr.bf16.mxu0 0
      %352 = vmatpush1.bf16.msra.mxu0 0
      %353 = vmatprep.subr.bf16.mxu0 0
      %354 = vmatpush1.bf16.msra.mxu0 0
      %355 = vmatprep.subr.bf16.mxu0 0
      %356 = vmatpush1.bf16.msra.mxu0 0
      %357 = vmatprep.subr.bf16.mxu0 0
      %358 = vmatpush1.bf16.msra.mxu0 0
      %359 = vmatprep.subr.bf16.mxu0 0
      %360 = vmatpush1.bf16.msra.mxu0 0
      %361 = vmatprep.subr.bf16.mxu0 0
      %362 = vmatpush1.bf16.msra.mxu0 0
      %363 = vmatprep.mubr.bf16.mxu0 0
      %364 = vmatmul.mubr.bf16.gmra.mrb[0].mxu0 %v251
      %v365 = vpop.f32.mrb[0].mxu0
      %v366 = vadd.f32 0.0, %v365
      %v367 = vpop.f32.mrb[0].mxu0
      %v368 = vpop.f32.mrb[0].mxu0
      %v369 = vadd.f32 0.0, %v368
      %v370 = vpop.f32.mrb[0].mxu0
      %371 = vmatprep.mubr.bf16.mxu0 0
      %372 = vmatmul.mubr.bf16.gmra.mrb[0].mxu0 %v252
      %v373 = vpop.f32.mrb[0].mxu0
      %v374 = vadd.f32 0.0, %v373
      %v375 = vpop.f32.mrb[0].mxu0
      %v376 = vpop.f32.mrb[0].mxu0
      %v377 = vadd.f32 0.0, %v376
      %v378 = vpop.f32.mrb[0].mxu0
      %379 = vmatprep.mubr.bf16.mxu0 0
      %380 = vmatmul.mubr.bf16.gmra.mrb[0].mxu0 %v253
      %v381 = vpop.f32.mrb[0].mxu0
      %v382 = vadd.f32 0.0, %v381
      %v383 = vpop.f32.mrb[0].mxu0
      %v384 = vpop.f32.mrb[0].mxu0
      %v385 = vadd.f32 0.0, %v384
      %v386 = vpop.f32.mrb[0].mxu0
      %387 = vmatprep.mubr.bf16.mxu0 0
      %388 = vmatmul.mubr.bf16.gmra.mrb[0].mxu0 %v254
      %v389 = vpop.f32.mrb[0].mxu0
      %v390 = vadd.f32 0.0, %v389
      %v391 = vpop.f32.mrb[0].mxu0
      %v392 = vpop.f32.mrb[0].mxu0
      %v393 = vadd.f32 0.0, %v392
      %v394 = vpop.f32.mrb[0].mxu0
      %395 = vmatprep.mubr.bf16.mxu0 0
      %396 = vmatmul.mubr.bf16.gmra.mrb[0].mxu0 %v255
      %v397 = vpop.f32.mrb[0].mxu0
      %v398 = vadd.f32 0.0, %v397
      %v399 = vpop.f32.mrb[0].mxu0
      %v400 = vpop.f32.mrb[0].mxu0
      %v401 = vadd.f32 0.0, %v400
      %v402 = vpop.f32.mrb[0].mxu0
      %403 = vmatprep.mubr.bf16.mxu0 0
      %404 = vmatmul.mubr.bf16.gmra.mrb[0].mxu0 %v256
      %v405 = vpop.f32.mrb[0].mxu0
      %v406 = vadd.f32 0.0, %v405
      %v407 = vpop.f32.mrb[0].mxu0
      %v408 = vpop.f32.mrb[0].mxu0
      %v409 = vadd.f32 0.0, %v408
      %v410 = vpop.f32.mrb[0].mxu0
      %411 = vmatprep.mubr.bf16.mxu0 0
      %412 = vmatmul.mubr.bf16.gmra.mrb[0].mxu0 %v257
      %v413 = vpop.f32.mrb[0].mxu0
      %v414 = vadd.f32 0.0, %v413
      %v415 = vpop.f32.mrb[0].mxu0
      %v416 = vpop.f32.mrb[0].mxu0
      %v417 = vadd.f32 0.0, %v416
      %v418 = vpop.f32.mrb[0].mxu0
      %419 = vmatprep.mubr.bf16.mxu0 0
      %420 = vmatmul.mubr.bf16.gmra.mrb[0].mxu0 %v258
      %v421 = vpop.f32.mrb[0].mxu0
      %v422 = vadd.f32 0.0, %v421
      %v423 = vpop.f32.mrb[0].mxu0
      %v424 = vpop.f32.mrb[0].mxu0
      %v425 = vadd.f32 0.0, %v424
      %v426 = vpop.f32.mrb[0].mxu0
      %427 = vmatprep.mubr.bf16.mxu0 0
      %428 = vmatmul.mubr.bf16.gmra.mrb[0].mxu0 %v259
      %v429 = vpop.f32.mrb[0].mxu0
      %v430 = vadd.f32 0.0, %v429
      %v431 = vpop.f32.mrb[0].mxu0
      %v432 = vpop.f32.mrb[0].mxu0
      %v433 = vadd.f32 0.0, %v432
      %v434 = vpop.f32.mrb[0].mxu0
      %435 = vmatprep.mubr.bf16.mxu0 0
      %436 = vmatmul.mubr.bf16.gmra.mrb[0].mxu0 %v260
      %v437 = vpop.f32.mrb[0].mxu0
      %v438 = vadd.f32 0.0, %v437
      %v439 = vpop.f32.mrb[0].mxu0
      %v440 = vpop.f32.mrb[0].mxu0
      %v441 = vadd.f32 0.0, %v440
      %v442 = vpop.f32.mrb[0].mxu0
      %443 = vmatprep.mubr.bf16.mxu0 0
      %444 = vmatmul.mubr.bf16.gmra.mrb[0].mxu0 %v261
      %v445 = vpop.f32.mrb[0].mxu0
      %v446 = vadd.f32 0.0, %v445
      %v447 = vpop.f32.mrb[0].mxu0
      %v448 = vpop.f32.mrb[0].mxu0
      %v449 = vadd.f32 0.0, %v448
      %v450 = vpop.f32.mrb[0].mxu0
      %451 = vmatprep.mubr.bf16.mxu0 0
      %452 = vmatmul.mubr.bf16.gmra.mrb[0].mxu0 %v262
      %v453 = vpop.f32.mrb[0].mxu0
      %v454 = vadd.f32 0.0, %v453
      %v455 = vpop.f32.mrb[0].mxu0
      %v456 = vpop.f32.mrb[0].mxu0
      %v457 = vadd.f32 0.0, %v456
      %v458 = vpop.f32.mrb[0].mxu0
      %459 = vmatprep.mubr.bf16.mxu0 0
      %460 = vmatmul.mubr.bf16.gmra.mrb[0].mxu0 %v263
      %v461 = vpop.f32.mrb[0].mxu0
      %v462 = vadd.f32 0.0, %v461
      %v463 = vpop.f32.mrb[0].mxu0
      %v464 = vpop.f32.mrb[0].mxu0
      %v465 = vadd.f32 0.0, %v464
      %v466 = vpop.f32.mrb[0].mxu0
      %467 = vmatprep.mubr.bf16.mxu0 0
      %468 = vmatmul.mubr.bf16.gmra.mrb[0].mxu0 %v264
      %v469 = vpop.f32.mrb[0].mxu0
      %v470 = vadd.f32 0.0, %v469
      %v471 = vpop.f32.mrb[0].mxu0
      %v472 = vpop.f32.mrb[0].mxu0
      %v473 = vadd.f32 0.0, %v472
      %v474 = vpop.f32.mrb[0].mxu0
      %475 = vmatprep.mubr.bf16.mxu0 0
      %476 = vmatmul.mubr.bf16.gmra.mrb[0].mxu0 %v265
      %v477 = vpop.f32.mrb[0].mxu0
      %v478 = vadd.f32 0.0, %v477
      %v479 = vpop.f32.mrb[0].mxu0
      %v480 = vpop.f32.mrb[0].mxu0
      %v481 = vadd.f32 0.0, %v480
      %v482 = vpop.f32.mrb[0].mxu0
      %483 = vmatprep.mubr.bf16.mxu0 0
      %484 = vmatmul.mubr.bf16.gmra.mrb[0].mxu0 %v266
      %v485 = vpop.f32.mrb[0].mxu0
      %v486 = vadd.f32 0.0, %v485
      %v487 = vpop.f32.mrb[0].mxu0
      %v488 = vpop.f32.mrb[0].mxu0
      %v489 = vadd.f32 0.0, %v488
      %v490 = vpop.f32.mrb[0].mxu0
      %491 = vdwg.mxu0
      %492 = vst [vmem:[%s210] sm:$0xff] %v366
      %493 = vst [vmem:[%s210 + $0x8] sm:$0xff] %v369
      %494 = vst [vmem:[%s210 + $0x10] sm:$0xff] %v374
      %495 = vst [vmem:[%s210 + $0x18] sm:$0xff] %v377
      %496 = vst [vmem:[%s210 + $0x20] sm:$0xff] %v382
      %497 = vst [vmem:[%s210 + $0x28] sm:$0xff] %v385
      %498 = vst [vmem:[%s210 + $0x30] sm:$0xff] %v390
      %499 = vst [vmem:[%s210 + $0x38] sm:$0xff] %v393
      %500 = vst [vmem:[%s210 + $0x40] sm:$0xff] %v398
      %501 = vst [vmem:[%s210 + $0x48] sm:$0xff] %v401
      %502 = vst [vmem:[%s210 + $0x50] sm:$0xff] %v406
      %503 = vst [vmem:[%s210 + $0x58] sm:$0xff] %v409
      %504 = vst [vmem:[%s210 + $0x60] sm:$0xff] %v414
      %505 = vst [vmem:[%s210 + $0x68] sm:$0xff] %v417
      %506 = vst [vmem:[%s210 + $0x70] sm:$0xff] %v422
      %507 = vst [vmem:[%s210 + $0x78] sm:$0xff] %v425
      %508 = vst [vmem:[%s210 + $0x80] sm:$0xff] %v430
      %509 = vst [vmem:[%s210 + $0x88] sm:$0xff] %v433
      %510 = vst [vmem:[%s210 + $0x90] sm:$0xff] %v438
      %511 = vst [vmem:[%s210 + $0x98] sm:$0xff] %v441
      %512 = vst [vmem:[%s210 + $0xa0] sm:$0xff] %v446
      %513 = vst [vmem:[%s210 + $0xa8] sm:$0xff] %v449
      %514 = vst [vmem:[%s210 + $0xb0] sm:$0xff] %v454
      %515 = vst [vmem:[%s210 + $0xb8] sm:$0xff] %v457
      %516 = vst [vmem:[%s210 + $0xc0] sm:$0xff] %v462
      %517 = vst [vmem:[%s210 + $0xc8] sm:$0xff] %v465
      %518 = vst [vmem:[%s210 + $0xd0] sm:$0xff] %v470
      %519 = vst [vmem:[%s210 + $0xd8] sm:$0xff] %v473
      %520 = vst [vmem:[%s210 + $0xe0] sm:$0xff] %v478
      %521 = vst [vmem:[%s210 + $0xe8] sm:$0xff] %v481
      %522 = vst [vmem:[%s210 + $0xf0] sm:$0xff] %v486
      %523 = vst [vmem:[%s210 + $0xf8] sm:$0xff] %v489
      %v524 = vadd.f32 %v366, %v369
      %v525 = vadd.f32 %v524, %v374
      %v526 = vadd.f32 %v525, %v377
      %v527 = vadd.f32 %v526, %v382
      %v528 = vadd.f32 %v527, %v385
      %v529 = vadd.f32 %v528, %v390
      %v530 = vadd.f32 %v529, %v393
      %v531 = vadd.f32 %v530, %v398
      %v532 = vadd.f32 %v531, %v401
      %v533 = vadd.f32 %v532, %v406
      %v534 = vadd.f32 %v533, %v409
      %v535 = vadd.f32 %v534, %v414
      %v536 = vadd.f32 %v535, %v417
      %v537 = vadd.f32 %v536, %v422
      %v538 = vadd.f32 %v537, %v425
      %v539 = vadd.f32 %v538, %v430
      %v540 = vadd.f32 %v539, %v433
      %v541 = vadd.f32 %v540, %v438
      %v542 = vadd.f32 %v541, %v441
      %v543 = vadd.f32 %v542, %v446
      %v544 = vadd.f32 %v543, %v449
      %v545 = vadd.f32 %v544, %v454
      %v546 = vadd.f32 %v545, %v457
      %v547 = vadd.f32 %v546, %v462
      %v548 = vadd.f32 %v547, %v465
      %v549 = vadd.f32 %v548, %v470
      %v550 = vadd.f32 %v549, %v473
      %v551 = vadd.f32 %v550, %v478
      %v552 = vadd.f32 %v551, %v481
      %v553 = vadd.f32 %v552, %v486
      %v554 = vadd.f32 %v553, %v489
      %v555 = vrot.slane %v554, 4
      %v556 = vadd.f32 %v554, %v555
      %v557 = vrot.slane %v556, 2
      %v558 = vadd.f32 %v556, %v557
      %v559 = vrot.slane %v558, 1
      %v560 = vadd.f32 %v558, %v559
      %561 = vst [vmem:[%s214] sm:$0x1] %v560
      %v562 = vmul.f32 %v366, %v366
      %v563 = vmul.f32 %v369, %v369
      %v564 = vmul.f32 %v374, %v374
      %v565 = vmul.f32 %v377, %v377
      %v566 = vmul.f32 %v382, %v382
      %v567 = vmul.f32 %v385, %v385
      %v568 = vmul.f32 %v390, %v390
      %v569 = vmul.f32 %v393, %v393
      %v570 = vmul.f32 %v398, %v398
      %v571 = vmul.f32 %v401, %v401
      %v572 = vmul.f32 %v406, %v406
      %v573 = vmul.f32 %v409, %v409
      %v574 = vmul.f32 %v414, %v414
      %v575 = vmul.f32 %v417, %v417
      %v576 = vmul.f32 %v422, %v422
      %v577 = vmul.f32 %v425, %v425
      %v578 = vmul.f32 %v430, %v430
      %v579 = vmul.f32 %v433, %v433
      %v580 = vmul.f32 %v438, %v438
      %v581 = vmul.f32 %v441, %v441
      %v582 = vmul.f32 %v446, %v446
      %v583 = vmul.f32 %v449, %v449
      %v584 = vmul.f32 %v454, %v454
      %v585 = vmul.f32 %v457, %v457
      %v586 = vmul.f32 %v462, %v462
      %v587 = vmul.f32 %v465, %v465
      %v588 = vmul.f32 %v470, %v470
      %v589 = vmul.f32 %v473, %v473
      %v590 = vmul.f32 %v478, %v478
      %v591 = vmul.f32 %v481, %v481
      %v592 = vmul.f32 %v486, %v486
      %v593 = vmul.f32 %v489, %v489
      %v594 = vadd.f32 %v562, %v563
      %v595 = vadd.f32 %v594, %v564
      %v596 = vadd.f32 %v595, %v565
      %v597 = vadd.f32 %v596, %v566
      %v598 = vadd.f32 %v597, %v567
      %v599 = vadd.f32 %v598, %v568
      %v600 = vadd.f32 %v599, %v569
      %v601 = vadd.f32 %v600, %v570
      %v602 = vadd.f32 %v601, %v571
      %v603 = vadd.f32 %v602, %v572
      %v604 = vadd.f32 %v603, %v573
      %v605 = vadd.f32 %v604, %v574
      %v606 = vadd.f32 %v605, %v575
      %v607 = vadd.f32 %v606, %v576
      %v608 = vadd.f32 %v607, %v577
      %v609 = vadd.f32 %v608, %v578
      %v610 = vadd.f32 %v609, %v579
      %v611 = vadd.f32 %v610, %v580
      %v612 = vadd.f32 %v611, %v581
      %v613 = vadd.f32 %v612, %v582
      %v614 = vadd.f32 %v613, %v583
      %v615 = vadd.f32 %v614, %v584
      %v616 = vadd.f32 %v615, %v585
      %v617 = vadd.f32 %v616, %v586
      %v618 = vadd.f32 %v617, %v587
      %v619 = vadd.f32 %v618, %v588
      %v620 = vadd.f32 %v619, %v589
      %v621 = vadd.f32 %v620, %v590
      %v622 = vadd.f32 %v621, %v591
      %v623 = vadd.f32 %v622, %v592
      %v624 = vadd.f32 %v623, %v593
      %v625 = vrot.slane %v624, 4
      %v626 = vadd.f32 %v624, %v625
      %v627 = vrot.slane %v626, 2
      %v628 = vadd.f32 %v626, %v627
      %v629 = vrot.slane %v628, 1
      %v630 = vadd.f32 %v628, %v629
      %631 = vst [vmem:[%s217] sm:$0x1] %v630
      %s632 = smul.u32 32, %s16
      %p633 = scmp.lt.s32.totalorder %s632, 63
      %s634 = scalar_select %p633, %s632, 63
      %s635 = smul.addr %s634, 8
      %s636 = scalar_lea.vmem %s2, %s635
      %p637 = scmp.lt.s32.totalorder %s16, 1
      %s638 = scalar_select %p637, %s16, 1
      %s639 = scalar_lea.vmem %s3, %s638
      %p640 = scmp.lt.s32.totalorder %s16, 1
      %s641 = scalar_select %p640, %s16, 1
      %s642 = scalar_lea.vmem %s4, %s641
      // Predicated region
      $region29: #{bottleneck_pallas.4} parent=27 // pred_check
        %p643 = pneg %p81
      $region30: #{bottleneck_pallas.4} parent=27 // pred_check_branch
        %645 = sbr.rel (%p643) target = $region32
      $region31: #{bottleneck_pallas.4} parent=27 // pred_region
        %s646 = smul.u32 32, %s16
      $region32: #{bottleneck_pallas.4} parent=27 // pred_fallthru
        _
      // Predicated region
      $region33: #{bottleneck_pallas.4} parent=27 // pred_check
        %p647 = pneg %p107
      $region34: #{bottleneck_pallas.4} parent=27 // pred_check_branch
        %649 = sbr.rel (%p647) target = $region36
      $region35: #{bottleneck_pallas.4} parent=27 // pred_region
        _
      $region36: #{bottleneck_pallas.4} parent=27 // pred_fallthru
        _
      // Predicated region
      $region37: #{bottleneck_pallas.4} parent=27 // pred_check
        %p650 = pneg %p133
      $region38: #{bottleneck_pallas.4} parent=27 // pred_check_branch
        %652 = sbr.rel (%p650) target = $region40
      $region39: #{bottleneck_pallas.4} parent=27 // pred_region
        _
      $region40: #{bottleneck_pallas.4} parent=27 // pred_fallthru
        _
    $region28: #{bottleneck_pallas.4} parent=5 // pred_fallthru
      _
    %p653 = scmp.le.s32.totalorder 2, %s11
    // Predicated region
    $region41: #{bottleneck_pallas.4} parent=5 // pred_check
      %p654 = pneg %p653
    $region42: #{bottleneck_pallas.4} parent=5 // pred_check_branch
      %656 = sbr.rel (%p654) target = $region44
    $region43: #{bottleneck_pallas.4} parent=5 // pred_region
      %s657 = ssub.s32 %s11, 2
      // Predicated region
      $region45: #{bottleneck_pallas.4} parent=43 // pred_check
        %p658 = pneg %p87
      $region46: #{bottleneck_pallas.4} parent=43 // pred_check_branch
        %660 = sbr.rel (%p658) target = $region48
      $region47: #{bottleneck_pallas.4} parent=43 // pred_region
        %s661 = smul.u32 32, %s17
        %p662 = scmp.lt.s32.totalorder %s661, 63
        %s663 = scalar_select %p662, %s661, 63
        %s664 = smul.addr %s663, 8
        %s665 = scalar_lea.vmem %s2, %s664
      $region48: #{bottleneck_pallas.4} parent=43 // pred_fallthru
        _
      // Predicated region
      $region49: #{bottleneck_pallas.4} parent=43 // pred_check
        %p666 = pneg %p113
      $region50: #{bottleneck_pallas.4} parent=43 // pred_check_branch
        %668 = sbr.rel (%p666) target = $region52
      $region51: #{bottleneck_pallas.4} parent=43 // pred_region
        %p669 = scmp.lt.s32.totalorder %s17, 1
        %s670 = scalar_select %p669, %s17, 1
        %s671 = scalar_lea.vmem %s3, %s670
      $region52: #{bottleneck_pallas.4} parent=43 // pred_fallthru
        _
      // Predicated region
      $region53: #{bottleneck_pallas.4} parent=43 // pred_check
        %p672 = pneg %p139
      $region54: #{bottleneck_pallas.4} parent=43 // pred_check_branch
        %674 = sbr.rel (%p672) target = $region56
      $region55: #{bottleneck_pallas.4} parent=43 // pred_region
        %p675 = scmp.lt.s32.totalorder %s17, 1
        %s676 = scalar_select %p675, %s17, 1
        %s677 = scalar_lea.vmem %s4, %s676
      $region56: #{bottleneck_pallas.4} parent=43 // pred_fallthru
        _
    $region44: #{bottleneck_pallas.4} parent=5 // pred_fallthru
      _
  $region6: #{bottleneck_pallas.4} parent=0 // loop_footer
    %s15 = sadd.s32 1, %s11
  $region7: #{bottleneck_pallas.4} parent=0 // loop_footer_branch
    %10 = sbr.rel target = $region3
  $region8: #{bottleneck_pallas.4} parent=0 // loop_exit
    _

// kernel: bottleneck_pallas.7
$region0: #{bottleneck_pallas.7}
  #allocation0 [shape = 'u32[]', space=smem, size = 0x4, offset = 0x4, fixed_abs, tag = 'smem constant byte address 0x4 - core index']
  #allocation1 [shape = 'u32[144,128]{1,0:T(1,128)}', space=vmem, size = 0x12000, scoped, tag = 'internal scratch']
  %s0 = inlined_call_operand.vmem [shape: f32[512,128], index: 0, kind: input, shape index: {}]
  %s1 = inlined_call_operand.vmem [shape: f32[1,128], index: 1, kind: input, shape index: {}]
  %s2 = inlined_call_operand.vmem [shape: f32[1,128], index: 2, kind: input, shape index: {}]
  %s3 = inlined_call_operand.vmem [shape: f32[512,128], index: 3, kind: input, shape index: {}]
  %s4 = inlined_call_operand.vmem [shape: f32[512,128], index: 4, kind: output, shape index: {}]
  %s5 = sld [smem:[#allocation0]]
  $region49: #{bottleneck_pallas.7} parent=0
    _
  %s7 = ssub.s32 1, %s5
  %s8 = scalar_select 0, %s7, %s5
  loop: start=0, step=1, limit=4
  $region2: #{bottleneck_pallas.7} parent=0 // loop_pre_header
    _
  $region3: #{bottleneck_pallas.7} parent=0 // loop_header
    %s10 = sphi 0, %s14
    %p11 = scmp.ge.s32.totalorder %s10, 4
    %s20 = sphi 0, %s22
    %s23 = sphi 0, %s20
    %s24 = sphi 0, %s23
    %s40 = sphi 0, %s24
    %s44 = sphi 0, %s44
    %s46 = sphi 0, %s44
    %s47 = sphi 0, %s46
    %s61 = sphi 0, %s47
    %s65 = sphi 0, %s65
    %s67 = sphi 0, %s65
    %s68 = sphi 0, %s67
    %s82 = sphi 0, %s68
    %s88 = sphi 0, %s90
    %s91 = sphi 0, %s88
    %s92 = sphi 0, %s91
    %s108 = sphi 0, %s92
    %s114 = sphi 0, %s116
    %s117 = sphi 0, %s114
    %s118 = sphi 0, %s117
    %s134 = sphi 0, %s118
  $region4: #{bottleneck_pallas.7} parent=0 // loop_header_branch
    %13 = sbr.rel (%p11) target = $region8
  $region5: #{bottleneck_pallas.7} parent=0 // loop_body
    %s15 = ssub.s32 %s10, 1
    %s16 = ssub.s32 %s10, 2
    %s17 = sadd.s32 %s10, 1
    %s18 = ssub.s32 %s10, %s17
    %p19 = scmp.eq.s32.totalorder %s18, 0
    %s21 = sadd.s32 %s20, 1
    %s22 = scalar_select %p19, %s20, %s21
    %p25 = pneg %p19
    %p26 = scmp.eq.s32.totalorder %s10, 1
    %p27 = por %p25, %p26
    %p28 = scmp.ne.s32.totalorder %s20, %s23
    %p29 = scmp.eq.s32.totalorder %s10, 0
    %p30 = por %p28, %p29
    %p31 = scmp.ne.s32.totalorder %s20, %s23
    %p32 = scmp.eq.s32.totalorder %s15, 1
    %p33 = por %p31, %p32
    %p34 = scmp.ne.s32.totalorder %s23, %s24
    %p35 = scmp.eq.s32.totalorder %s15, 0
    %p36 = por %p34, %p35
    %p37 = scmp.ne.s32.totalorder %s23, %s24
    %p38 = scmp.eq.s32.totalorder %s16, 1
    %p39 = por %p37, %p38
    %p41 = scmp.ne.s32.totalorder %s24, %s40
    %p42 = scmp.eq.s32.totalorder %s16, 0
    %p43 = por %p41, %p42
    %s45 = sadd.s32 %s44, 1
    %p48 = scmp.eq.s32.totalorder %s10, 1
    %p49 = scmp.ne.s32.totalorder %s44, %s46
    %p50 = scmp.eq.s32.totalorder %s10, 0
    %p51 = por %p49, %p50
    %p52 = scmp.ne.s32.totalorder %s44, %s46
    %p53 = scmp.eq.s32.totalorder %s15, 1
    %p54 = por %p52, %p53
    %p55 = scmp.ne.s32.totalorder %s46, %s47
    %p56 = scmp.eq.s32.totalorder %s15, 0
    %p57 = por %p55, %p56
    %p58 = scmp.ne.s32.totalorder %s46, %s47
    %p59 = scmp.eq.s32.totalorder %s16, 1
    %p60 = por %p58, %p59
    %p62 = scmp.ne.s32.totalorder %s47, %s61
    %p63 = scmp.eq.s32.totalorder %s16, 0
    %p64 = por %p62, %p63
    %s66 = sadd.s32 %s65, 1
    %p69 = scmp.eq.s32.totalorder %s10, 1
    %p70 = scmp.ne.s32.totalorder %s65, %s67
    %p71 = scmp.eq.s32.totalorder %s10, 0
    %p72 = por %p70, %p71
    %p73 = scmp.ne.s32.totalorder %s65, %s67
    %p74 = scmp.eq.s32.totalorder %s15, 1
    %p75 = por %p73, %p74
    %p76 = scmp.ne.s32.totalorder %s67, %s68
    %p77 = scmp.eq.s32.totalorder %s15, 0
    %p78 = por %p76, %p77
    %p79 = scmp.ne.s32.totalorder %s67, %s68
    %p80 = scmp.eq.s32.totalorder %s16, 1
    %p81 = por %p79, %p80
    %p83 = scmp.ne.s32.totalorder %s68, %s82
    %p84 = scmp.eq.s32.totalorder %s16, 0
    %p85 = por %p83, %p84
    %s86 = ssub.s32 %s10, %s17
    %p87 = scmp.eq.s32.totalorder %s86, 0
    %s89 = sadd.s32 %s88, 1
    %s90 = scalar_select %p87, %s88, %s89
    %p93 = pneg %p87
    %p94 = scmp.eq.s32.totalorder %s10, 1
    %p95 = por %p93, %p94
    %p96 = scmp.ne.s32.totalorder %s88, %s91
    %p97 = scmp.eq.s32.totalorder %s10, 0
    %p98 = por %p96, %p97
    %p99 = scmp.ne.s32.totalorder %s88, %s91
    %p100 = scmp.eq.s32.totalorder %s15, 1
    %p101 = por %p99, %p100
    %p102 = scmp.ne.s32.totalorder %s91, %s92
    %p103 = scmp.eq.s32.totalorder %s15, 0
    %p104 = por %p102, %p103
    %p105 = scmp.ne.s32.totalorder %s91, %s92
    %p106 = scmp.eq.s32.totalorder %s16, 1
    %p107 = por %p105, %p106
    %p109 = scmp.ne.s32.totalorder %s92, %s108
    %p110 = scmp.eq.s32.totalorder %s16, 0
    %p111 = por %p109, %p110
    %s112 = ssub.s32 %s10, %s17
    %p113 = scmp.eq.s32.totalorder %s112, 0
    %s115 = sadd.s32 %s114, 1
    %s116 = scalar_select %p113, %s114, %s115
    %p119 = pneg %p113
    %p120 = scmp.eq.s32.totalorder %s10, 1
    %p121 = por %p119, %p120
    %p122 = scmp.ne.s32.totalorder %s114, %s117
    %p123 = scmp.eq.s32.totalorder %s10, 0
    %p124 = por %p122, %p123
    %p125 = scmp.ne.s32.totalorder %s114, %s117
    %p126 = scmp.eq.s32.totalorder %s15, 1
    %p127 = por %p125, %p126
    %p128 = scmp.ne.s32.totalorder %s117, %s118
    %p129 = scmp.eq.s32.totalorder %s15, 0
    %p130 = por %p128, %p129
    %p131 = scmp.ne.s32.totalorder %s117, %s118
    %p132 = scmp.eq.s32.totalorder %s16, 1
    %p133 = por %p131, %p132
    %p135 = scmp.ne.s32.totalorder %s118, %s134
    %p136 = scmp.eq.s32.totalorder %s16, 0
    %p137 = por %p135, %p136
    %p138 = scmp.le.s32.totalorder 1, %s10
    %p139 = scmp.lt.s32.totalorder %s10, 3
    %p140 = pnand %p138, %p139
    %p141 = pneg %p140
    // Predicated region
    $region9: #{bottleneck_pallas.7} parent=5 // pred_check
      _
    $region10: #{bottleneck_pallas.7} parent=5 // pred_check_branch
      %143 = sbr.rel (%p140) target = $region12
    $region11: #{bottleneck_pallas.7} parent=5 // pred_region
      %s144 = ssub.s32 %s10, 1
      // Predicated region
      $region13: #{bottleneck_pallas.7} parent=11 // pred_check
        %p145 = pneg %p57
      $region14: #{bottleneck_pallas.7} parent=11 // pred_check_branch
        %147 = sbr.rel (%p145) target = $region16
      $region15: #{bottleneck_pallas.7} parent=11 // pred_region
        _
      $region16: #{bottleneck_pallas.7} parent=11 // pred_fallthru
        _
      // Predicated region
      $region17: #{bottleneck_pallas.7} parent=11 // pred_check
        %p148 = pneg %p78
      $region18: #{bottleneck_pallas.7} parent=11 // pred_check_branch
        %150 = sbr.rel (%p148) target = $region20
      $region19: #{bottleneck_pallas.7} parent=11 // pred_region
        _
      $region20: #{bottleneck_pallas.7} parent=11 // pred_fallthru
        _
    $region12: #{bottleneck_pallas.7} parent=5 // pred_fallthru
      _
    %p151 = scmp.lt.s32.totalorder %s10, 2
    // Predicated region
    $region21: #{bottleneck_pallas.7} parent=5 // pred_check
      %p152 = pneg %p151
    $region22: #{bottleneck_pallas.7} parent=5 // pred_check_branch
      %154 = sbr.rel (%p152) target = $region24
    $region23: #{bottleneck_pallas.7} parent=5 // pred_region
      // Predicated region
      $region25: #{bottleneck_pallas.7} parent=23 // pred_check
        %p155 = pneg %p30
      $region26: #{bottleneck_pallas.7} parent=23 // pred_check_branch
        %157 = sbr.rel (%p155) target = $region28
      $region27: #{bottleneck_pallas.7} parent=23 // pred_region
        %s158 = smul.u32 32, %s10
        %p159 = scmp.lt.s32.totalorder %s158, 63
        %s160 = scalar_select %p159, %s158, 63
        %s161 = smul.addr %s160, 8
        %s162 = scalar_lea.vmem %s0, %s161
        %s163 = smul.u32 32, %s10
      $region28: #{bottleneck_pallas.7} parent=23 // pred_fallthru
        _
      // Predicated region
      $region29: #{bottleneck_pallas.7} parent=23 // pred_check
        %p164 = pneg %p98
      $region30: #{bottleneck_pallas.7} parent=23 // pred_check_branch
        %166 = sbr.rel (%p164) target = $region32
      $region31: #{bottleneck_pallas.7} parent=23 // pred_region
        %s167 = smul.u32 32, %s10
        %p168 = scmp.lt.s32.totalorder %s167, 63
        %s169 = scalar_select %p168, %s167, 63
        %s170 = smul.addr %s169, 8
        %s171 = scalar_lea.vmem %s3, %s170
        %s172 = smul.u32 32, %s10
      $region32: #{bottleneck_pallas.7} parent=23 // pred_fallthru
        _
    $region24: #{bottleneck_pallas.7} parent=5 // pred_fallthru
      _
    %p173 = scmp.le.s32.totalorder 1, %s10
    %p174 = scmp.lt.s32.totalorder %s10, 3
    %p175 = pnand %p173, %p174
    %p176 = pneg %p175
    // Predicated region
    $region33: #{bottleneck_pallas.7} parent=5 // pred_check
      _
    $region34: #{bottleneck_pallas.7} parent=5 // pred_check_branch
      %178 = sbr.rel (%p175) target = $region36
    $region35: #{bottleneck_pallas.7} parent=5 // pred_region
      %s179 = ssub.s32 %s10, 1
      %s180 = smul.u32 32, %s15
      %p181 = scmp.lt.s32.totalorder %s180, 63
      %s182 = scalar_select %p181, %s180, 63
      %s183 = smul.addr %s182, 8
      %s184 = scalar_lea.vmem %s0, %s183
      %p185 = pneg %p36
      %p186 = pneg %p33
      %p187 = pneg %p57
      %p188 = pneg %p54
      %p189 = pneg %p78
      %p190 = pneg %p75
      %s191 = smul.u32 32, %s15
      %p192 = scmp.lt.s32.totalorder %s191, 63
      %s193 = scalar_select %p192, %s191, 63
      %s194 = smul.addr %s193, 8
      %s195 = scalar_lea.vmem %s3, %s194
      %p196 = pneg %p104
      %p197 = pneg %p101
      %p198 = pneg %p130
      %p199 = pneg %p127
      %s200 = smul.u32 32, %s15
      %p201 = scmp.lt.s32.totalorder %s200, 63
      %s202 = scalar_select %p201, %s200, 63
      %s203 = smul.addr %s202, 8
      %s204 = scalar_lea.vmem %s4, %s203
      %s205 = smul.u32 32, %s15
      %p206 = scmp.lt.s32.totalorder %s205, 63
      %s207 = scalar_select %p206, %s205, 63
      %s208 = smul.addr %s207, 8
      %s209 = scalar_lea.vmem %s0, %s208
      %s210 = smul.u32 32, %s15
      %s211 = smul.u32 32, %s15
      %p212 = scmp.lt.s32.totalorder %s211, 63
      %s213 = scalar_select %p212, %s211, 63
      %s214 = smul.addr %s213, 8
      %s215 = scalar_lea.vmem %s3, %s214
      %s216 = smul.u32 32, %s15
      %s217 = smul.u32 32, %s15
      %p218 = scmp.lt.s32.totalorder %s217, 63
      %s219 = scalar_select %p218, %s217, 63
      %s220 = smul.addr %s219, 8
      %s221 = scalar_lea.vmem %s4, %s220
      %s222 = smul.u32 32, %s15
      %v223 = vld [vmem:[%s209] sm:$0xff]
      %v224 = vld [vmem:[%s209 + $0x8] sm:$0xff]
      %v225 = vld [vmem:[%s209 + $0x10] sm:$0xff]
      %v226 = vld [vmem:[%s209 + $0x18] sm:$0xff]
      %v227 = vld [vmem:[%s209 + $0x20] sm:$0xff]
      %v228 = vld [vmem:[%s209 + $0x28] sm:$0xff]
      %v229 = vld [vmem:[%s209 + $0x30] sm:$0xff]
      %v230 = vld [vmem:[%s209 + $0x38] sm:$0xff]
      %v231 = vld [vmem:[%s209 + $0x40] sm:$0xff]
      %v232 = vld [vmem:[%s209 + $0x48] sm:$0xff]
      %v233 = vld [vmem:[%s209 + $0x50] sm:$0xff]
      %v234 = vld [vmem:[%s209 + $0x58] sm:$0xff]
      %v235 = vld [vmem:[%s209 + $0x60] sm:$0xff]
      %v236 = vld [vmem:[%s209 + $0x68] sm:$0xff]
      %v237 = vld [vmem:[%s209 + $0x70] sm:$0xff]
      %v238 = vld [vmem:[%s209 + $0x78] sm:$0xff]
      %v239 = vld [vmem:[%s209 + $0x80] sm:$0xff]
      %v240 = vld [vmem:[%s209 + $0x88] sm:$0xff]
      %v241 = vld [vmem:[%s209 + $0x90] sm:$0xff]
      %v242 = vld [vmem:[%s209 + $0x98] sm:$0xff]
      %v243 = vld [vmem:[%s209 + $0xa0] sm:$0xff]
      %v244 = vld [vmem:[%s209 + $0xa8] sm:$0xff]
      %v245 = vld [vmem:[%s209 + $0xb0] sm:$0xff]
      %v246 = vld [vmem:[%s209 + $0xb8] sm:$0xff]
      %v247 = vld [vmem:[%s209 + $0xc0] sm:$0xff]
      %v248 = vld [vmem:[%s209 + $0xc8] sm:$0xff]
      %v249 = vld [vmem:[%s209 + $0xd0] sm:$0xff]
      %v250 = vld [vmem:[%s209 + $0xd8] sm:$0xff]
      %v251 = vld [vmem:[%s209 + $0xe0] sm:$0xff]
      %v252 = vld [vmem:[%s209 + $0xe8] sm:$0xff]
      %v253 = vld [vmem:[%s209 + $0xf0] sm:$0xff]
      %v254 = vld [vmem:[%s209 + $0xf8] sm:$0xff]
      %v255 = vld [vmem:[%s1] sm:$0x1]
      %v257 = vlaneseq
      %v258 = vshrl.u32 %v257, 7
      %v259 = vsub.s32 0, %v258
      %v260 = vrot.slane %v255, %v259
      %v262 = vmul.f32 %v223, %v260
      %v263 = vmul.f32 %v224, %v260
      %v264 = vmul.f32 %v225, %v260
      %v265 = vmul.f32 %v226, %v260
      %v266 = vmul.f32 %v227, %v260
      %v267 = vmul.f32 %v228, %v260
      %v268 = vmul.f32 %v229, %v260
      %v269 = vmul.f32 %v230, %v260
      %v270 = vmul.f32 %v231, %v260
      %v271 = vmul.f32 %v232, %v260
      %v272 = vmul.f32 %v233, %v260
      %v273 = vmul.f32 %v234, %v260
      %v274 = vmul.f32 %v235, %v260
      %v275 = vmul.f32 %v236, %v260
      %v276 = vmul.f32 %v237, %v260
      %v277 = vmul.f32 %v238, %v260
      %v278 = vmul.f32 %v239, %v260
      %v279 = vmul.f32 %v240, %v260
      %v280 = vmul.f32 %v241, %v260
      %v281 = vmul.f32 %v242, %v260
      %v282 = vmul.f32 %v243, %v260
      %v283 = vmul.f32 %v244, %v260
      %v284 = vmul.f32 %v245, %v260
      %v285 = vmul.f32 %v246, %v260
      %v286 = vmul.f32 %v247, %v260
      %v287 = vmul.f32 %v248, %v260
      %v288 = vmul.f32 %v249, %v260
      %v289 = vmul.f32 %v250, %v260
      %v290 = vmul.f32 %v251, %v260
      %v291 = vmul.f32 %v252, %v260
      %v292 = vmul.f32 %v253, %v260
      %v293 = vmul.f32 %v254, %v260
      %v294 = vld [vmem:[%s2] sm:$0x1]
      %v296 = vlaneseq
      %v297 = vshrl.u32 %v296, 7
      %v298 = vsub.s32 0, %v297
      %v299 = vrot.slane %v294, %v298
      %v301 = vadd.f32 %v262, %v299
      %v302 = vadd.f32 %v263, %v299
      %v303 = vadd.f32 %v264, %v299
      %v304 = vadd.f32 %v265, %v299
      %v305 = vadd.f32 %v266, %v299
      %v306 = vadd.f32 %v267, %v299
      %v307 = vadd.f32 %v268, %v299
      %v308 = vadd.f32 %v269, %v299
      %v309 = vadd.f32 %v270, %v299
      %v310 = vadd.f32 %v271, %v299
      %v311 = vadd.f32 %v272, %v299
      %v312 = vadd.f32 %v273, %v299
      %v313 = vadd.f32 %v274, %v299
      %v314 = vadd.f32 %v275, %v299
      %v315 = vadd.f32 %v276, %v299
      %v316 = vadd.f32 %v277, %v299
      %v317 = vadd.f32 %v278, %v299
      %v318 = vadd.f32 %v279, %v299
      %v319 = vadd.f32 %v280, %v299
      %v320 = vadd.f32 %v281, %v299
      %v321 = vadd.f32 %v282, %v299
      %v322 = vadd.f32 %v283, %v299
      %v323 = vadd.f32 %v284, %v299
      %v324 = vadd.f32 %v285, %v299
      %v325 = vadd.f32 %v286, %v299
      %v326 = vadd.f32 %v287, %v299
      %v327 = vadd.f32 %v288, %v299
      %v328 = vadd.f32 %v289, %v299
      %v329 = vadd.f32 %v290, %v299
      %v330 = vadd.f32 %v291, %v299
      %v331 = vadd.f32 %v292, %v299
      %v332 = vadd.f32 %v293, %v299
      %v333 = vld [vmem:[%s215] sm:$0xff]
      %v334 = vld [vmem:[%s215 + $0x8] sm:$0xff]
      %v335 = vld [vmem:[%s215 + $0x10] sm:$0xff]
      %v336 = vld [vmem:[%s215 + $0x18] sm:$0xff]
      %v337 = vld [vmem:[%s215 + $0x20] sm:$0xff]
      %v338 = vld [vmem:[%s215 + $0x28] sm:$0xff]
      %v339 = vld [vmem:[%s215 + $0x30] sm:$0xff]
      %v340 = vld [vmem:[%s215 + $0x38] sm:$0xff]
      %v341 = vld [vmem:[%s215 + $0x40] sm:$0xff]
      %v342 = vld [vmem:[%s215 + $0x48] sm:$0xff]
      %v343 = vld [vmem:[%s215 + $0x50] sm:$0xff]
      %v344 = vld [vmem:[%s215 + $0x58] sm:$0xff]
      %v345 = vld [vmem:[%s215 + $0x60] sm:$0xff]
      %v346 = vld [vmem:[%s215 + $0x68] sm:$0xff]
      %v347 = vld [vmem:[%s215 + $0x70] sm:$0xff]
      %v348 = vld [vmem:[%s215 + $0x78] sm:$0xff]
      %v349 = vld [vmem:[%s215 + $0x80] sm:$0xff]
      %v350 = vld [vmem:[%s215 + $0x88] sm:$0xff]
      %v351 = vld [vmem:[%s215 + $0x90] sm:$0xff]
      %v352 = vld [vmem:[%s215 + $0x98] sm:$0xff]
      %v353 = vld [vmem:[%s215 + $0xa0] sm:$0xff]
      %v354 = vld [vmem:[%s215 + $0xa8] sm:$0xff]
      %v355 = vld [vmem:[%s215 + $0xb0] sm:$0xff]
      %v356 = vld [vmem:[%s215 + $0xb8] sm:$0xff]
      %v357 = vld [vmem:[%s215 + $0xc0] sm:$0xff]
      %v358 = vld [vmem:[%s215 + $0xc8] sm:$0xff]
      %v359 = vld [vmem:[%s215 + $0xd0] sm:$0xff]
      %v360 = vld [vmem:[%s215 + $0xd8] sm:$0xff]
      %v361 = vld [vmem:[%s215 + $0xe0] sm:$0xff]
      %v362 = vld [vmem:[%s215 + $0xe8] sm:$0xff]
      %v363 = vld [vmem:[%s215 + $0xf0] sm:$0xff]
      %v364 = vld [vmem:[%s215 + $0xf8] sm:$0xff]
      %v365 = vadd.f32 %v301, %v333
      %v366 = vadd.f32 %v302, %v334
      %v367 = vadd.f32 %v303, %v335
      %v368 = vadd.f32 %v304, %v336
      %v369 = vadd.f32 %v305, %v337
      %v370 = vadd.f32 %v306, %v338
      %v371 = vadd.f32 %v307, %v339
      %v372 = vadd.f32 %v308, %v340
      %v373 = vadd.f32 %v309, %v341
      %v374 = vadd.f32 %v310, %v342
      %v375 = vadd.f32 %v311, %v343
      %v376 = vadd.f32 %v312, %v344
      %v377 = vadd.f32 %v313, %v345
      %v378 = vadd.f32 %v314, %v346
      %v379 = vadd.f32 %v315, %v347
      %v380 = vadd.f32 %v316, %v348
      %v381 = vadd.f32 %v317, %v349
      %v382 = vadd.f32 %v318, %v350
      %v383 = vadd.f32 %v319, %v351
      %v384 = vadd.f32 %v320, %v352
      %v385 = vadd.f32 %v321, %v353
      %v386 = vadd.f32 %v322, %v354
      %v387 = vadd.f32 %v323, %v355
      %v388 = vadd.f32 %v324, %v356
      %v389 = vadd.f32 %v325, %v357
      %v390 = vadd.f32 %v326, %v358
      %v391 = vadd.f32 %v327, %v359
      %v392 = vadd.f32 %v328, %v360
      %v393 = vadd.f32 %v329, %v361
      %v394 = vadd.f32 %v330, %v362
      %v395 = vadd.f32 %v331, %v363
      %v396 = vadd.f32 %v332, %v364
      %v397 = vmax.f32 %v365, 0.0
      %v398 = vmax.f32 %v366, 0.0
      %v399 = vmax.f32 %v367, 0.0
      %v400 = vmax.f32 %v368, 0.0
      %v401 = vmax.f32 %v369, 0.0
      %v402 = vmax.f32 %v370, 0.0
      %v403 = vmax.f32 %v371, 0.0
      %v404 = vmax.f32 %v372, 0.0
      %v405 = vmax.f32 %v373, 0.0
      %v406 = vmax.f32 %v374, 0.0
      %v407 = vmax.f32 %v375, 0.0
      %v408 = vmax.f32 %v376, 0.0
      %v409 = vmax.f32 %v377, 0.0
      %v410 = vmax.f32 %v378, 0.0
      %v411 = vmax.f32 %v379, 0.0
      %v412 = vmax.f32 %v380, 0.0
      %v413 = vmax.f32 %v381, 0.0
      %v414 = vmax.f32 %v382, 0.0
      %v415 = vmax.f32 %v383, 0.0
      %v416 = vmax.f32 %v384, 0.0
      %v417 = vmax.f32 %v385, 0.0
      %v418 = vmax.f32 %v386, 0.0
      %v419 = vmax.f32 %v387, 0.0
      %v420 = vmax.f32 %v388, 0.0
      %v421 = vmax.f32 %v389, 0.0
      %v422 = vmax.f32 %v390, 0.0
      %v423 = vmax.f32 %v391, 0.0
      %v424 = vmax.f32 %v392, 0.0
      %v425 = vmax.f32 %v393, 0.0
      %v426 = vmax.f32 %v394, 0.0
      %v427 = vmax.f32 %v395, 0.0
      %v428 = vmax.f32 %v396, 0.0
      %429 = vst [vmem:[%s221] sm:$0xff] %v397
      %430 = vst [vmem:[%s221 + $0x8] sm:$0xff] %v398
      %431 = vst [vmem:[%s221 + $0x10] sm:$0xff] %v399
      %432 = vst [vmem:[%s221 + $0x18] sm:$0xff] %v400
      %433 = vst [vmem:[%s221 + $0x20] sm:$0xff] %v401
      %434 = vst [vmem:[%s221 + $0x28] sm:$0xff] %v402
      %435 = vst [vmem:[%s221 + $0x30] sm:$0xff] %v403
      %436 = vst [vmem:[%s221 + $0x38] sm:$0xff] %v404
      %437 = vst [vmem:[%s221 + $0x40] sm:$0xff] %v405
      %438 = vst [vmem:[%s221 + $0x48] sm:$0xff] %v406
      %439 = vst [vmem:[%s221 + $0x50] sm:$0xff] %v407
      %440 = vst [vmem:[%s221 + $0x58] sm:$0xff] %v408
      %441 = vst [vmem:[%s221 + $0x60] sm:$0xff] %v409
      %442 = vst [vmem:[%s221 + $0x68] sm:$0xff] %v410
      %443 = vst [vmem:[%s221 + $0x70] sm:$0xff] %v411
      %444 = vst [vmem:[%s221 + $0x78] sm:$0xff] %v412
      %445 = vst [vmem:[%s221 + $0x80] sm:$0xff] %v413
      %446 = vst [vmem:[%s221 + $0x88] sm:$0xff] %v414
      %447 = vst [vmem:[%s221 + $0x90] sm:$0xff] %v415
      %448 = vst [vmem:[%s221 + $0x98] sm:$0xff] %v416
      %449 = vst [vmem:[%s221 + $0xa0] sm:$0xff] %v417
      %450 = vst [vmem:[%s221 + $0xa8] sm:$0xff] %v418
      %451 = vst [vmem:[%s221 + $0xb0] sm:$0xff] %v419
      %452 = vst [vmem:[%s221 + $0xb8] sm:$0xff] %v420
      %453 = vst [vmem:[%s221 + $0xc0] sm:$0xff] %v421
      %454 = vst [vmem:[%s221 + $0xc8] sm:$0xff] %v422
      %455 = vst [vmem:[%s221 + $0xd0] sm:$0xff] %v423
      %456 = vst [vmem:[%s221 + $0xd8] sm:$0xff] %v424
      %457 = vst [vmem:[%s221 + $0xe0] sm:$0xff] %v425
      %458 = vst [vmem:[%s221 + $0xe8] sm:$0xff] %v426
      %459 = vst [vmem:[%s221 + $0xf0] sm:$0xff] %v427
      %460 = vst [vmem:[%s221 + $0xf8] sm:$0xff] %v428
      %s461 = smul.u32 32, %s15
      %p462 = scmp.lt.s32.totalorder %s461, 63
      %s463 = scalar_select %p462, %s461, 63
      %s464 = smul.addr %s463, 8
      %s465 = scalar_lea.vmem %s4, %s464
      // Predicated region
      $region37: #{bottleneck_pallas.7} parent=35 // pred_check
        %p466 = pneg %p127
      $region38: #{bottleneck_pallas.7} parent=35 // pred_check_branch
        %468 = sbr.rel (%p466) target = $region40
      $region39: #{bottleneck_pallas.7} parent=35 // pred_region
        %s469 = smul.u32 32, %s15
      $region40: #{bottleneck_pallas.7} parent=35 // pred_fallthru
        _
    $region36: #{bottleneck_pallas.7} parent=5 // pred_fallthru
      _
    %p470 = scmp.le.s32.totalorder 2, %s10
    // Predicated region
    $region41: #{bottleneck_pallas.7} parent=5 // pred_check
      %p471 = pneg %p470
    $region42: #{bottleneck_pallas.7} parent=5 // pred_check_branch
      %473 = sbr.rel (%p471) target = $region44
    $region43: #{bottleneck_pallas.7} parent=5 // pred_region
      %s474 = ssub.s32 %s10, 2
      // Predicated region
      $region45: #{bottleneck_pallas.7} parent=43 // pred_check
        %p475 = pneg %p133
      $region46: #{bottleneck_pallas.7} parent=43 // pred_check_branch
        %477 = sbr.rel (%p475) target = $region48
      $region47: #{bottleneck_pallas.7} parent=43 // pred_region
        %s478 = smul.u32 32, %s16
        %p479 = scmp.lt.s32.totalorder %s478, 63
        %s480 = scalar_select %p479, %s478, 63
        %s481 = smul.addr %s480, 8
        %s482 = scalar_lea.vmem %s4, %s481
      $region48: #{bottleneck_pallas.7} parent=43 // pred_fallthru
        _
    $region44: #{bottleneck_pallas.7} parent=5 // pred_fallthru
      _
  $region6: #{bottleneck_pallas.7} parent=0 // loop_footer
    %s14 = sadd.s32 1, %s10
  $region7: #{bottleneck_pallas.7} parent=0 // loop_footer_branch
    %9 = sbr.rel target = $region3
  $region8: #{bottleneck_pallas.7} parent=0 // loop_exit
    _

// kernel: bottleneck_pallas.6
$region0: #{bottleneck_pallas.6}
  #allocation0 [shape = 'u32[]', space=smem, size = 0x4, offset = 0x4, fixed_abs, tag = 'smem constant byte address 0x4 - core index']
  #allocation1 [shape = 'u32[144,128]{1,0:T(1,128)}', space=vmem, size = 0x12000, scoped, tag = 'internal scratch']
  %s0 = inlined_call_operand.vmem [shape: f32[512,128], index: 0, kind: input, shape index: {}]
  %s1 = inlined_call_operand.vmem [shape: f32[1,128], index: 1, kind: input, shape index: {}]
  %s2 = inlined_call_operand.vmem [shape: f32[1,128], index: 2, kind: input, shape index: {}]
  %s3 = inlined_call_operand.vmem [shape: bf16[128,128], index: 3, kind: input, shape index: {}]
  %s4 = inlined_call_operand.vmem [shape: f32[512,128], index: 4, kind: output, shape index: {0}]
  %s5 = inlined_call_operand.vmem [shape: f32[2,1,128], index: 5, kind: output, shape index: {1}]
  %s6 = inlined_call_operand.vmem [shape: f32[2,1,128], index: 6, kind: output, shape index: {2}]
  %7 = xla_tuple %s4, %s5, %s6
  %s8 = sld [smem:[#allocation0]]
  $region65: #{bottleneck_pallas.6} parent=0
    _
  %s10 = ssub.s32 1, %s8
  %s11 = scalar_select 0, %s10, %s8
  loop: start=0, step=1, limit=4
  $region2: #{bottleneck_pallas.6} parent=0 // loop_pre_header
    _
  $region3: #{bottleneck_pallas.6} parent=0 // loop_header
    %s13 = sphi 0, %s17
    %p14 = scmp.ge.s32.totalorder %s13, 4
    %s23 = sphi 0, %s25
    %s26 = sphi 0, %s23
    %s27 = sphi 0, %s26
    %s43 = sphi 0, %s27
    %s47 = sphi 0, %s47
    %s49 = sphi 0, %s47
    %s50 = sphi 0, %s49
    %s64 = sphi 0, %s50
    %s68 = sphi 0, %s68
    %s70 = sphi 0, %s68
    %s71 = sphi 0, %s70
    %s85 = sphi 0, %s71
    %s89 = sphi 0, %s89
    %s91 = sphi 0, %s89
    %s92 = sphi 0, %s91
    %s106 = sphi 0, %s92
    %s112 = sphi 0, %s114
    %s115 = sphi 0, %s112
    %s116 = sphi 0, %s115
    %s132 = sphi 0, %s116
    %s138 = sphi 0, %s140
    %s141 = sphi 0, %s138
    %s142 = sphi 0, %s141
    %s158 = sphi 0, %s142
    %s164 = sphi 0, %s166
    %s167 = sphi 0, %s164
    %s168 = sphi 0, %s167
    %s184 = sphi 0, %s168
  $region4: #{bottleneck_pallas.6} parent=0 // loop_header_branch
    %16 = sbr.rel (%p14) target = $region8
  $region5: #{bottleneck_pallas.6} parent=0 // loop_body
    %s18 = ssub.s32 %s13, 1
    %s19 = ssub.s32 %s13, 2
    %s20 = sadd.s32 %s13, 1
    %s21 = ssub.s32 %s13, %s20
    %p22 = scmp.eq.s32.totalorder %s21, 0
    %s24 = sadd.s32 %s23, 1
    %s25 = scalar_select %p22, %s23, %s24
    %p28 = pneg %p22
    %p29 = scmp.eq.s32.totalorder %s13, 1
    %p30 = por %p28, %p29
    %p31 = scmp.ne.s32.totalorder %s23, %s26
    %p32 = scmp.eq.s32.totalorder %s13, 0
    %p33 = por %p31, %p32
    %p34 = scmp.ne.s32.totalorder %s23, %s26
    %p35 = scmp.eq.s32.totalorder %s18, 1
    %p36 = por %p34, %p35
    %p37 = scmp.ne.s32.totalorder %s26, %s27
    %p38 = scmp.eq.s32.totalorder %s18, 0
    %p39 = por %p37, %p38
    %p40 = scmp.ne.s32.totalorder %s26, %s27
    %p41 = scmp.eq.s32.totalorder %s19, 1
    %p42 = por %p40, %p41
    %p44 = scmp.ne.s32.totalorder %s27, %s43
    %p45 = scmp.eq.s32.totalorder %s19, 0
    %p46 = por %p44, %p45
    %s48 = sadd.s32 %s47, 1
    %p51 = scmp.eq.s32.totalorder %s13, 1
    %p52 = scmp.ne.s32.totalorder %s47, %s49
    %p53 = scmp.eq.s32.totalorder %s13, 0
    %p54 = por %p52, %p53
    %p55 = scmp.ne.s32.totalorder %s47, %s49
    %p56 = scmp.eq.s32.totalorder %s18, 1
    %p57 = por %p55, %p56
    %p58 = scmp.ne.s32.totalorder %s49, %s50
    %p59 = scmp.eq.s32.totalorder %s18, 0
    %p60 = por %p58, %p59
    %p61 = scmp.ne.s32.totalorder %s49, %s50
    %p62 = scmp.eq.s32.totalorder %s19, 1
    %p63 = por %p61, %p62
    %p65 = scmp.ne.s32.totalorder %s50, %s64
    %p66 = scmp.eq.s32.totalorder %s19, 0
    %p67 = por %p65, %p66
    %s69 = sadd.s32 %s68, 1
    %p72 = scmp.eq.s32.totalorder %s13, 1
    %p73 = scmp.ne.s32.totalorder %s68, %s70
    %p74 = scmp.eq.s32.totalorder %s13, 0
    %p75 = por %p73, %p74
    %p76 = scmp.ne.s32.totalorder %s68, %s70
    %p77 = scmp.eq.s32.totalorder %s18, 1
    %p78 = por %p76, %p77
    %p79 = scmp.ne.s32.totalorder %s70, %s71
    %p80 = scmp.eq.s32.totalorder %s18, 0
    %p81 = por %p79, %p80
    %p82 = scmp.ne.s32.totalorder %s70, %s71
    %p83 = scmp.eq.s32.totalorder %s19, 1
    %p84 = por %p82, %p83
    %p86 = scmp.ne.s32.totalorder %s71, %s85
    %p87 = scmp.eq.s32.totalorder %s19, 0
    %p88 = por %p86, %p87
    %s90 = sadd.s32 %s89, 1
    %p93 = scmp.eq.s32.totalorder %s13, 1
    %p94 = scmp.ne.s32.totalorder %s89, %s91
    %p95 = scmp.eq.s32.totalorder %s13, 0
    %p96 = por %p94, %p95
    %p97 = scmp.ne.s32.totalorder %s89, %s91
    %p98 = scmp.eq.s32.totalorder %s18, 1
    %p99 = por %p97, %p98
    %p100 = scmp.ne.s32.totalorder %s91, %s92
    %p101 = scmp.eq.s32.totalorder %s18, 0
    %p102 = por %p100, %p101
    %p103 = scmp.ne.s32.totalorder %s91, %s92
    %p104 = scmp.eq.s32.totalorder %s19, 1
    %p105 = por %p103, %p104
    %p107 = scmp.ne.s32.totalorder %s92, %s106
    %p108 = scmp.eq.s32.totalorder %s19, 0
    %p109 = por %p107, %p108
    %s110 = ssub.s32 %s13, %s20
    %p111 = scmp.eq.s32.totalorder %s110, 0
    %s113 = sadd.s32 %s112, 1
    %s114 = scalar_select %p111, %s112, %s113
    %p117 = pneg %p111
    %p118 = scmp.eq.s32.totalorder %s13, 1
    %p119 = por %p117, %p118
    %p120 = scmp.ne.s32.totalorder %s112, %s115
    %p121 = scmp.eq.s32.totalorder %s13, 0
    %p122 = por %p120, %p121
    %p123 = scmp.ne.s32.totalorder %s112, %s115
    %p124 = scmp.eq.s32.totalorder %s18, 1
    %p125 = por %p123, %p124
    %p126 = scmp.ne.s32.totalorder %s115, %s116
    %p127 = scmp.eq.s32.totalorder %s18, 0
    %p128 = por %p126, %p127
    %p129 = scmp.ne.s32.totalorder %s115, %s116
    %p130 = scmp.eq.s32.totalorder %s19, 1
    %p131 = por %p129, %p130
    %p133 = scmp.ne.s32.totalorder %s116, %s132
    %p134 = scmp.eq.s32.totalorder %s19, 0
    %p135 = por %p133, %p134
    %s136 = ssub.s32 %s13, %s20
    %p137 = scmp.eq.s32.totalorder %s136, 0
    %s139 = sadd.s32 %s138, 1
    %s140 = scalar_select %p137, %s138, %s139
    %p143 = pneg %p137
    %p144 = scmp.eq.s32.totalorder %s13, 1
    %p145 = por %p143, %p144
    %p146 = scmp.ne.s32.totalorder %s138, %s141
    %p147 = scmp.eq.s32.totalorder %s13, 0
    %p148 = por %p146, %p147
    %p149 = scmp.ne.s32.totalorder %s138, %s141
    %p150 = scmp.eq.s32.totalorder %s18, 1
    %p151 = por %p149, %p150
    %p152 = scmp.ne.s32.totalorder %s141, %s142
    %p153 = scmp.eq.s32.totalorder %s18, 0
    %p154 = por %p152, %p153
    %p155 = scmp.ne.s32.totalorder %s141, %s142
    %p156 = scmp.eq.s32.totalorder %s19, 1
    %p157 = por %p155, %p156
    %p159 = scmp.ne.s32.totalorder %s142, %s158
    %p160 = scmp.eq.s32.totalorder %s19, 0
    %p161 = por %p159, %p160
    %s162 = ssub.s32 %s13, %s20
    %p163 = scmp.eq.s32.totalorder %s162, 0
    %s165 = sadd.s32 %s164, 1
    %s166 = scalar_select %p163, %s164, %s165
    %p169 = pneg %p163
    %p170 = scmp.eq.s32.totalorder %s13, 1
    %p171 = por %p169, %p170
    %p172 = scmp.ne.s32.totalorder %s164, %s167
    %p173 = scmp.eq.s32.totalorder %s13, 0
    %p174 = por %p172, %p173
    %p175 = scmp.ne.s32.totalorder %s164, %s167
    %p176 = scmp.eq.s32.totalorder %s18, 1
    %p177 = por %p175, %p176
    %p178 = scmp.ne.s32.totalorder %s167, %s168
    %p179 = scmp.eq.s32.totalorder %s18, 0
    %p180 = por %p178, %p179
    %p181 = scmp.ne.s32.totalorder %s167, %s168
    %p182 = scmp.eq.s32.totalorder %s19, 1
    %p183 = por %p181, %p182
    %p185 = scmp.ne.s32.totalorder %s168, %s184
    %p186 = scmp.eq.s32.totalorder %s19, 0
    %p187 = por %p185, %p186
    %p188 = scmp.le.s32.totalorder 1, %s13
    %p189 = scmp.lt.s32.totalorder %s13, 3
    %p190 = pnand %p188, %p189
    %p191 = pneg %p190
    // Predicated region
    $region9: #{bottleneck_pallas.6} parent=5 // pred_check
      _
    $region10: #{bottleneck_pallas.6} parent=5 // pred_check_branch
      %193 = sbr.rel (%p190) target = $region12
    $region11: #{bottleneck_pallas.6} parent=5 // pred_region
      %s194 = ssub.s32 %s13, 1
      // Predicated region
      $region13: #{bottleneck_pallas.6} parent=11 // pred_check
        %p195 = pneg %p60
      $region14: #{bottleneck_pallas.6} parent=11 // pred_check_branch
        %197 = sbr.rel (%p195) target = $region16
      $region15: #{bottleneck_pallas.6} parent=11 // pred_region
        _
      $region16: #{bottleneck_pallas.6} parent=11 // pred_fallthru
        _
      // Predicated region
      $region17: #{bottleneck_pallas.6} parent=11 // pred_check
        %p198 = pneg %p81
      $region18: #{bottleneck_pallas.6} parent=11 // pred_check_branch
        %200 = sbr.rel (%p198) target = $region20
      $region19: #{bottleneck_pallas.6} parent=11 // pred_region
        _
      $region20: #{bottleneck_pallas.6} parent=11 // pred_fallthru
        _
      // Predicated region
      $region21: #{bottleneck_pallas.6} parent=11 // pred_check
        %p201 = pneg %p102
      $region22: #{bottleneck_pallas.6} parent=11 // pred_check_branch
        %203 = sbr.rel (%p201) target = $region24
      $region23: #{bottleneck_pallas.6} parent=11 // pred_region
        _
      $region24: #{bottleneck_pallas.6} parent=11 // pred_fallthru
        _
    $region12: #{bottleneck_pallas.6} parent=5 // pred_fallthru
      _
    %p204 = scmp.lt.s32.totalorder %s13, 2
    // Predicated region
    $region25: #{bottleneck_pallas.6} parent=5 // pred_check
      %p205 = pneg %p204
    $region26: #{bottleneck_pallas.6} parent=5 // pred_check_branch
      %207 = sbr.rel (%p205) target = $region28
    $region27: #{bottleneck_pallas.6} parent=5 // pred_region
      // Predicated region
      $region29: #{bottleneck_pallas.6} parent=27 // pred_check
        %p208 = pneg %p33
      $region30: #{bottleneck_pallas.6} parent=27 // pred_check_branch
        %210 = sbr.rel (%p208) target = $region32
      $region31: #{bottleneck_pallas.6} parent=27 // pred_region
        %s211 = smul.u32 32, %s13
        %p212 = scmp.lt.s32.totalorder %s211, 63
        %s213 = scalar_select %p212, %s211, 63
        %s214 = smul.addr %s213, 8
        %s215 = scalar_lea.vmem %s0, %s214
        %s216 = smul.u32 32, %s13
      $region32: #{bottleneck_pallas.6} parent=27 // pred_fallthru
        _
    $region28: #{bottleneck_pallas.6} parent=5 // pred_fallthru
      _
    %p217 = scmp.le.s32.totalorder 1, %s13
    %p218 = scmp.lt.s32.totalorder %s13, 3
    %p219 = pnand %p217, %p218
    %p220 = pneg %p219
    // Predicated region
    $region33: #{bottleneck_pallas.6} parent=5 // pred_check
      _
    $region34: #{bottleneck_pallas.6} parent=5 // pred_check_branch
      %222 = sbr.rel (%p219) target = $region36
    $region35: #{bottleneck_pallas.6} parent=5 // pred_region
      %s223 = ssub.s32 %s13, 1
      %s224 = smul.u32 32, %s18
      %p225 = scmp.lt.s32.totalorder %s224, 63
      %s226 = scalar_select %p225, %s224, 63
      %s227 = smul.addr %s226, 8
      %s228 = scalar_lea.vmem %s0, %s227
      %p229 = pneg %p39
      %p230 = pneg %p36
      %p231 = pneg %p60
      %p232 = pneg %p57
      %p233 = pneg %p81
      %p234 = pneg %p78
      %p235 = pneg %p102
      %p236 = pneg %p99
      %p237 = pneg %p128
      %p238 = pneg %p125
      %s239 = smul.u32 32, %s18
      %p240 = scmp.lt.s32.totalorder %s239, 63
      %s241 = scalar_select %p240, %s239, 63
      %s242 = smul.addr %s241, 8
      %s243 = scalar_lea.vmem %s4, %s242
      %p244 = pneg %p154
      %p245 = pneg %p151
      %p246 = scmp.lt.s32.totalorder %s18, 1
      %s247 = scalar_select %p246, %s18, 1
      %s248 = scalar_lea.vmem %s5, %s247
      %p249 = pneg %p180
      %p250 = pneg %p177
      %p251 = scmp.lt.s32.totalorder %s18, 1
      %s252 = scalar_select %p251, %s18, 1
      %s253 = scalar_lea.vmem %s6, %s252
      %s254 = smul.u32 32, %s18
      %p255 = scmp.lt.s32.totalorder %s254, 63
      %s256 = scalar_select %p255, %s254, 63
      %s257 = smul.addr %s256, 8
      %s258 = scalar_lea.vmem %s0, %s257
      %s259 = smul.u32 32, %s18
      %s260 = smul.u32 32, %s18
      %p261 = scmp.lt.s32.totalorder %s260, 63
      %s262 = scalar_select %p261, %s260, 63
      %s263 = smul.addr %s262, 8
      %s264 = scalar_lea.vmem %s4, %s263
      %s265 = smul.u32 32, %s18
      %p266 = scmp.lt.s32.totalorder %s18, 1
      %s267 = scalar_select %p266, %s18, 1
      %s268 = scalar_lea.vmem %s5, %s267
      %p269 = scmp.lt.s32.totalorder %s18, 1
      %s270 = scalar_select %p269, %s18, 1
      %s271 = scalar_lea.vmem %s6, %s270
      %v273 = vld [vmem:[%s258] sm:$0xff]
      %v274 = vld [vmem:[%s258 + $0x8] sm:$0xff]
      %v275 = vld [vmem:[%s258 + $0x10] sm:$0xff]
      %v276 = vld [vmem:[%s258 + $0x18] sm:$0xff]
      %v277 = vld [vmem:[%s258 + $0x20] sm:$0xff]
      %v278 = vld [vmem:[%s258 + $0x28] sm:$0xff]
      %v279 = vld [vmem:[%s258 + $0x30] sm:$0xff]
      %v280 = vld [vmem:[%s258 + $0x38] sm:$0xff]
      %v281 = vld [vmem:[%s258 + $0x40] sm:$0xff]
      %v282 = vld [vmem:[%s258 + $0x48] sm:$0xff]
      %v283 = vld [vmem:[%s258 + $0x50] sm:$0xff]
      %v284 = vld [vmem:[%s258 + $0x58] sm:$0xff]
      %v285 = vld [vmem:[%s258 + $0x60] sm:$0xff]
      %v286 = vld [vmem:[%s258 + $0x68] sm:$0xff]
      %v287 = vld [vmem:[%s258 + $0x70] sm:$0xff]
      %v288 = vld [vmem:[%s258 + $0x78] sm:$0xff]
      %v289 = vld [vmem:[%s258 + $0x80] sm:$0xff]
      %v290 = vld [vmem:[%s258 + $0x88] sm:$0xff]
      %v291 = vld [vmem:[%s258 + $0x90] sm:$0xff]
      %v292 = vld [vmem:[%s258 + $0x98] sm:$0xff]
      %v293 = vld [vmem:[%s258 + $0xa0] sm:$0xff]
      %v294 = vld [vmem:[%s258 + $0xa8] sm:$0xff]
      %v295 = vld [vmem:[%s258 + $0xb0] sm:$0xff]
      %v296 = vld [vmem:[%s258 + $0xb8] sm:$0xff]
      %v297 = vld [vmem:[%s258 + $0xc0] sm:$0xff]
      %v298 = vld [vmem:[%s258 + $0xc8] sm:$0xff]
      %v299 = vld [vmem:[%s258 + $0xd0] sm:$0xff]
      %v300 = vld [vmem:[%s258 + $0xd8] sm:$0xff]
      %v301 = vld [vmem:[%s258 + $0xe0] sm:$0xff]
      %v302 = vld [vmem:[%s258 + $0xe8] sm:$0xff]
      %v303 = vld [vmem:[%s258 + $0xf0] sm:$0xff]
      %v304 = vld [vmem:[%s258 + $0xf8] sm:$0xff]
      %v305 = vld [vmem:[%s1] sm:$0x1]
      %v307 = vlaneseq
      %v308 = vshrl.u32 %v307, 7
      %v309 = vsub.s32 0, %v308
      %v310 = vrot.slane %v305, %v309
      %v312 = vmul.f32 %v273, %v310
      %v313 = vmul.f32 %v274, %v310
      %v314 = vmul.f32 %v275, %v310
      %v315 = vmul.f32 %v276, %v310
      %v316 = vmul.f32 %v277, %v310
      %v317 = vmul.f32 %v278, %v310
      %v318 = vmul.f32 %v279, %v310
      %v319 = vmul.f32 %v280, %v310
      %v320 = vmul.f32 %v281, %v310
      %v321 = vmul.f32 %v282, %v310
      %v322 = vmul.f32 %v283, %v310
      %v323 = vmul.f32 %v284, %v310
      %v324 = vmul.f32 %v285, %v310
      %v325 = vmul.f32 %v286, %v310
      %v326 = vmul.f32 %v287, %v310
      %v327 = vmul.f32 %v288, %v310
      %v328 = vmul.f32 %v289, %v310
      %v329 = vmul.f32 %v290, %v310
      %v330 = vmul.f32 %v291, %v310
      %v331 = vmul.f32 %v292, %v310
      %v332 = vmul.f32 %v293, %v310
      %v333 = vmul.f32 %v294, %v310
      %v334 = vmul.f32 %v295, %v310
      %v335 = vmul.f32 %v296, %v310
      %v336 = vmul.f32 %v297, %v310
      %v337 = vmul.f32 %v298, %v310
      %v338 = vmul.f32 %v299, %v310
      %v339 = vmul.f32 %v300, %v310
      %v340 = vmul.f32 %v301, %v310
      %v341 = vmul.f32 %v302, %v310
      %v342 = vmul.f32 %v303, %v310
      %v343 = vmul.f32 %v304, %v310
      %v344 = vld [vmem:[%s2] sm:$0x1]
      %v346 = vlaneseq
      %v347 = vshrl.u32 %v346, 7
      %v348 = vsub.s32 0, %v347
      %v349 = vrot.slane %v344, %v348
      %v351 = vadd.f32 %v312, %v349
      %v352 = vadd.f32 %v313, %v349
      %v353 = vadd.f32 %v314, %v349
      %v354 = vadd.f32 %v315, %v349
      %v355 = vadd.f32 %v316, %v349
      %v356 = vadd.f32 %v317, %v349
      %v357 = vadd.f32 %v318, %v349
      %v358 = vadd.f32 %v319, %v349
      %v359 = vadd.f32 %v320, %v349
      %v360 = vadd.f32 %v321, %v349
      %v361 = vadd.f32 %v322, %v349
      %v362 = vadd.f32 %v323, %v349
      %v363 = vadd.f32 %v324, %v349
      %v364 = vadd.f32 %v325, %v349
      %v365 = vadd.f32 %v326, %v349
      %v366 = vadd.f32 %v327, %v349
      %v367 = vadd.f32 %v328, %v349
      %v368 = vadd.f32 %v329, %v349
      %v369 = vadd.f32 %v330, %v349
      %v370 = vadd.f32 %v331, %v349
      %v371 = vadd.f32 %v332, %v349
      %v372 = vadd.f32 %v333, %v349
      %v373 = vadd.f32 %v334, %v349
      %v374 = vadd.f32 %v335, %v349
      %v375 = vadd.f32 %v336, %v349
      %v376 = vadd.f32 %v337, %v349
      %v377 = vadd.f32 %v338, %v349
      %v378 = vadd.f32 %v339, %v349
      %v379 = vadd.f32 %v340, %v349
      %v380 = vadd.f32 %v341, %v349
      %v381 = vadd.f32 %v342, %v349
      %v382 = vadd.f32 %v343, %v349
      %v383 = vmax.f32 %v351, 0.0
      %v384 = vmax.f32 %v352, 0.0
      %v385 = vmax.f32 %v353, 0.0
      %v386 = vmax.f32 %v354, 0.0
      %v387 = vmax.f32 %v355, 0.0
      %v388 = vmax.f32 %v356, 0.0
      %v389 = vmax.f32 %v357, 0.0
      %v390 = vmax.f32 %v358, 0.0
      %v391 = vmax.f32 %v359, 0.0
      %v392 = vmax.f32 %v360, 0.0
      %v393 = vmax.f32 %v361, 0.0
      %v394 = vmax.f32 %v362, 0.0
      %v395 = vmax.f32 %v363, 0.0
      %v396 = vmax.f32 %v364, 0.0
      %v397 = vmax.f32 %v365, 0.0
      %v398 = vmax.f32 %v366, 0.0
      %v399 = vmax.f32 %v367, 0.0
      %v400 = vmax.f32 %v368, 0.0
      %v401 = vmax.f32 %v369, 0.0
      %v402 = vmax.f32 %v370, 0.0
      %v403 = vmax.f32 %v371, 0.0
      %v404 = vmax.f32 %v372, 0.0
      %v405 = vmax.f32 %v373, 0.0
      %v406 = vmax.f32 %v374, 0.0
      %v407 = vmax.f32 %v375, 0.0
      %v408 = vmax.f32 %v376, 0.0
      %v409 = vmax.f32 %v377, 0.0
      %v410 = vmax.f32 %v378, 0.0
      %v411 = vmax.f32 %v379, 0.0
      %v412 = vmax.f32 %v380, 0.0
      %v413 = vmax.f32 %v381, 0.0
      %v414 = vmax.f32 %v382, 0.0
      %v415 = vpack.c.bf16 %v384, %v383
      %v416 = vpack.c.bf16 %v386, %v385
      %v417 = vpack.c.bf16 %v388, %v387
      %v418 = vpack.c.bf16 %v390, %v389
      %v419 = vpack.c.bf16 %v392, %v391
      %v420 = vpack.c.bf16 %v394, %v393
      %v421 = vpack.c.bf16 %v396, %v395
      %v422 = vpack.c.bf16 %v398, %v397
      %v423 = vpack.c.bf16 %v400, %v399
      %v424 = vpack.c.bf16 %v402, %v401
      %v425 = vpack.c.bf16 %v404, %v403
      %v426 = vpack.c.bf16 %v406, %v405
      %v427 = vpack.c.bf16 %v408, %v407
      %v428 = vpack.c.bf16 %v410, %v409
      %v429 = vpack.c.bf16 %v412, %v411
      %v430 = vpack.c.bf16 %v414, %v413
      %v431 = vld [vmem:[%s3] sm:$0xf]
      %v432 = vld [vmem:[%s3 + $0x4] sm:$0xf]
      %v433 = vld [vmem:[%s3 + $0x8] sm:$0xf]
      %v434 = vld [vmem:[%s3 + $0xc] sm:$0xf]
      %v435 = vld [vmem:[%s3 + $0x10] sm:$0xf]
      %v436 = vld [vmem:[%s3 + $0x14] sm:$0xf]
      %v437 = vld [vmem:[%s3 + $0x18] sm:$0xf]
      %v438 = vld [vmem:[%s3 + $0x1c] sm:$0xf]
      %v439 = vld [vmem:[%s3 + $0x20] sm:$0xf]
      %v440 = vld [vmem:[%s3 + $0x24] sm:$0xf]
      %v441 = vld [vmem:[%s3 + $0x28] sm:$0xf]
      %v442 = vld [vmem:[%s3 + $0x2c] sm:$0xf]
      %v443 = vld [vmem:[%s3 + $0x30] sm:$0xf]
      %v444 = vld [vmem:[%s3 + $0x34] sm:$0xf]
      %v445 = vld [vmem:[%s3 + $0x38] sm:$0xf]
      %v446 = vld [vmem:[%s3 + $0x3c] sm:$0xf]
      %v463 = vunpack.c.l.b16 %v431
      %v464 = vunpack.c.l.b16 %v432
      %v465 = vunpack.c.l.b16 %v433
      %v466 = vunpack.c.l.b16 %v434
      %v467 = vunpack.c.l.b16 %v435
      %v468 = vunpack.c.l.b16 %v436
      %v469 = vunpack.c.l.b16 %v437
      %v470 = vunpack.c.l.b16 %v438
      %v471 = vunpack.c.l.b16 %v439
      %v472 = vunpack.c.l.b16 %v440
      %v473 = vunpack.c.l.b16 %v441
      %v474 = vunpack.c.l.b16 %v442
      %v475 = vunpack.c.l.b16 %v443
      %v476 = vunpack.c.l.b16 %v444
      %v477 = vunpack.c.l.b16 %v445
      %v478 = vunpack.c.l.b16 %v446
      %v479 = vpack.c.b16 %v464, %v463
      %v480 = vpack.c.b16 %v466, %v465
      %v481 = vpack.c.b16 %v468, %v467
      %v482 = vpack.c.b16 %v470, %v469
      %v483 = vpack.c.b16 %v472, %v471
      %v484 = vpack.c.b16 %v474, %v473
      %v485 = vpack.c.b16 %v476, %v475
      %v486 = vpack.c.b16 %v478, %v477
      %495 = vmatprep.subr.bf16.mxu0 0
      %496 = vmatpush1.bf16.msra.mxu0 %v479
      %497 = vmatprep.subr.bf16.mxu0 0
      %498 = vmatpush1.bf16.msra.mxu0 %v480
      %499 = vmatprep.subr.bf16.mxu0 0
      %500 = vmatpush1.bf16.msra.mxu0 %v481
      %501 = vmatprep.subr.bf16.mxu0 0
      %502 = vmatpush1.bf16.msra.mxu0 %v482
      %503 = vmatprep.subr.bf16.mxu0 0
      %504 = vmatpush1.bf16.msra.mxu0 %v483
      %505 = vmatprep.subr.bf16.mxu0 0
      %506 = vmatpush1.bf16.msra.mxu0 %v484
      %507 = vmatprep.subr.bf16.mxu0 0
      %508 = vmatpush1.bf16.msra.mxu0 %v485
      %509 = vmatprep.subr.bf16.mxu0 0
      %510 = vmatpush1.bf16.msra.mxu0 %v486
      %511 = vmatprep.subr.bf16.mxu0 0
      %512 = vmatpush1.bf16.msra.mxu0 0
      %513 = vmatprep.subr.bf16.mxu0 0
      %514 = vmatpush1.bf16.msra.mxu0 0
      %515 = vmatprep.subr.bf16.mxu0 0
      %516 = vmatpush1.bf16.msra.mxu0 0
      %517 = vmatprep.subr.bf16.mxu0 0
      %518 = vmatpush1.bf16.msra.mxu0 0
      %519 = vmatprep.subr.bf16.mxu0 0
      %520 = vmatpush1.bf16.msra.mxu0 0
      %521 = vmatprep.subr.bf16.mxu0 0
      %522 = vmatpush1.bf16.msra.mxu0 0
      %523 = vmatprep.subr.bf16.mxu0 0
      %524 = vmatpush1.bf16.msra.mxu0 0
      %525 = vmatprep.subr.bf16.mxu0 0
      %526 = vmatpush1.bf16.msra.mxu0 0
      %527 = vmatprep.mubr.bf16.mxu0 0
      %528 = vmatmul.mubr.bf16.gmra.mrb[0].mxu0 %v415
      %v529 = vpop.f32.mrb[0].mxu0
      %v530 = vadd.f32 0.0, %v529
      %v531 = vpop.f32.mrb[0].mxu0
      %v532 = vpop.f32.mrb[0].mxu0
      %v533 = vadd.f32 0.0, %v532
      %v534 = vpop.f32.mrb[0].mxu0
      %535 = vmatprep.mubr.bf16.mxu0 0
      %536 = vmatmul.mubr.bf16.gmra.mrb[0].mxu0 %v416
      %v537 = vpop.f32.mrb[0].mxu0
      %v538 = vadd.f32 0.0, %v537
      %v539 = vpop.f32.mrb[0].mxu0
      %v540 = vpop.f32.mrb[0].mxu0
      %v541 = vadd.f32 0.0, %v540
      %v542 = vpop.f32.mrb[0].mxu0
      %543 = vmatprep.mubr.bf16.mxu0 0
      %544 = vmatmul.mubr.bf16.gmra.mrb[0].mxu0 %v417
      %v545 = vpop.f32.mrb[0].mxu0
      %v546 = vadd.f32 0.0, %v545
      %v547 = vpop.f32.mrb[0].mxu0
      %v548 = vpop.f32.mrb[0].mxu0
      %v549 = vadd.f32 0.0, %v548
      %v550 = vpop.f32.mrb[0].mxu0
      %551 = vmatprep.mubr.bf16.mxu0 0
      %552 = vmatmul.mubr.bf16.gmra.mrb[0].mxu0 %v418
      %v553 = vpop.f32.mrb[0].mxu0
      %v554 = vadd.f32 0.0, %v553
      %v555 = vpop.f32.mrb[0].mxu0
      %v556 = vpop.f32.mrb[0].mxu0
      %v557 = vadd.f32 0.0, %v556
      %v558 = vpop.f32.mrb[0].mxu0
      %559 = vmatprep.mubr.bf16.mxu0 0
      %560 = vmatmul.mubr.bf16.gmra.mrb[0].mxu0 %v419
      %v561 = vpop.f32.mrb[0].mxu0
      %v562 = vadd.f32 0.0, %v561
      %v563 = vpop.f32.mrb[0].mxu0
      %v564 = vpop.f32.mrb[0].mxu0
      %v565 = vadd.f32 0.0, %v564
      %v566 = vpop.f32.mrb[0].mxu0
      %567 = vmatprep.mubr.bf16.mxu0 0
      %568 = vmatmul.mubr.bf16.gmra.mrb[0].mxu0 %v420
      %v569 = vpop.f32.mrb[0].mxu0
      %v570 = vadd.f32 0.0, %v569
      %v571 = vpop.f32.mrb[0].mxu0
      %v572 = vpop.f32.mrb[0].mxu0
      %v573 = vadd.f32 0.0, %v572
      %v574 = vpop.f32.mrb[0].mxu0
      %575 = vmatprep.mubr.bf16.mxu0 0
      %576 = vmatmul.mubr.bf16.gmra.mrb[0].mxu0 %v421
      %v577 = vpop.f32.mrb[0].mxu0
      %v578 = vadd.f32 0.0, %v577
      %v579 = vpop.f32.mrb[0].mxu0
      %v580 = vpop.f32.mrb[0].mxu0
      %v581 = vadd.f32 0.0, %v580
      %v582 = vpop.f32.mrb[0].mxu0
      %583 = vmatprep.mubr.bf16.mxu0 0
      %584 = vmatmul.mubr.bf16.gmra.mrb[0].mxu0 %v422
      %v585 = vpop.f32.mrb[0].mxu0
      %v586 = vadd.f32 0.0, %v585
      %v587 = vpop.f32.mrb[0].mxu0
      %v588 = vpop.f32.mrb[0].mxu0
      %v589 = vadd.f32 0.0, %v588
      %v590 = vpop.f32.mrb[0].mxu0
      %591 = vmatprep.mubr.bf16.mxu0 0
      %592 = vmatmul.mubr.bf16.gmra.mrb[0].mxu0 %v423
      %v593 = vpop.f32.mrb[0].mxu0
      %v594 = vadd.f32 0.0, %v593
      %v595 = vpop.f32.mrb[0].mxu0
      %v596 = vpop.f32.mrb[0].mxu0
      %v597 = vadd.f32 0.0, %v596
      %v598 = vpop.f32.mrb[0].mxu0
      %599 = vmatprep.mubr.bf16.mxu0 0
      %600 = vmatmul.mubr.bf16.gmra.mrb[0].mxu0 %v424
      %v601 = vpop.f32.mrb[0].mxu0
      %v602 = vadd.f32 0.0, %v601
      %v603 = vpop.f32.mrb[0].mxu0
      %v604 = vpop.f32.mrb[0].mxu0
      %v605 = vadd.f32 0.0, %v604
      %v606 = vpop.f32.mrb[0].mxu0
      %607 = vmatprep.mubr.bf16.mxu0 0
      %608 = vmatmul.mubr.bf16.gmra.mrb[0].mxu0 %v425
      %v609 = vpop.f32.mrb[0].mxu0
      %v610 = vadd.f32 0.0, %v609
      %v611 = vpop.f32.mrb[0].mxu0
      %v612 = vpop.f32.mrb[0].mxu0
      %v613 = vadd.f32 0.0, %v612
      %v614 = vpop.f32.mrb[0].mxu0
      %615 = vmatprep.mubr.bf16.mxu0 0
      %616 = vmatmul.mubr.bf16.gmra.mrb[0].mxu0 %v426
      %v617 = vpop.f32.mrb[0].mxu0
      %v618 = vadd.f32 0.0, %v617
      %v619 = vpop.f32.mrb[0].mxu0
      %v620 = vpop.f32.mrb[0].mxu0
      %v621 = vadd.f32 0.0, %v620
      %v622 = vpop.f32.mrb[0].mxu0
      %623 = vmatprep.mubr.bf16.mxu0 0
      %624 = vmatmul.mubr.bf16.gmra.mrb[0].mxu0 %v427
      %v625 = vpop.f32.mrb[0].mxu0
      %v626 = vadd.f32 0.0, %v625
      %v627 = vpop.f32.mrb[0].mxu0
      %v628 = vpop.f32.mrb[0].mxu0
      %v629 = vadd.f32 0.0, %v628
      %v630 = vpop.f32.mrb[0].mxu0
      %631 = vmatprep.mubr.bf16.mxu0 0
      %632 = vmatmul.mubr.bf16.gmra.mrb[0].mxu0 %v428
      %v633 = vpop.f32.mrb[0].mxu0
      %v634 = vadd.f32 0.0, %v633
      %v635 = vpop.f32.mrb[0].mxu0
      %v636 = vpop.f32.mrb[0].mxu0
      %v637 = vadd.f32 0.0, %v636
      %v638 = vpop.f32.mrb[0].mxu0
      %639 = vmatprep.mubr.bf16.mxu0 0
      %640 = vmatmul.mubr.bf16.gmra.mrb[0].mxu0 %v429
      %v641 = vpop.f32.mrb[0].mxu0
      %v642 = vadd.f32 0.0, %v641
      %v643 = vpop.f32.mrb[0].mxu0
      %v644 = vpop.f32.mrb[0].mxu0
      %v645 = vadd.f32 0.0, %v644
      %v646 = vpop.f32.mrb[0].mxu0
      %647 = vmatprep.mubr.bf16.mxu0 0
      %648 = vmatmul.mubr.bf16.gmra.mrb[0].mxu0 %v430
      %v649 = vpop.f32.mrb[0].mxu0
      %v650 = vadd.f32 0.0, %v649
      %v651 = vpop.f32.mrb[0].mxu0
      %v652 = vpop.f32.mrb[0].mxu0
      %v653 = vadd.f32 0.0, %v652
      %v654 = vpop.f32.mrb[0].mxu0
      %655 = vdwg.mxu0
      %656 = vst [vmem:[%s264] sm:$0xff] %v530
      %657 = vst [vmem:[%s264 + $0x8] sm:$0xff] %v533
      %658 = vst [vmem:[%s264 + $0x10] sm:$0xff] %v538
      %659 = vst [vmem:[%s264 + $0x18] sm:$0xff] %v541
      %660 = vst [vmem:[%s264 + $0x20] sm:$0xff] %v546
      %661 = vst [vmem:[%s264 + $0x28] sm:$0xff] %v549
      %662 = vst [vmem:[%s264 + $0x30] sm:$0xff] %v554
      %663 = vst [vmem:[%s264 + $0x38] sm:$0xff] %v557
      %664 = vst [vmem:[%s264 + $0x40] sm:$0xff] %v562
      %665 = vst [vmem:[%s264 + $0x48] sm:$0xff] %v565
      %666 = vst [vmem:[%s264 + $0x50] sm:$0xff] %v570
      %667 = vst [vmem:[%s264 + $0x58] sm:$0xff] %v573
      %668 = vst [vmem:[%s264 + $0x60] sm:$0xff] %v578
      %669 = vst [vmem:[%s264 + $0x68] sm:$0xff] %v581
      %670 = vst [vmem:[%s264 + $0x70] sm:$0xff] %v586
      %671 = vst [vmem:[%s264 + $0x78] sm:$0xff] %v589
      %672 = vst [vmem:[%s264 + $0x80] sm:$0xff] %v594
      %673 = vst [vmem:[%s264 + $0x88] sm:$0xff] %v597
      %674 = vst [vmem:[%s264 + $0x90] sm:$0xff] %v602
      %675 = vst [vmem:[%s264 + $0x98] sm:$0xff] %v605
      %676 = vst [vmem:[%s264 + $0xa0] sm:$0xff] %v610
      %677 = vst [vmem:[%s264 + $0xa8] sm:$0xff] %v613
      %678 = vst [vmem:[%s264 + $0xb0] sm:$0xff] %v618
      %679 = vst [vmem:[%s264 + $0xb8] sm:$0xff] %v621
      %680 = vst [vmem:[%s264 + $0xc0] sm:$0xff] %v626
      %681 = vst [vmem:[%s264 + $0xc8] sm:$0xff] %v629
      %682 = vst [vmem:[%s264 + $0xd0] sm:$0xff] %v634
      %683 = vst [vmem:[%s264 + $0xd8] sm:$0xff] %v637
      %684 = vst [vmem:[%s264 + $0xe0] sm:$0xff] %v642
      %685 = vst [vmem:[%s264 + $0xe8] sm:$0xff] %v645
      %686 = vst [vmem:[%s264 + $0xf0] sm:$0xff] %v650
      %687 = vst [vmem:[%s264 + $0xf8] sm:$0xff] %v653
      %v688 = vadd.f32 %v530, %v533
      %v689 = vadd.f32 %v688, %v538
      %v690 = vadd.f32 %v689, %v541
      %v691 = vadd.f32 %v690, %v546
      %v692 = vadd.f32 %v691, %v549
      %v693 = vadd.f32 %v692, %v554
      %v694 = vadd.f32 %v693, %v557
      %v695 = vadd.f32 %v694, %v562
      %v696 = vadd.f32 %v695, %v565
      %v697 = vadd.f32 %v696, %v570
      %v698 = vadd.f32 %v697, %v573
      %v699 = vadd.f32 %v698, %v578
      %v700 = vadd.f32 %v699, %v581
      %v701 = vadd.f32 %v700, %v586
      %v702 = vadd.f32 %v701, %v589
      %v703 = vadd.f32 %v702, %v594
      %v704 = vadd.f32 %v703, %v597
      %v705 = vadd.f32 %v704, %v602
      %v706 = vadd.f32 %v705, %v605
      %v707 = vadd.f32 %v706, %v610
      %v708 = vadd.f32 %v707, %v613
      %v709 = vadd.f32 %v708, %v618
      %v710 = vadd.f32 %v709, %v621
      %v711 = vadd.f32 %v710, %v626
      %v712 = vadd.f32 %v711, %v629
      %v713 = vadd.f32 %v712, %v634
      %v714 = vadd.f32 %v713, %v637
      %v715 = vadd.f32 %v714, %v642
      %v716 = vadd.f32 %v715, %v645
      %v717 = vadd.f32 %v716, %v650
      %v718 = vadd.f32 %v717, %v653
      %v719 = vrot.slane %v718, 4
      %v720 = vadd.f32 %v718, %v719
      %v721 = vrot.slane %v720, 2
      %v722 = vadd.f32 %v720, %v721
      %v723 = vrot.slane %v722, 1
      %v724 = vadd.f32 %v722, %v723
      %725 = vst [vmem:[%s268] sm:$0x1] %v724
      %v726 = vmul.f32 %v530, %v530
      %v727 = vmul.f32 %v533, %v533
      %v728 = vmul.f32 %v538, %v538
      %v729 = vmul.f32 %v541, %v541
      %v730 = vmul.f32 %v546, %v546
      %v731 = vmul.f32 %v549, %v549
      %v732 = vmul.f32 %v554, %v554
      %v733 = vmul.f32 %v557, %v557
      %v734 = vmul.f32 %v562, %v562
      %v735 = vmul.f32 %v565, %v565
      %v736 = vmul.f32 %v570, %v570
      %v737 = vmul.f32 %v573, %v573
      %v738 = vmul.f32 %v578, %v578
      %v739 = vmul.f32 %v581, %v581
      %v740 = vmul.f32 %v586, %v586
      %v741 = vmul.f32 %v589, %v589
      %v742 = vmul.f32 %v594, %v594
      %v743 = vmul.f32 %v597, %v597
      %v744 = vmul.f32 %v602, %v602
      %v745 = vmul.f32 %v605, %v605
      %v746 = vmul.f32 %v610, %v610
      %v747 = vmul.f32 %v613, %v613
      %v748 = vmul.f32 %v618, %v618
      %v749 = vmul.f32 %v621, %v621
      %v750 = vmul.f32 %v626, %v626
      %v751 = vmul.f32 %v629, %v629
      %v752 = vmul.f32 %v634, %v634
      %v753 = vmul.f32 %v637, %v637
      %v754 = vmul.f32 %v642, %v642
      %v755 = vmul.f32 %v645, %v645
      %v756 = vmul.f32 %v650, %v650
      %v757 = vmul.f32 %v653, %v653
      %v758 = vadd.f32 %v726, %v727
      %v759 = vadd.f32 %v758, %v728
      %v760 = vadd.f32 %v759, %v729
      %v761 = vadd.f32 %v760, %v730
      %v762 = vadd.f32 %v761, %v731
      %v763 = vadd.f32 %v762, %v732
      %v764 = vadd.f32 %v763, %v733
      %v765 = vadd.f32 %v764, %v734
      %v766 = vadd.f32 %v765, %v735
      %v767 = vadd.f32 %v766, %v736
      %v768 = vadd.f32 %v767, %v737
      %v769 = vadd.f32 %v768, %v738
      %v770 = vadd.f32 %v769, %v739
      %v771 = vadd.f32 %v770, %v740
      %v772 = vadd.f32 %v771, %v741
      %v773 = vadd.f32 %v772, %v742
      %v774 = vadd.f32 %v773, %v743
      %v775 = vadd.f32 %v774, %v744
      %v776 = vadd.f32 %v775, %v745
      %v777 = vadd.f32 %v776, %v746
      %v778 = vadd.f32 %v777, %v747
      %v779 = vadd.f32 %v778, %v748
      %v780 = vadd.f32 %v779, %v749
      %v781 = vadd.f32 %v780, %v750
      %v782 = vadd.f32 %v781, %v751
      %v783 = vadd.f32 %v782, %v752
      %v784 = vadd.f32 %v783, %v753
      %v785 = vadd.f32 %v784, %v754
      %v786 = vadd.f32 %v785, %v755
      %v787 = vadd.f32 %v786, %v756
      %v788 = vadd.f32 %v787, %v757
      %v789 = vrot.slane %v788, 4
      %v790 = vadd.f32 %v788, %v789
      %v791 = vrot.slane %v790, 2
      %v792 = vadd.f32 %v790, %v791
      %v793 = vrot.slane %v792, 1
      %v794 = vadd.f32 %v792, %v793
      %795 = vst [vmem:[%s271] sm:$0x1] %v794
      %s796 = smul.u32 32, %s18
      %p797 = scmp.lt.s32.totalorder %s796, 63
      %s798 = scalar_select %p797, %s796, 63
      %s799 = smul.addr %s798, 8
      %s800 = scalar_lea.vmem %s4, %s799
      %p801 = scmp.lt.s32.totalorder %s18, 1
      %s802 = scalar_select %p801, %s18, 1
      %s803 = scalar_lea.vmem %s5, %s802
      %p804 = scmp.lt.s32.totalorder %s18, 1
      %s805 = scalar_select %p804, %s18, 1
      %s806 = scalar_lea.vmem %s6, %s805
      // Predicated region
      $region37: #{bottleneck_pallas.6} parent=35 // pred_check
        %p807 = pneg %p125
      $region38: #{bottleneck_pallas.6} parent=35 // pred_check_branch
        %809 = sbr.rel (%p807) target = $region40
      $region39: #{bottleneck_pallas.6} parent=35 // pred_region
        %s810 = smul.u32 32, %s18
      $region40: #{bottleneck_pallas.6} parent=35 // pred_fallthru
        _
      // Predicated region
      $region41: #{bottleneck_pallas.6} parent=35 // pred_check
        %p811 = pneg %p151
      $region42: #{bottleneck_pallas.6} parent=35 // pred_check_branch
        %813 = sbr.rel (%p811) target = $region44
      $region43: #{bottleneck_pallas.6} parent=35 // pred_region
        _
      $region44: #{bottleneck_pallas.6} parent=35 // pred_fallthru
        _
      // Predicated region
      $region45: #{bottleneck_pallas.6} parent=35 // pred_check
        %p814 = pneg %p177
      $region46: #{bottleneck_pallas.6} parent=35 // pred_check_branch
        %816 = sbr.rel (%p814) target = $region48
      $region47: #{bottleneck_pallas.6} parent=35 // pred_region
        _
      $region48: #{bottleneck_pallas.6} parent=35 // pred_fallthru
        _
    $region36: #{bottleneck_pallas.6} parent=5 // pred_fallthru
      _
    %p817 = scmp.le.s32.totalorder 2, %s13
    // Predicated region
    $region49: #{bottleneck_pallas.6} parent=5 // pred_check
      %p818 = pneg %p817
    $region50: #{bottleneck_pallas.6} parent=5 // pred_check_branch
      %820 = sbr.rel (%p818) target = $region52
    $region51: #{bottleneck_pallas.6} parent=5 // pred_region
      %s821 = ssub.s32 %s13, 2
      // Predicated region
      $region53: #{bottleneck_pallas.6} parent=51 // pred_check
        %p822 = pneg %p131
      $region54: #{bottleneck_pallas.6} parent=51 // pred_check_branch
        %824 = sbr.rel (%p822) target = $region56
      $region55: #{bottleneck_pallas.6} parent=51 // pred_region
        %s825 = smul.u32 32, %s19
        %p826 = scmp.lt.s32.totalorder %s825, 63
        %s827 = scalar_select %p826, %s825, 63
        %s828 = smul.addr %s827, 8
        %s829 = scalar_lea.vmem %s4, %s828
      $region56: #{bottleneck_pallas.6} parent=51 // pred_fallthru
        _
      // Predicated region
      $region57: #{bottleneck_pallas.6} parent=51 // pred_check
        %p830 = pneg %p157
      $region58: #{bottleneck_pallas.6} parent=51 // pred_check_branch
        %832 = sbr.rel (%p830) target = $region60
      $region59: #{bottleneck_pallas.6} parent=51 // pred_region
        %p833 = scmp.lt.s32.totalorder %s19, 1
        %s834 = scalar_select %p833, %s19, 1
        %s835 = scalar_lea.vmem %s5, %s834
      $region60: #{bottleneck_pallas.6} parent=51 // pred_fallthru
        _
      // Predicated region
      $region61: #{bottleneck_pallas.6} parent=51 // pred_check
        %p836 = pneg %p183
      $region62: #{bottleneck_pallas.6} parent=51 // pred_check_branch
        %838 = sbr.rel (%p836) target = $region64
      $region63: #{bottleneck_pallas.6} parent=51 // pred_region
        %p839 = scmp.lt.s32.totalorder %s19, 1
        %s840 = scalar_select %p839, %s19, 1
        %s841 = scalar_lea.vmem %s6, %s840
      $region64: #{bottleneck_pallas.6} parent=51 // pred_fallthru
        _
    $region52: #{bottleneck_pallas.6} parent=5 // pred_fallthru
      _
  $region6: #{bottleneck_pallas.6} parent=0 // loop_footer
    %s17 = sadd.s32 1, %s13
  $region7: #{bottleneck_pallas.6} parent=0 // loop_footer_branch
    %12 = sbr.rel target = $region3
  $region8: #{bottleneck_pallas.6} parent=0 // loop_exit
    _

// kernel: bottleneck_pallas.5
$region0: #{bottleneck_pallas.5}
  #allocation0 [shape = 'u32[]', space=smem, size = 0x4, offset = 0x4, fixed_abs, tag = 'smem constant byte address 0x4 - core index']
  #allocation1 [shape = 'u32[144,128]{1,0:T(1,128)}', space=vmem, size = 0x12000, scoped, tag = 'internal scratch']
  #allocation2 [shape = 'f32[18,18,128]{2,1,0:T(8,128)}', space=vmem, size = 0x36000, scoped, tag = 'scratch operand']
  %s0 = inlined_call_operand.vmem [shape: f32[2,16,16,128], index: 0, kind: input, shape index: {}]
  %s1 = inlined_call_operand.vmem [shape: f32[1,128], index: 1, kind: input, shape index: {}]
  %s2 = inlined_call_operand.vmem [shape: f32[1,128], index: 2, kind: input, shape index: {}]
  %s3 = inlined_call_operand.vmem [shape: bf16[1152,128], index: 3, kind: input, shape index: {}]
  %s4 = inlined_call_operand.vmem [shape: f32[2,16,16,128], index: 4, kind: output, shape index: {0}]
  %s5 = inlined_call_operand.vmem [shape: f32[2,1,128], index: 5, kind: output, shape index: {1}]
  %s6 = inlined_call_operand.vmem [shape: f32[2,1,128], index: 6, kind: output, shape index: {2}]
  %7 = xla_tuple %s4, %s5, %s6
  %s8 = sld [smem:[#allocation0]]
  $region65: #{bottleneck_pallas.5} parent=0
    _
  %s10 = ssub.s32 1, %s8
  %s11 = scalar_select 0, %s10, %s8
  loop: start=0, step=1, limit=4
  $region2: #{bottleneck_pallas.5} parent=0 // loop_pre_header
    _
  $region3: #{bottleneck_pallas.5} parent=0 // loop_header
    %s13 = sphi 0, %s17
    %p14 = scmp.ge.s32.totalorder %s13, 4
    %s23 = sphi 0, %s25
    %s26 = sphi 0, %s23
    %s27 = sphi 0, %s26
    %s43 = sphi 0, %s27
    %s47 = sphi 0, %s47
    %s49 = sphi 0, %s47
    %s50 = sphi 0, %s49
    %s64 = sphi 0, %s50
    %s68 = sphi 0, %s68
    %s70 = sphi 0, %s68
    %s71 = sphi 0, %s70
    %s85 = sphi 0, %s71
    %s89 = sphi 0, %s89
    %s91 = sphi 0, %s89
    %s92 = sphi 0, %s91
    %s106 = sphi 0, %s92
    %s112 = sphi 0, %s114
    %s115 = sphi 0, %s112
    %s116 = sphi 0, %s115
    %s132 = sphi 0, %s116
    %s138 = sphi 0, %s140
    %s141 = sphi 0, %s138
    %s142 = sphi 0, %s141
    %s158 = sphi 0, %s142
    %s164 = sphi 0, %s166
    %s167 = sphi 0, %s164
    %s168 = sphi 0, %s167
    %s184 = sphi 0, %s168
  $region4: #{bottleneck_pallas.5} parent=0 // loop_header_branch
    %16 = sbr.rel (%p14) target = $region8
  $region5: #{bottleneck_pallas.5} parent=0 // loop_body
    %s18 = ssub.s32 %s13, 1
    %s19 = ssub.s32 %s13, 2
    %s20 = sadd.s32 %s13, 1
    %s21 = ssub.s32 %s13, %s20
    %p22 = scmp.eq.s32.totalorder %s21, 0
    %s24 = sadd.s32 %s23, 1
    %s25 = scalar_select %p22, %s23, %s24
    %p28 = pneg %p22
    %p29 = scmp.eq.s32.totalorder %s13, 1
    %p30 = por %p28, %p29
    %p31 = scmp.ne.s32.totalorder %s23, %s26
    %p32 = scmp.eq.s32.totalorder %s13, 0
    %p33 = por %p31, %p32
    %p34 = scmp.ne.s32.totalorder %s23, %s26
    %p35 = scmp.eq.s32.totalorder %s18, 1
    %p36 = por %p34, %p35
    %p37 = scmp.ne.s32.totalorder %s26, %s27
    %p38 = scmp.eq.s32.totalorder %s18, 0
    %p39 = por %p37, %p38
    %p40 = scmp.ne.s32.totalorder %s26, %s27
    %p41 = scmp.eq.s32.totalorder %s19, 1
    %p42 = por %p40, %p41
    %p44 = scmp.ne.s32.totalorder %s27, %s43
    %p45 = scmp.eq.s32.totalorder %s19, 0
    %p46 = por %p44, %p45
    %s48 = sadd.s32 %s47, 1
    %p51 = scmp.eq.s32.totalorder %s13, 1
    %p52 = scmp.ne.s32.totalorder %s47, %s49
    %p53 = scmp.eq.s32.totalorder %s13, 0
    %p54 = por %p52, %p53
    %p55 = scmp.ne.s32.totalorder %s47, %s49
    %p56 = scmp.eq.s32.totalorder %s18, 1
    %p57 = por %p55, %p56
    %p58 = scmp.ne.s32.totalorder %s49, %s50
    %p59 = scmp.eq.s32.totalorder %s18, 0
    %p60 = por %p58, %p59
    %p61 = scmp.ne.s32.totalorder %s49, %s50
    %p62 = scmp.eq.s32.totalorder %s19, 1
    %p63 = por %p61, %p62
    %p65 = scmp.ne.s32.totalorder %s50, %s64
    %p66 = scmp.eq.s32.totalorder %s19, 0
    %p67 = por %p65, %p66
    %s69 = sadd.s32 %s68, 1
    %p72 = scmp.eq.s32.totalorder %s13, 1
    %p73 = scmp.ne.s32.totalorder %s68, %s70
    %p74 = scmp.eq.s32.totalorder %s13, 0
    %p75 = por %p73, %p74
    %p76 = scmp.ne.s32.totalorder %s68, %s70
    %p77 = scmp.eq.s32.totalorder %s18, 1
    %p78 = por %p76, %p77
    %p79 = scmp.ne.s32.totalorder %s70, %s71
    %p80 = scmp.eq.s32.totalorder %s18, 0
    %p81 = por %p79, %p80
    %p82 = scmp.ne.s32.totalorder %s70, %s71
    %p83 = scmp.eq.s32.totalorder %s19, 1
    %p84 = por %p82, %p83
    %p86 = scmp.ne.s32.totalorder %s71, %s85
    %p87 = scmp.eq.s32.totalorder %s19, 0
    %p88 = por %p86, %p87
    %s90 = sadd.s32 %s89, 1
    %p93 = scmp.eq.s32.totalorder %s13, 1
    %p94 = scmp.ne.s32.totalorder %s89, %s91
    %p95 = scmp.eq.s32.totalorder %s13, 0
    %p96 = por %p94, %p95
    %p97 = scmp.ne.s32.totalorder %s89, %s91
    %p98 = scmp.eq.s32.totalorder %s18, 1
    %p99 = por %p97, %p98
    %p100 = scmp.ne.s32.totalorder %s91, %s92
    %p101 = scmp.eq.s32.totalorder %s18, 0
    %p102 = por %p100, %p101
    %p103 = scmp.ne.s32.totalorder %s91, %s92
    %p104 = scmp.eq.s32.totalorder %s19, 1
    %p105 = por %p103, %p104
    %p107 = scmp.ne.s32.totalorder %s92, %s106
    %p108 = scmp.eq.s32.totalorder %s19, 0
    %p109 = por %p107, %p108
    %s110 = ssub.s32 %s13, %s20
    %p111 = scmp.eq.s32.totalorder %s110, 0
    %s113 = sadd.s32 %s112, 1
    %s114 = scalar_select %p111, %s112, %s113
    %p117 = pneg %p111
    %p118 = scmp.eq.s32.totalorder %s13, 1
    %p119 = por %p117, %p118
    %p120 = scmp.ne.s32.totalorder %s112, %s115
    %p121 = scmp.eq.s32.totalorder %s13, 0
    %p122 = por %p120, %p121
    %p123 = scmp.ne.s32.totalorder %s112, %s115
    %p124 = scmp.eq.s32.totalorder %s18, 1
    %p125 = por %p123, %p124
    %p126 = scmp.ne.s32.totalorder %s115, %s116
    %p127 = scmp.eq.s32.totalorder %s18, 0
    %p128 = por %p126, %p127
    %p129 = scmp.ne.s32.totalorder %s115, %s116
    %p130 = scmp.eq.s32.totalorder %s19, 1
    %p131 = por %p129, %p130
    %p133 = scmp.ne.s32.totalorder %s116, %s132
    %p134 = scmp.eq.s32.totalorder %s19, 0
    %p135 = por %p133, %p134
    %s136 = ssub.s32 %s13, %s20
    %p137 = scmp.eq.s32.totalorder %s136, 0
    %s139 = sadd.s32 %s138, 1
    %s140 = scalar_select %p137, %s138, %s139
    %p143 = pneg %p137
    %p144 = scmp.eq.s32.totalorder %s13, 1
    %p145 = por %p143, %p144
    %p146 = scmp.ne.s32.totalorder %s138, %s141
    %p147 = scmp.eq.s32.totalorder %s13, 0
    %p148 = por %p146, %p147
    %p149 = scmp.ne.s32.totalorder %s138, %s141
    %p150 = scmp.eq.s32.totalorder %s18, 1
    %p151 = por %p149, %p150
    %p152 = scmp.ne.s32.totalorder %s141, %s142
    %p153 = scmp.eq.s32.totalorder %s18, 0
    %p154 = por %p152, %p153
    %p155 = scmp.ne.s32.totalorder %s141, %s142
    %p156 = scmp.eq.s32.totalorder %s19, 1
    %p157 = por %p155, %p156
    %p159 = scmp.ne.s32.totalorder %s142, %s158
    %p160 = scmp.eq.s32.totalorder %s19, 0
    %p161 = por %p159, %p160
    %s162 = ssub.s32 %s13, %s20
    %p163 = scmp.eq.s32.totalorder %s162, 0
    %s165 = sadd.s32 %s164, 1
    %s166 = scalar_select %p163, %s164, %s165
    %p169 = pneg %p163
    %p170 = scmp.eq.s32.totalorder %s13, 1
    %p171 = por %p169, %p170
    %p172 = scmp.ne.s32.totalorder %s164, %s167
    %p173 = scmp.eq.s32.totalorder %s13, 0
    %p174 = por %p172, %p173
    %p175 = scmp.ne.s32.totalorder %s164, %s167
    %p176 = scmp.eq.s32.totalorder %s18, 1
    %p177 = por %p175, %p176
    %p178 = scmp.ne.s32.totalorder %s167, %s168
    %p179 = scmp.eq.s32.totalorder %s18, 0
    %p180 = por %p178, %p179
    %p181 = scmp.ne.s32.totalorder %s167, %s168
    %p182 = scmp.eq.s32.totalorder %s19, 1
    %p183 = por %p181, %p182
    %p185 = scmp.ne.s32.totalorder %s168, %s184
    %p186 = scmp.eq.s32.totalorder %s19, 0
    %p187 = por %p185, %p186
    %p188 = scmp.le.s32.totalorder 1, %s13
    %p189 = scmp.lt.s32.totalorder %s13, 3
    %p190 = pnand %p188, %p189
    %p191 = pneg %p190
    // Predicated region
    $region9: #{bottleneck_pallas.5} parent=5 // pred_check
      _
    $region10: #{bottleneck_pallas.5} parent=5 // pred_check_branch
      %193 = sbr.rel (%p190) target = $region12
    $region11: #{bottleneck_pallas.5} parent=5 // pred_region
      %s194 = ssub.s32 %s13, 1
      // Predicated region
      $region13: #{bottleneck_pallas.5} parent=11 // pred_check
        %p195 = pneg %p60
      $region14: #{bottleneck_pallas.5} parent=11 // pred_check_branch
        %197 = sbr.rel (%p195) target = $region16
      $region15: #{bottleneck_pallas.5} parent=11 // pred_region
        _
      $region16: #{bottleneck_pallas.5} parent=11 // pred_fallthru
        _
      // Predicated region
      $region17: #{bottleneck_pallas.5} parent=11 // pred_check
        %p198 = pneg %p81
      $region18: #{bottleneck_pallas.5} parent=11 // pred_check_branch
        %200 = sbr.rel (%p198) target = $region20
      $region19: #{bottleneck_pallas.5} parent=11 // pred_region
        _
      $region20: #{bottleneck_pallas.5} parent=11 // pred_fallthru
        _
      // Predicated region
      $region21: #{bottleneck_pallas.5} parent=11 // pred_check
        %p201 = pneg %p102
      $region22: #{bottleneck_pallas.5} parent=11 // pred_check_branch
        %203 = sbr.rel (%p201) target = $region24
      $region23: #{bottleneck_pallas.5} parent=11 // pred_region
        _
      $region24: #{bottleneck_pallas.5} parent=11 // pred_fallthru
        _
    $region12: #{bottleneck_pallas.5} parent=5 // pred_fallthru
      _
    %p204 = scmp.lt.s32.totalorder %s13, 2
    // Predicated region
    $region25: #{bottleneck_pallas.5} parent=5 // pred_check
      %p205 = pneg %p204
    $region26: #{bottleneck_pallas.5} parent=5 // pred_check_branch
      %207 = sbr.rel (%p205) target = $region28
    $region27: #{bottleneck_pallas.5} parent=5 // pred_region
      // Predicated region
      $region29: #{bottleneck_pallas.5} parent=27 // pred_check
        %p208 = pneg %p33
      $region30: #{bottleneck_pallas.5} parent=27 // pred_check_branch
        %210 = sbr.rel (%p208) target = $region32
      $region31: #{bottleneck_pallas.5} parent=27 // pred_region
        %p211 = scmp.lt.s32.totalorder %s13, 1
        %s212 = scalar_select %p211, %s13, 1
        %s213 = smul.addr %s212, 32
        %s214 = smul.addr %s213, 8
        %s215 = scalar_lea.vmem %s0, %s214
      $region32: #{bottleneck_pallas.5} parent=27 // pred_fallthru
        _
    $region28: #{bottleneck_pallas.5} parent=5 // pred_fallthru
      _
    %p216 = scmp.le.s32.totalorder 1, %s13
    %p217 = scmp.lt.s32.totalorder %s13, 3
    %p218 = pnand %p216, %p217
    %p219 = pneg %p218
    // Predicated region
    $region33: #{bottleneck_pallas.5} parent=5 // pred_check
      _
    $region34: #{bottleneck_pallas.5} parent=5 // pred_check_branch
      %221 = sbr.rel (%p218) target = $region36
    $region35: #{bottleneck_pallas.5} parent=5 // pred_region
      %s222 = ssub.s32 %s13, 1
      %p223 = scmp.lt.s32.totalorder %s18, 1
      %s224 = scalar_select %p223, %s18, 1
      %s225 = smul.addr %s224, 32
      %s226 = smul.addr %s225, 8
      %s227 = scalar_lea.vmem %s0, %s226
      %p228 = pneg %p39
      %p229 = pneg %p36
      %p230 = pneg %p60
      %p231 = pneg %p57
      %p232 = pneg %p81
      %p233 = pneg %p78
      %p234 = pneg %p102
      %p235 = pneg %p99
      %p236 = pneg %p128
      %p237 = pneg %p125
      %p238 = scmp.lt.s32.totalorder %s18, 1
      %s239 = scalar_select %p238, %s18, 1
      %s240 = smul.addr %s239, 32
      %s241 = smul.addr %s240, 8
      %s242 = scalar_lea.vmem %s4, %s241
      %p243 = pneg %p154
      %p244 = pneg %p151
      %p245 = scmp.lt.s32.totalorder %s18, 1
      %s246 = scalar_select %p245, %s18, 1
      %s247 = scalar_lea.vmem %s5, %s246
      %p248 = pneg %p180
      %p249 = pneg %p177
      %p250 = scmp.lt.s32.totalorder %s18, 1
      %s251 = scalar_select %p250, %s18, 1
      %s252 = scalar_lea.vmem %s6, %s251
      %p253 = scmp.lt.s32.totalorder %s18, 1
      %s254 = scalar_select %p253, %s18, 1
      %s255 = smul.addr %s254, 32
      %s256 = smul.addr %s255, 8
      %s257 = scalar_lea.vmem %s0, %s256
      %p258 = scmp.lt.s32.totalorder %s18, 1
      %s259 = scalar_select %p258, %s18, 1
      %s260 = smul.addr %s259, 32
      %s261 = smul.addr %s260, 8
      %s262 = scalar_lea.vmem %s4, %s261
      %p263 = scmp.lt.s32.totalorder %s18, 1
      %s264 = scalar_select %p263, %s18, 1
      %s265 = scalar_lea.vmem %s5, %s264
      %p266 = scmp.lt.s32.totalorder %s18, 1
      %s267 = scalar_select %p266, %s18, 1
      %s268 = scalar_lea.vmem %s6, %s267
      %v270 = vld [vmem:[%s257] sm:$0xff]
      %v271 = vld [vmem:[%s257 + $0x8] sm:$0xff]
      %v272 = vld [vmem:[%s257 + $0x10] sm:$0xff]
      %v273 = vld [vmem:[%s257 + $0x18] sm:$0xff]
      %v274 = vld [vmem:[%s257 + $0x20] sm:$0xff]
      %v275 = vld [vmem:[%s257 + $0x28] sm:$0xff]
      %v276 = vld [vmem:[%s257 + $0x30] sm:$0xff]
      %v277 = vld [vmem:[%s257 + $0x38] sm:$0xff]
      %v278 = vld [vmem:[%s257 + $0x40] sm:$0xff]
      %v279 = vld [vmem:[%s257 + $0x48] sm:$0xff]
      %v280 = vld [vmem:[%s257 + $0x50] sm:$0xff]
      %v281 = vld [vmem:[%s257 + $0x58] sm:$0xff]
      %v282 = vld [vmem:[%s257 + $0x60] sm:$0xff]
      %v283 = vld [vmem:[%s257 + $0x68] sm:$0xff]
      %v284 = vld [vmem:[%s257 + $0x70] sm:$0xff]
      %v285 = vld [vmem:[%s257 + $0x78] sm:$0xff]
      %v286 = vld [vmem:[%s257 + $0x80] sm:$0xff]
      %v287 = vld [vmem:[%s257 + $0x88] sm:$0xff]
      %v288 = vld [vmem:[%s257 + $0x90] sm:$0xff]
      %v289 = vld [vmem:[%s257 + $0x98] sm:$0xff]
      %v290 = vld [vmem:[%s257 + $0xa0] sm:$0xff]
      %v291 = vld [vmem:[%s257 + $0xa8] sm:$0xff]
      %v292 = vld [vmem:[%s257 + $0xb0] sm:$0xff]
      %v293 = vld [vmem:[%s257 + $0xb8] sm:$0xff]
      %v294 = vld [vmem:[%s257 + $0xc0] sm:$0xff]
      %v295 = vld [vmem:[%s257 + $0xc8] sm:$0xff]
      %v296 = vld [vmem:[%s257 + $0xd0] sm:$0xff]
      %v297 = vld [vmem:[%s257 + $0xd8] sm:$0xff]
      %v298 = vld [vmem:[%s257 + $0xe0] sm:$0xff]
      %v299 = vld [vmem:[%s257 + $0xe8] sm:$0xff]
      %v300 = vld [vmem:[%s257 + $0xf0] sm:$0xff]
      %v301 = vld [vmem:[%s257 + $0xf8] sm:$0xff]
      %v302 = vld [vmem:[%s1] sm:$0x1]
      %v304 = vlaneseq
      %v305 = vshrl.u32 %v304, 7
      %v306 = vsub.s32 0, %v305
      %v307 = vrot.slane %v302, %v306
      %v309 = vmul.f32 %v270, %v307
      %v310 = vmul.f32 %v271, %v307
      %v311 = vmul.f32 %v272, %v307
      %v312 = vmul.f32 %v273, %v307
      %v313 = vmul.f32 %v274, %v307
      %v314 = vmul.f32 %v275, %v307
      %v315 = vmul.f32 %v276, %v307
      %v316 = vmul.f32 %v277, %v307
      %v317 = vmul.f32 %v278, %v307
      %v318 = vmul.f32 %v279, %v307
      %v319 = vmul.f32 %v280, %v307
      %v320 = vmul.f32 %v281, %v307
      %v321 = vmul.f32 %v282, %v307
      %v322 = vmul.f32 %v283, %v307
      %v323 = vmul.f32 %v284, %v307
      %v324 = vmul.f32 %v285, %v307
      %v325 = vmul.f32 %v286, %v307
      %v326 = vmul.f32 %v287, %v307
      %v327 = vmul.f32 %v288, %v307
      %v328 = vmul.f32 %v289, %v307
      %v329 = vmul.f32 %v290, %v307
      %v330 = vmul.f32 %v291, %v307
      %v331 = vmul.f32 %v292, %v307
      %v332 = vmul.f32 %v293, %v307
      %v333 = vmul.f32 %v294, %v307
      %v334 = vmul.f32 %v295, %v307
      %v335 = vmul.f32 %v296, %v307
      %v336 = vmul.f32 %v297, %v307
      %v337 = vmul.f32 %v298, %v307
      %v338 = vmul.f32 %v299, %v307
      %v339 = vmul.f32 %v300, %v307
      %v340 = vmul.f32 %v301, %v307
      %v341 = vld [vmem:[%s2] sm:$0x1]
      %v343 = vlaneseq
      %v344 = vshrl.u32 %v343, 7
      %v345 = vsub.s32 0, %v344
      %v346 = vrot.slane %v341, %v345
      %v348 = vadd.f32 %v309, %v346
      %v349 = vadd.f32 %v310, %v346
      %v350 = vadd.f32 %v311, %v346
      %v351 = vadd.f32 %v312, %v346
      %v352 = vadd.f32 %v313, %v346
      %v353 = vadd.f32 %v314, %v346
      %v354 = vadd.f32 %v315, %v346
      %v355 = vadd.f32 %v316, %v346
      %v356 = vadd.f32 %v317, %v346
      %v357 = vadd.f32 %v318, %v346
      %v358 = vadd.f32 %v319, %v346
      %v359 = vadd.f32 %v320, %v346
      %v360 = vadd.f32 %v321, %v346
      %v361 = vadd.f32 %v322, %v346
      %v362 = vadd.f32 %v323, %v346
      %v363 = vadd.f32 %v324, %v346
      %v364 = vadd.f32 %v325, %v346
      %v365 = vadd.f32 %v326, %v346
      %v366 = vadd.f32 %v327, %v346
      %v367 = vadd.f32 %v328, %v346
      %v368 = vadd.f32 %v329, %v346
      %v369 = vadd.f32 %v330, %v346
      %v370 = vadd.f32 %v331, %v346
      %v371 = vadd.f32 %v332, %v346
      %v372 = vadd.f32 %v333, %v346
      %v373 = vadd.f32 %v334, %v346
      %v374 = vadd.f32 %v335, %v346
      %v375 = vadd.f32 %v336, %v346
      %v376 = vadd.f32 %v337, %v346
      %v377 = vadd.f32 %v338, %v346
      %v378 = vadd.f32 %v339, %v346
      %v379 = vadd.f32 %v340, %v346
      %v380 = vmax.f32 %v348, 0.0
      %v381 = vmax.f32 %v349, 0.0
      %v382 = vmax.f32 %v350, 0.0
      %v383 = vmax.f32 %v351, 0.0
      %v384 = vmax.f32 %v352, 0.0
      %v385 = vmax.f32 %v353, 0.0
      %v386 = vmax.f32 %v354, 0.0
      %v387 = vmax.f32 %v355, 0.0
      %v388 = vmax.f32 %v356, 0.0
      %v389 = vmax.f32 %v357, 0.0
      %v390 = vmax.f32 %v358, 0.0
      %v391 = vmax.f32 %v359, 0.0
      %v392 = vmax.f32 %v360, 0.0
      %v393 = vmax.f32 %v361, 0.0
      %v394 = vmax.f32 %v362, 0.0
      %v395 = vmax.f32 %v363, 0.0
      %v396 = vmax.f32 %v364, 0.0
      %v397 = vmax.f32 %v365, 0.0
      %v398 = vmax.f32 %v366, 0.0
      %v399 = vmax.f32 %v367, 0.0
      %v400 = vmax.f32 %v368, 0.0
      %v401 = vmax.f32 %v369, 0.0
      %v402 = vmax.f32 %v370, 0.0
      %v403 = vmax.f32 %v371, 0.0
      %v404 = vmax.f32 %v372, 0.0
      %v405 = vmax.f32 %v373, 0.0
      %v406 = vmax.f32 %v374, 0.0
      %v407 = vmax.f32 %v375, 0.0
      %v408 = vmax.f32 %v376, 0.0
      %v409 = vmax.f32 %v377, 0.0
      %v410 = vmax.f32 %v378, 0.0
      %v411 = vmax.f32 %v379, 0.0
      %412 = vst [vmem:[#allocation2] sm:$0xff] 0.0
      %413 = vst [vmem:[#allocation2 + $0x8] sm:$0xff] 0.0
      %414 = vst [vmem:[#allocation2 + $0x10] sm:$0x3] 0.0
      %s415 = scalar_lea.vmem [#allocation2], 408
      %416 = vst [vmem:[%s415] sm:$0xff] 0.0
      %417 = vst [vmem:[%s415 + $0x8] sm:$0xff] 0.0
      %418 = vst [vmem:[%s415 + $0x10] sm:$0x3] 0.0
      %419 = vst [vmem:[#allocation2] sm:$0x1] 0.0
      %420 = vst [vmem:[#allocation2 + $0x18] sm:$0x1] 0.0
      %421 = vst [vmem:[#allocation2 + $0x30] sm:$0x1] 0.0
      %422 = vst [vmem:[#allocation2 + $0x48] sm:$0x1] 0.0
      %423 = vst [vmem:[#allocation2 + $0x60] sm:$0x1] 0.0
      %424 = vst [vmem:[#allocation2 + $0x78] sm:$0x1] 0.0
      %425 = vst [vmem:[#allocation2 + $0x90] sm:$0x1] 0.0
      %426 = vst [vmem:[#allocation2 + $0xa8] sm:$0x1] 0.0
      %427 = vst [vmem:[#allocation2 + $0xc0] sm:$0x1] 0.0
      %428 = vst [vmem:[#allocation2 + $0xd8] sm:$0x1] 0.0
      %429 = vst [vmem:[#allocation2 + $0xf0] sm:$0x1] 0.0
      %430 = vst [vmem:[#allocation2 + $0x108] sm:$0x1] 0.0
      %431 = vst [vmem:[#allocation2 + $0x120] sm:$0x1] 0.0
      %432 = vst [vmem:[#allocation2 + $0x138] sm:$0x1] 0.0
      %433 = vst [vmem:[#allocation2 + $0x150] sm:$0x1] 0.0
      %434 = vst [vmem:[#allocation2 + $0x168] sm:$0x1] 0.0
      %435 = vst [vmem:[#allocation2 + $0x180] sm:$0x1] 0.0
      %436 = vst [vmem:[#allocation2 + $0x198] sm:$0x1] 0.0
      %437 = vst [vmem:[#allocation2 + $0x11] sm:$0x1] 0.0
      %438 = vst [vmem:[#allocation2 + $0x29] sm:$0x1] 0.0
      %439 = vst [vmem:[#allocation2 + $0x41] sm:$0x1] 0.0
      %440 = vst [vmem:[#allocation2 + $0x59] sm:$0x1] 0.0
      %441 = vst [vmem:[#allocation2 + $0x71] sm:$0x1] 0.0
      %442 = vst [vmem:[#allocation2 + $0x89] sm:$0x1] 0.0
      %443 = vst [vmem:[#allocation2 + $0xa1] sm:$0x1] 0.0
      %444 = vst [vmem:[#allocation2 + $0xb9] sm:$0x1] 0.0
      %445 = vst [vmem:[#allocation2 + $0xd1] sm:$0x1] 0.0
      %446 = vst [vmem:[#allocation2 + $0xe9] sm:$0x1] 0.0
      %447 = vst [vmem:[#allocation2 + $0x101] sm:$0x1] 0.0
      %448 = vst [vmem:[#allocation2 + $0x119] sm:$0x1] 0.0
      %449 = vst [vmem:[#allocation2 + $0x131] sm:$0x1] 0.0
      %450 = vst [vmem:[#allocation2 + $0x149] sm:$0x1] 0.0
      %451 = vst [vmem:[#allocation2 + $0x161] sm:$0x1] 0.0
      %452 = vst [vmem:[#allocation2 + $0x179] sm:$0x1] 0.0
      %453 = vst [vmem:[#allocation2 + $0x191] sm:$0x1] 0.0
      %454 = vst [vmem:[#allocation2 + $0x1a9] sm:$0x1] 0.0
      %s455 = scalar_lea.vmem [#allocation2], 24
      %456 = vst [vmem:[%s455 + $0x1] sm:$0xff] %v380
      %457 = vst [vmem:[%s455 + $0x9] sm:$0xff] %v381
      %458 = vst [vmem:[%s455 + $0x19] sm:$0xff] %v382
      %459 = vst [vmem:[%s455 + $0x21] sm:$0xff] %v383
      %460 = vst [vmem:[%s455 + $0x31] sm:$0xff] %v384
      %461 = vst [vmem:[%s455 + $0x39] sm:$0xff] %v385
      %462 = vst [vmem:[%s455 + $0x49] sm:$0xff] %v386
      %463 = vst [vmem:[%s455 + $0x51] sm:$0xff] %v387
      %464 = vst [vmem:[%s455 + $0x61] sm:$0xff] %v388
      %465 = vst [vmem:[%s455 + $0x69] sm:$0xff] %v389
      %466 = vst [vmem:[%s455 + $0x79] sm:$0xff] %v390
      %467 = vst [vmem:[%s455 + $0x81] sm:$0xff] %v391
      %468 = vst [vmem:[%s455 + $0x91] sm:$0xff] %v392
      %469 = vst [vmem:[%s455 + $0x99] sm:$0xff] %v393
      %470 = vst [vmem:[%s455 + $0xa9] sm:$0xff] %v394
      %471 = vst [vmem:[%s455 + $0xb1] sm:$0xff] %v395
      %472 = vst [vmem:[%s455 + $0xc1] sm:$0xff] %v396
      %473 = vst [vmem:[%s455 + $0xc9] sm:$0xff] %v397
      %474 = vst [vmem:[%s455 + $0xd9] sm:$0xff] %v398
      %475 = vst [vmem:[%s455 + $0xe1] sm:$0xff] %v399
      %476 = vst [vmem:[%s455 + $0xf1] sm:$0xff] %v400
      %477 = vst [vmem:[%s455 + $0xf9] sm:$0xff] %v401
      %478 = vst [vmem:[%s455 + $0x109] sm:$0xff] %v402
      %479 = vst [vmem:[%s455 + $0x111] sm:$0xff] %v403
      %480 = vst [vmem:[%s455 + $0x121] sm:$0xff] %v404
      %481 = vst [vmem:[%s455 + $0x129] sm:$0xff] %v405
      %482 = vst [vmem:[%s455 + $0x139] sm:$0xff] %v406
      %483 = vst [vmem:[%s455 + $0x141] sm:$0xff] %v407
      %484 = vst [vmem:[%s455 + $0x151] sm:$0xff] %v408
      %485 = vst [vmem:[%s455 + $0x159] sm:$0xff] %v409
      %486 = vst [vmem:[%s455 + $0x169] sm:$0xff] %v410
      %487 = vst [vmem:[%s455 + $0x171] sm:$0xff] %v411
      %v488 = vld [vmem:[#allocation2] sm:$0xff]
      %v489 = vld [vmem:[#allocation2 + $0x8] sm:$0xff]
      %v490 = vld [vmem:[#allocation2 + $0x18] sm:$0xff]
      %v491 = vld [vmem:[#allocation2 + $0x20] sm:$0xff]
      %v492 = vld [vmem:[#allocation2 + $0x30] sm:$0xff]
      %v493 = vld [vmem:[#allocation2 + $0x38] sm:$0xff]
      %v494 = vld [vmem:[#allocation2 + $0x48] sm:$0xff]
      %v495 = vld [vmem:[#allocation2 + $0x50] sm:$0xff]
      %v496 = vld [vmem:[#allocation2 + $0x60] sm:$0xff]
      %v497 = vld [vmem:[#allocation2 + $0x68] sm:$0xff]
      %v498 = vld [vmem:[#allocation2 + $0x78] sm:$0xff]
      %v499 = vld [vmem:[#allocation2 + $0x80] sm:$0xff]
      %v500 = vld [vmem:[#allocation2 + $0x90] sm:$0xff]
      %v501 = vld [vmem:[#allocation2 + $0x98] sm:$0xff]
      %v502 = vld [vmem:[#allocation2 + $0xa8] sm:$0xff]
      %v503 = vld [vmem:[#allocation2 + $0xb0] sm:$0xff]
      %v504 = vld [vmem:[#allocation2 + $0xc0] sm:$0xff]
      %v505 = vld [vmem:[#allocation2 + $0xc8] sm:$0xff]
      %v506 = vld [vmem:[#allocation2 + $0xd8] sm:$0xff]
      %v507 = vld [vmem:[#allocation2 + $0xe0] sm:$0xff]
      %v508 = vld [vmem:[#allocation2 + $0xf0] sm:$0xff]
      %v509 = vld [vmem:[#allocation2 + $0xf8] sm:$0xff]
      %v510 = vld [vmem:[#allocation2 + $0x108] sm:$0xff]
      %v511 = vld [vmem:[#allocation2 + $0x110] sm:$0xff]
      %v512 = vld [vmem:[#allocation2 + $0x120] sm:$0xff]
      %v513 = vld [vmem:[#allocation2 + $0x128] sm:$0xff]
      %v514 = vld [vmem:[#allocation2 + $0x138] sm:$0xff]
      %v515 = vld [vmem:[#allocation2 + $0x140] sm:$0xff]
      %v516 = vld [vmem:[#allocation2 + $0x150] sm:$0xff]
      %v517 = vld [vmem:[#allocation2 + $0x158] sm:$0xff]
      %v518 = vld [vmem:[#allocation2 + $0x168] sm:$0xff]
      %v519 = vld [vmem:[#allocation2 + $0x170] sm:$0xff]
      %v520 = vld [vmem:[#allocation2 + $0x1] sm:$0xff]
      %v521 = vld [vmem:[#allocation2 + $0x9] sm:$0xff]
      %v522 = vld [vmem:[#allocation2 + $0x19] sm:$0xff]
      %v523 = vld [vmem:[#allocation2 + $0x21] sm:$0xff]
      %v524 = vld [vmem:[#allocation2 + $0x31] sm:$0xff]
      %v525 = vld [vmem:[#allocation2 + $0x39] sm:$0xff]
      %v526 = vld [vmem:[#allocation2 + $0x49] sm:$0xff]
      %v527 = vld [vmem:[#allocation2 + $0x51] sm:$0xff]
      %v528 = vld [vmem:[#allocation2 + $0x61] sm:$0xff]
      %v529 = vld [vmem:[#allocation2 + $0x69] sm:$0xff]
      %v530 = vld [vmem:[#allocation2 + $0x79] sm:$0xff]
      %v531 = vld [vmem:[#allocation2 + $0x81] sm:$0xff]
      %v532 = vld [vmem:[#allocation2 + $0x91] sm:$0xff]
      %v533 = vld [vmem:[#allocation2 + $0x99] sm:$0xff]
      %v534 = vld [vmem:[#allocation2 + $0xa9] sm:$0xff]
      %v535 = vld [vmem:[#allocation2 + $0xb1] sm:$0xff]
      %v536 = vld [vmem:[#allocation2 + $0xc1] sm:$0xff]
      %v537 = vld [vmem:[#allocation2 + $0xc9] sm:$0xff]
      %v538 = vld [vmem:[#allocation2 + $0xd9] sm:$0xff]
      %v539 = vld [vmem:[#allocation2 + $0xe1] sm:$0xff]
      %v540 = vld [vmem:[#allocation2 + $0xf1] sm:$0xff]
      %v541 = vld [vmem:[#allocation2 + $0xf9] sm:$0xff]
      %v542 = vld [vmem:[#allocation2 + $0x109] sm:$0xff]
      %v543 = vld [vmem:[#allocation2 + $0x111] sm:$0xff]
      %v544 = vld [vmem:[#allocation2 + $0x121] sm:$0xff]
      %v545 = vld [vmem:[#allocation2 + $0x129] sm:$0xff]
      %v546 = vld [vmem:[#allocation2 + $0x139] sm:$0xff]
      %v547 = vld [vmem:[#allocation2 + $0x141] sm:$0xff]
      %v548 = vld [vmem:[#allocation2 + $0x151] sm:$0xff]
      %v549 = vld [vmem:[#allocation2 + $0x159] sm:$0xff]
      %v550 = vld [vmem:[#allocation2 + $0x169] sm:$0xff]
      %v551 = vld [vmem:[#allocation2 + $0x171] sm:$0xff]
      %v552 = vld [vmem:[#allocation2 + $0x2] sm:$0xff]
      %v553 = vld [vmem:[#allocation2 + $0xa] sm:$0xff]
      %v554 = vld [vmem:[#allocation2 + $0x1a] sm:$0xff]
      %v555 = vld [vmem:[#allocation2 + $0x22] sm:$0xff]
      %v556 = vld [vmem:[#allocation2 + $0x32] sm:$0xff]
      %v557 = vld [vmem:[#allocation2 + $0x3a] sm:$0xff]
      %v558 = vld [vmem:[#allocation2 + $0x4a] sm:$0xff]
      %v559 = vld [vmem:[#allocation2 + $0x52] sm:$0xff]
      %v560 = vld [vmem:[#allocation2 + $0x62] sm:$0xff]
      %v561 = vld [vmem:[#allocation2 + $0x6a] sm:$0xff]
      %v562 = vld [vmem:[#allocation2 + $0x7a] sm:$0xff]
      %v563 = vld [vmem:[#allocation2 + $0x82] sm:$0xff]
      %v564 = vld [vmem:[#allocation2 + $0x92] sm:$0xff]
      %v565 = vld [vmem:[#allocation2 + $0x9a] sm:$0xff]
      %v566 = vld [vmem:[#allocation2 + $0xaa] sm:$0xff]
      %v567 = vld [vmem:[#allocation2 + $0xb2] sm:$0xff]
      %v568 = vld [vmem:[#allocation2 + $0xc2] sm:$0xff]
      %v569 = vld [vmem:[#allocation2 + $0xca] sm:$0xff]
      %v570 = vld [vmem:[#allocation2 + $0xda] sm:$0xff]
      %v571 = vld [vmem:[#allocation2 + $0xe2] sm:$0xff]
      %v572 = vld [vmem:[#allocation2 + $0xf2] sm:$0xff]
      %v573 = vld [vmem:[#allocation2 + $0xfa] sm:$0xff]
      %v574 = vld [vmem:[#allocation2 + $0x10a] sm:$0xff]
      %v575 = vld [vmem:[#allocation2 + $0x112] sm:$0xff]
      %v576 = vld [vmem:[#allocation2 + $0x122] sm:$0xff]
      %v577 = vld [vmem:[#allocation2 + $0x12a] sm:$0xff]
      %v578 = vld [vmem:[#allocation2 + $0x13a] sm:$0xff]
      %v579 = vld [vmem:[#allocation2 + $0x142] sm:$0xff]
      %v580 = vld [vmem:[#allocation2 + $0x152] sm:$0xff]
      %v581 = vld [vmem:[#allocation2 + $0x15a] sm:$0xff]
      %v582 = vld [vmem:[#allocation2 + $0x16a] sm:$0xff]
      %v583 = vld [vmem:[#allocation2 + $0x172] sm:$0xff]
      %v584 = vld [vmem:[%s455] sm:$0xff]
      %v585 = vld [vmem:[%s455 + $0x8] sm:$0xff]
      %v586 = vld [vmem:[%s455 + $0x18] sm:$0xff]
      %v587 = vld [vmem:[%s455 + $0x20] sm:$0xff]
      %v588 = vld [vmem:[%s455 + $0x30] sm:$0xff]
      %v589 = vld [vmem:[%s455 + $0x38] sm:$0xff]
      %v590 = vld [vmem:[%s455 + $0x48] sm:$0xff]
      %v591 = vld [vmem:[%s455 + $0x50] sm:$0xff]
      %v592 = vld [vmem:[%s455 + $0x60] sm:$0xff]
      %v593 = vld [vmem:[%s455 + $0x68] sm:$0xff]
      %v594 = vld [vmem:[%s455 + $0x78] sm:$0xff]
      %v595 = vld [vmem:[%s455 + $0x80] sm:$0xff]
      %v596 = vld [vmem:[%s455 + $0x90] sm:$0xff]
      %v597 = vld [vmem:[%s455 + $0x98] sm:$0xff]
      %v598 = vld [vmem:[%s455 + $0xa8] sm:$0xff]
      %v599 = vld [vmem:[%s455 + $0xb0] sm:$0xff]
      %v600 = vld [vmem:[%s455 + $0xc0] sm:$0xff]
      %v601 = vld [vmem:[%s455 + $0xc8] sm:$0xff]
      %v602 = vld [vmem:[%s455 + $0xd8] sm:$0xff]
      %v603 = vld [vmem:[%s455 + $0xe0] sm:$0xff]
      %v604 = vld [vmem:[%s455 + $0xf0] sm:$0xff]
      %v605 = vld [vmem:[%s455 + $0xf8] sm:$0xff]
      %v606 = vld [vmem:[%s455 + $0x108] sm:$0xff]
      %v607 = vld [vmem:[%s455 + $0x110] sm:$0xff]
      %v608 = vld [vmem:[%s455 + $0x120] sm:$0xff]
      %v609 = vld [vmem:[%s455 + $0x128] sm:$0xff]
      %v610 = vld [vmem:[%s455 + $0x138] sm:$0xff]
      %v611 = vld [vmem:[%s455 + $0x140] sm:$0xff]
      %v612 = vld [vmem:[%s455 + $0x150] sm:$0xff]
      %v613 = vld [vmem:[%s455 + $0x158] sm:$0xff]
      %v614 = vld [vmem:[%s455 + $0x168] sm:$0xff]
      %v615 = vld [vmem:[%s455 + $0x170] sm:$0xff]
      %v616 = vld [vmem:[%s455 + $0x1] sm:$0xff]
      %v617 = vld [vmem:[%s455 + $0x9] sm:$0xff]
      %v618 = vld [vmem:[%s455 + $0x19] sm:$0xff]
      %v619 = vld [vmem:[%s455 + $0x21] sm:$0xff]
      %v620 = vld [vmem:[%s455 + $0x31] sm:$0xff]
      %v621 = vld [vmem:[%s455 + $0x39] sm:$0xff]
      %v622 = vld [vmem:[%s455 + $0x49] sm:$0xff]
      %v623 = vld [vmem:[%s455 + $0x51] sm:$0xff]
      %v624 = vld [vmem:[%s455 + $0x61] sm:$0xff]
      %v625 = vld [vmem:[%s455 + $0x69] sm:$0xff]
      %v626 = vld [vmem:[%s455 + $0x79] sm:$0xff]
      %v627 = vld [vmem:[%s455 + $0x81] sm:$0xff]
      %v628 = vld [vmem:[%s455 + $0x91] sm:$0xff]
      %v629 = vld [vmem:[%s455 + $0x99] sm:$0xff]
      %v630 = vld [vmem:[%s455 + $0xa9] sm:$0xff]
      %v631 = vld [vmem:[%s455 + $0xb1] sm:$0xff]
      %v632 = vld [vmem:[%s455 + $0xc1] sm:$0xff]
      %v633 = vld [vmem:[%s455 + $0xc9] sm:$0xff]
      %v634 = vld [vmem:[%s455 + $0xd9] sm:$0xff]
      %v635 = vld [vmem:[%s455 + $0xe1] sm:$0xff]
      %v636 = vld [vmem:[%s455 + $0xf1] sm:$0xff]
      %v637 = vld [vmem:[%s455 + $0xf9] sm:$0xff]
      %v638 = vld [vmem:[%s455 + $0x109] sm:$0xff]
      %v639 = vld [vmem:[%s455 + $0x111] sm:$0xff]
      %v640 = vld [vmem:[%s455 + $0x121] sm:$0xff]
      %v641 = vld [vmem:[%s455 + $0x129] sm:$0xff]
      %v642 = vld [vmem:[%s455 + $0x139] sm:$0xff]
      %v643 = vld [vmem:[%s455 + $0x141] sm:$0xff]
      %v644 = vld [vmem:[%s455 + $0x151] sm:$0xff]
      %v645 = vld [vmem:[%s455 + $0x159] sm:$0xff]
      %v646 = vld [vmem:[%s455 + $0x169] sm:$0xff]
      %v647 = vld [vmem:[%s455 + $0x171] sm:$0xff]
      %v648 = vld [vmem:[%s455 + $0x2] sm:$0xff]
      %v649 = vld [vmem:[%s455 + $0xa] sm:$0xff]
      %v650 = vld [vmem:[%s455 + $0x1a] sm:$0xff]
      %v651 = vld [vmem:[%s455 + $0x22] sm:$0xff]
      %v652 = vld [vmem:[%s455 + $0x32] sm:$0xff]
      %v653 = vld [vmem:[%s455 + $0x3a] sm:$0xff]
      %v654 = vld [vmem:[%s455 + $0x4a] sm:$0xff]
      %v655 = vld [vmem:[%s455 + $0x52] sm:$0xff]
      %v656 = vld [vmem:[%s455 + $0x62] sm:$0xff]
      %v657 = vld [vmem:[%s455 + $0x6a] sm:$0xff]
      %v658 = vld [vmem:[%s455 + $0x7a] sm:$0xff]
      %v659 = vld [vmem:[%s455 + $0x82] sm:$0xff]
      %v660 = vld [vmem:[%s455 + $0x92] sm:$0xff]
      %v661 = vld [vmem:[%s455 + $0x9a] sm:$0xff]
      %v662 = vld [vmem:[%s455 + $0xaa] sm:$0xff]
      %v663 = vld [vmem:[%s455 + $0xb2] sm:$0xff]
      %v664 = vld [vmem:[%s455 + $0xc2] sm:$0xff]
      %v665 = vld [vmem:[%s455 + $0xca] sm:$0xff]
      %v666 = vld [vmem:[%s455 + $0xda] sm:$0xff]
      %v667 = vld [vmem:[%s455 + $0xe2] sm:$0xff]
      %v668 = vld [vmem:[%s455 + $0xf2] sm:$0xff]
      %v669 = vld [vmem:[%s455 + $0xfa] sm:$0xff]
      %v670 = vld [vmem:[%s455 + $0x10a] sm:$0xff]
      %v671 = vld [vmem:[%s455 + $0x112] sm:$0xff]
      %v672 = vld [vmem:[%s455 + $0x122] sm:$0xff]
      %v673 = vld [vmem:[%s455 + $0x12a] sm:$0xff]
      %v674 = vld [vmem:[%s455 + $0x13a] sm:$0xff]
      %v675 = vld [vmem:[%s455 + $0x142] sm:$0xff]
      %v676 = vld [vmem:[%s455 + $0x152] sm:$0xff]
      %v677 = vld [vmem:[%s455 + $0x15a] sm:$0xff]
      %v678 = vld [vmem:[%s455 + $0x16a] sm:$0xff]
      %v679 = vld [vmem:[%s455 + $0x172] sm:$0xff]
      %s680 = scalar_lea.vmem [#allocation2], 48
      %v681 = vld [vmem:[%s680] sm:$0xff]
      %v682 = vld [vmem:[%s680 + $0x8] sm:$0xff]
      %v683 = vld [vmem:[%s680 + $0x18] sm:$0xff]
      %v684 = vld [vmem:[%s680 + $0x20] sm:$0xff]
      %v685 = vld [vmem:[%s680 + $0x30] sm:$0xff]
      %v686 = vld [vmem:[%s680 + $0x38] sm:$0xff]
      %v687 = vld [vmem:[%s680 + $0x48] sm:$0xff]
      %v688 = vld [vmem:[%s680 + $0x50] sm:$0xff]
      %v689 = vld [vmem:[%s680 + $0x60] sm:$0xff]
      %v690 = vld [vmem:[%s680 + $0x68] sm:$0xff]
      %v691 = vld [vmem:[%s680 + $0x78] sm:$0xff]
      %v692 = vld [vmem:[%s680 + $0x80] sm:$0xff]
      %v693 = vld [vmem:[%s680 + $0x90] sm:$0xff]
      %v694 = vld [vmem:[%s680 + $0x98] sm:$0xff]
      %v695 = vld [vmem:[%s680 + $0xa8] sm:$0xff]
      %v696 = vld [vmem:[%s680 + $0xb0] sm:$0xff]
      %v697 = vld [vmem:[%s680 + $0xc0] sm:$0xff]
      %v698 = vld [vmem:[%s680 + $0xc8] sm:$0xff]
      %v699 = vld [vmem:[%s680 + $0xd8] sm:$0xff]
      %v700 = vld [vmem:[%s680 + $0xe0] sm:$0xff]
      %v701 = vld [vmem:[%s680 + $0xf0] sm:$0xff]
      %v702 = vld [vmem:[%s680 + $0xf8] sm:$0xff]
      %v703 = vld [vmem:[%s680 + $0x108] sm:$0xff]
      %v704 = vld [vmem:[%s680 + $0x110] sm:$0xff]
      %v705 = vld [vmem:[%s680 + $0x120] sm:$0xff]
      %v706 = vld [vmem:[%s680 + $0x128] sm:$0xff]
      %v707 = vld [vmem:[%s680 + $0x138] sm:$0xff]
      %v708 = vld [vmem:[%s680 + $0x140] sm:$0xff]
      %v709 = vld [vmem:[%s680 + $0x150] sm:$0xff]
      %v710 = vld [vmem:[%s680 + $0x158] sm:$0xff]
      %v711 = vld [vmem:[%s680 + $0x168] sm:$0xff]
      %v712 = vld [vmem:[%s680 + $0x170] sm:$0xff]
      %v713 = vld [vmem:[%s680 + $0x1] sm:$0xff]
      %v714 = vld [vmem:[%s680 + $0x9] sm:$0xff]
      %v715 = vld [vmem:[%s680 + $0x19] sm:$0xff]
      %v716 = vld [vmem:[%s680 + $0x21] sm:$0xff]
      %v717 = vld [vmem:[%s680 + $0x31] sm:$0xff]
      %v718 = vld [vmem:[%s680 + $0x39] sm:$0xff]
      %v719 = vld [vmem:[%s680 + $0x49] sm:$0xff]
      %v720 = vld [vmem:[%s680 + $0x51] sm:$0xff]
      %v721 = vld [vmem:[%s680 + $0x61] sm:$0xff]
      %v722 = vld [vmem:[%s680 + $0x69] sm:$0xff]
      %v723 = vld [vmem:[%s680 + $0x79] sm:$0xff]
      %v724 = vld [vmem:[%s680 + $0x81] sm:$0xff]
      %v725 = vld [vmem:[%s680 + $0x91] sm:$0xff]
      %v726 = vld [vmem:[%s680 + $0x99] sm:$0xff]
      %v727 = vld [vmem:[%s680 + $0xa9] sm:$0xff]
      %v728 = vld [vmem:[%s680 + $0xb1] sm:$0xff]
      %v729 = vld [vmem:[%s680 + $0xc1] sm:$0xff]
      %v730 = vld [vmem:[%s680 + $0xc9] sm:$0xff]
      %v731 = vld [vmem:[%s680 + $0xd9] sm:$0xff]
      %v732 = vld [vmem:[%s680 + $0xe1] sm:$0xff]
      %v733 = vld [vmem:[%s680 + $0xf1] sm:$0xff]
      %v734 = vld [vmem:[%s680 + $0xf9] sm:$0xff]
      %v735 = vld [vmem:[%s680 + $0x109] sm:$0xff]
      %v736 = vld [vmem:[%s680 + $0x111] sm:$0xff]
      %v737 = vld [vmem:[%s680 + $0x121] sm:$0xff]
      %v738 = vld [vmem:[%s680 + $0x129] sm:$0xff]
      %v739 = vld [vmem:[%s680 + $0x139] sm:$0xff]
      %v740 = vld [vmem:[%s680 + $0x141] sm:$0xff]
      %v741 = vld [vmem:[%s680 + $0x151] sm:$0xff]
      %v742 = vld [vmem:[%s680 + $0x159] sm:$0xff]
      %v743 = vld [vmem:[%s680 + $0x169] sm:$0xff]
      %v744 = vld [vmem:[%s680 + $0x171] sm:$0xff]
      %v745 = vld [vmem:[%s680 + $0x2] sm:$0xff]
      %v746 = vld [vmem:[%s680 + $0xa] sm:$0xff]
      %v747 = vld [vmem:[%s680 + $0x1a] sm:$0xff]
      %v748 = vld [vmem:[%s680 + $0x22] sm:$0xff]
      %v749 = vld [vmem:[%s680 + $0x32] sm:$0xff]
      %v750 = vld [vmem:[%s680 + $0x3a] sm:$0xff]
      %v751 = vld [vmem:[%s680 + $0x4a] sm:$0xff]
      %v752 = vld [vmem:[%s680 + $0x52] sm:$0xff]
      %v753 = vld [vmem:[%s680 + $0x62] sm:$0xff]
      %v754 = vld [vmem:[%s680 + $0x6a] sm:$0xff]
      %v755 = vld [vmem:[%s680 + $0x7a] sm:$0xff]
      %v756 = vld [vmem:[%s680 + $0x82] sm:$0xff]
      %v757 = vld [vmem:[%s680 + $0x92] sm:$0xff]
      %v758 = vld [vmem:[%s680 + $0x9a] sm:$0xff]
      %v759 = vld [vmem:[%s680 + $0xaa] sm:$0xff]
      %v760 = vld [vmem:[%s680 + $0xb2] sm:$0xff]
      %v761 = vld [vmem:[%s680 + $0xc2] sm:$0xff]
      %v762 = vld [vmem:[%s680 + $0xca] sm:$0xff]
      %v763 = vld [vmem:[%s680 + $0xda] sm:$0xff]
      %v764 = vld [vmem:[%s680 + $0xe2] sm:$0xff]
      %v765 = vld [vmem:[%s680 + $0xf2] sm:$0xff]
      %v766 = vld [vmem:[%s680 + $0xfa] sm:$0xff]
      %v767 = vld [vmem:[%s680 + $0x10a] sm:$0xff]
      %v768 = vld [vmem:[%s680 + $0x112] sm:$0xff]
      %v769 = vld [vmem:[%s680 + $0x122] sm:$0xff]
      %v770 = vld [vmem:[%s680 + $0x12a] sm:$0xff]
      %v771 = vld [vmem:[%s680 + $0x13a] sm:$0xff]
      %v772 = vld [vmem:[%s680 + $0x142] sm:$0xff]
      %v773 = vld [vmem:[%s680 + $0x152] sm:$0xff]
      %v774 = vld [vmem:[%s680 + $0x15a] sm:$0xff]
      %v775 = vld [vmem:[%s680 + $0x16a] sm:$0xff]
      %v776 = vld [vmem:[%s680 + $0x172] sm:$0xff]
      %v777 = vpack.c.bf16 %v489, %v488
      %v778 = vpack.c.bf16 %v521, %v520
      %v779 = vpack.c.bf16 %v553, %v552
      %v780 = vpack.c.bf16 %v585, %v584
      %v781 = vpack.c.bf16 %v617, %v616
      %v782 = vpack.c.bf16 %v649, %v648
      %v783 = vpack.c.bf16 %v682, %v681
      %v784 = vpack.c.bf16 %v714, %v713
      %v785 = vpack.c.bf16 %v746, %v745
      %v786 = vpack.c.bf16 %v491, %v490
      %v787 = vpack.c.bf16 %v523, %v522
      %v788 = vpack.c.bf16 %v555, %v554
      %v789 = vpack.c.bf16 %v587, %v586
      %v790 = vpack.c.bf16 %v619, %v618
      %v791 = vpack.c.bf16 %v651, %v650
      %v792 = vpack.c.bf16 %v684, %v683
      %v793 = vpack.c.bf16 %v716, %v715
      %v794 = vpack.c.bf16 %v748, %v747
      %v795 = vpack.c.bf16 %v493, %v492
      %v796 = vpack.c.bf16 %v525, %v524
      %v797 = vpack.c.bf16 %v557, %v556
      %v798 = vpack.c.bf16 %v589, %v588
      %v799 = vpack.c.bf16 %v621, %v620
      %v800 = vpack.c.bf16 %v653, %v652
      %v801 = vpack.c.bf16 %v686, %v685
      %v802 = vpack.c.bf16 %v718, %v717
      %v803 = vpack.c.bf16 %v750, %v749
      %v804 = vpack.c.bf16 %v495, %v494
      %v805 = vpack.c.bf16 %v527, %v526
      %v806 = vpack.c.bf16 %v559, %v558
      %v807 = vpack.c.bf16 %v591, %v590
      %v808 = vpack.c.bf16 %v623, %v622
      %v809 = vpack.c.bf16 %v655, %v654
      %v810 = vpack.c.bf16 %v688, %v687
      %v811 = vpack.c.bf16 %v720, %v719
      %v812 = vpack.c.bf16 %v752, %v751
      %v813 = vpack.c.bf16 %v497, %v496
      %v814 = vpack.c.bf16 %v529, %v528
      %v815 = vpack.c.bf16 %v561, %v560
      %v816 = vpack.c.bf16 %v593, %v592
      %v817 = vpack.c.bf16 %v625, %v624
      %v818 = vpack.c.bf16 %v657, %v656
      %v819 = vpack.c.bf16 %v690, %v689
      %v820 = vpack.c.bf16 %v722, %v721
      %v821 = vpack.c.bf16 %v754, %v753
      %v822 = vpack.c.bf16 %v499, %v498
      %v823 = vpack.c.bf16 %v531, %v530
      %v824 = vpack.c.bf16 %v563, %v562
      %v825 = vpack.c.bf16 %v595, %v594
      %v826 = vpack.c.bf16 %v627, %v626
      %v827 = vpack.c.bf16 %v659, %v658
      %v828 = vpack.c.bf16 %v692, %v691
      %v829 = vpack.c.bf16 %v724, %v723
      %v830 = vpack.c.bf16 %v756, %v755
      %v831 = vpack.c.bf16 %v501, %v500
      %v832 = vpack.c.bf16 %v533, %v532
      %v833 = vpack.c.bf16 %v565, %v564
      %v834 = vpack.c.bf16 %v597, %v596
      %v835 = vpack.c.bf16 %v629, %v628
      %v836 = vpack.c.bf16 %v661, %v660
      %v837 = vpack.c.bf16 %v694, %v693
      %v838 = vpack.c.bf16 %v726, %v725
      %v839 = vpack.c.bf16 %v758, %v757
      %v840 = vpack.c.bf16 %v503, %v502
      %v841 = vpack.c.bf16 %v535, %v534
      %v842 = vpack.c.bf16 %v567, %v566
      %v843 = vpack.c.bf16 %v599, %v598
      %v844 = vpack.c.bf16 %v631, %v630
      %v845 = vpack.c.bf16 %v663, %v662
      %v846 = vpack.c.bf16 %v696, %v695
      %v847 = vpack.c.bf16 %v728, %v727
      %v848 = vpack.c.bf16 %v760, %v759
      %v849 = vpack.c.bf16 %v505, %v504
      %v850 = vpack.c.bf16 %v537, %v536
      %v851 = vpack.c.bf16 %v569, %v568
      %v852 = vpack.c.bf16 %v601, %v600
      %v853 = vpack.c.bf16 %v633, %v632
      %v854 = vpack.c.bf16 %v665, %v664
      %v855 = vpack.c.bf16 %v698, %v697
      %v856 = vpack.c.bf16 %v730, %v729
      %v857 = vpack.c.bf16 %v762, %v761
      %v858 = vpack.c.bf16 %v507, %v506
      %v859 = vpack.c.bf16 %v539, %v538
      %v860 = vpack.c.bf16 %v571, %v570
      %v861 = vpack.c.bf16 %v603, %v602
      %v862 = vpack.c.bf16 %v635, %v634
      %v863 = vpack.c.bf16 %v667, %v666
      %v864 = vpack.c.bf16 %v700, %v699
      %v865 = vpack.c.bf16 %v732, %v731
      %v866 = vpack.c.bf16 %v764, %v763
      %v867 = vpack.c.bf16 %v509, %v508
      %v868 = vpack.c.bf16 %v541, %v540
      %v869 = vpack.c.bf16 %v573, %v572
      %v870 = vpack.c.bf16 %v605, %v604
      %v871 = vpack.c.bf16 %v637, %v636
      %v872 = vpack.c.bf16 %v669, %v668
      %v873 = vpack.c.bf16 %v702, %v701
      %v874 = vpack.c.bf16 %v734, %v733
      %v875 = vpack.c.bf16 %v766, %v765
      %v876 = vpack.c.bf16 %v511, %v510
      %v877 = vpack.c.bf16 %v543, %v542
      %v878 = vpack.c.bf16 %v575, %v574
      %v879 = vpack.c.bf16 %v607, %v606
      %v880 = vpack.c.bf16 %v639, %v638
      %v881 = vpack.c.bf16 %v671, %v670
      %v882 = vpack.c.bf16 %v704, %v703
      %v883 = vpack.c.bf16 %v736, %v735
      %v884 = vpack.c.bf16 %v768, %v767
      %v885 = vpack.c.bf16 %v513, %v512
      %v886 = vpack.c.bf16 %v545, %v544
      %v887 = vpack.c.bf16 %v577, %v576
      %v888 = vpack.c.bf16 %v609, %v608
      %v889 = vpack.c.bf16 %v641, %v640
      %v890 = vpack.c.bf16 %v673, %v672
      %v891 = vpack.c.bf16 %v706, %v705
      %v892 = vpack.c.bf16 %v738, %v737
      %v893 = vpack.c.bf16 %v770, %v769
      %v894 = vpack.c.bf16 %v515, %v514
      %v895 = vpack.c.bf16 %v547, %v546
      %v896 = vpack.c.bf16 %v579, %v578
      %v897 = vpack.c.bf16 %v611, %v610
      %v898 = vpack.c.bf16 %v643, %v642
      %v899 = vpack.c.bf16 %v675, %v674
      %v900 = vpack.c.bf16 %v708, %v707
      %v901 = vpack.c.bf16 %v740, %v739
      %v902 = vpack.c.bf16 %v772, %v771
      %v903 = vpack.c.bf16 %v517, %v516
      %v904 = vpack.c.bf16 %v549, %v548
      %v905 = vpack.c.bf16 %v581, %v580
      %v906 = vpack.c.bf16 %v613, %v612
      %v907 = vpack.c.bf16 %v645, %v644
      %v908 = vpack.c.bf16 %v677, %v676
      %v909 = vpack.c.bf16 %v710, %v709
      %v910 = vpack.c.bf16 %v742, %v741
      %v911 = vpack.c.bf16 %v774, %v773
      %v912 = vpack.c.bf16 %v519, %v518
      %v913 = vpack.c.bf16 %v551, %v550
      %v914 = vpack.c.bf16 %v583, %v582
      %v915 = vpack.c.bf16 %v615, %v614
      %v916 = vpack.c.bf16 %v647, %v646
      %v917 = vpack.c.bf16 %v679, %v678
      %v918 = vpack.c.bf16 %v712, %v711
      %v919 = vpack.c.bf16 %v744, %v743
      %v920 = vpack.c.bf16 %v776, %v775
      %v921 = vld [vmem:[%s3] sm:$0xf]
      %v922 = vld [vmem:[%s3 + $0x4] sm:$0xf]
      %v923 = vld [vmem:[%s3 + $0x8] sm:$0xf]
      %v924 = vld [vmem:[%s3 + $0xc] sm:$0xf]
      %v925 = vld [vmem:[%s3 + $0x10] sm:$0xf]
      %v926 = vld [vmem:[%s3 + $0x14] sm:$0xf]
      %v927 = vld [vmem:[%s3 + $0x18] sm:$0xf]
      %v928 = vld [vmem:[%s3 + $0x1c] sm:$0xf]
      %v929 = vld [vmem:[%s3 + $0x20] sm:$0xf]
      %v930 = vld [vmem:[%s3 + $0x24] sm:$0xf]
      %v931 = vld [vmem:[%s3 + $0x28] sm:$0xf]
      %v932 = vld [vmem:[%s3 + $0x2c] sm:$0xf]
      %v933 = vld [vmem:[%s3 + $0x30] sm:$0xf]
      %v934 = vld [vmem:[%s3 + $0x34] sm:$0xf]
      %v935 = vld [vmem:[%s3 + $0x38] sm:$0xf]
      %v936 = vld [vmem:[%s3 + $0x3c] sm:$0xf]
      %v937 = vld [vmem:[%s3 + $0x40] sm:$0xf]
      %v938 = vld [vmem:[%s3 + $0x44] sm:$0xf]
      %v939 = vld [vmem:[%s3 + $0x48] sm:$0xf]
      %v940 = vld [vmem:[%s3 + $0x4c] sm:$0xf]
      %v941 = vld [vmem:[%s3 + $0x50] sm:$0xf]
      %v942 = vld [vmem:[%s3 + $0x54] sm:$0xf]
      %v943 = vld [vmem:[%s3 + $0x58] sm:$0xf]
      %v944 = vld [vmem:[%s3 + $0x5c] sm:$0xf]
      %v945 = vld [vmem:[%s3 + $0x60] sm:$0xf]
      %v946 = vld [vmem:[%s3 + $0x64] sm:$0xf]
      %v947 = vld [vmem:[%s3 + $0x68] sm:$0xf]
      %v948 = vld [vmem:[%s3 + $0x6c] sm:$0xf]
      %v949 = vld [vmem:[%s3 + $0x70] sm:$0xf]
      %v950 = vld [vmem:[%s3 + $0x74] sm:$0xf]
      %v951 = vld [vmem:[%s3 + $0x78] sm:$0xf]
      %v952 = vld [vmem:[%s3 + $0x7c] sm:$0xf]
      %v953 = vld [vmem:[%s3 + $0x80] sm:$0xf]
      %v954 = vld [vmem:[%s3 + $0x84] sm:$0xf]
      %v955 = vld [vmem:[%s3 + $0x88] sm:$0xf]
      %v956 = vld [vmem:[%s3 + $0x8c] sm:$0xf]
      %v957 = vld [vmem:[%s3 + $0x90] sm:$0xf]
      %v958 = vld [vmem:[%s3 + $0x94] sm:$0xf]
      %v959 = vld [vmem:[%s3 + $0x98] sm:$0xf]
      %v960 = vld [vmem:[%s3 + $0x9c] sm:$0xf]
      %v961 = vld [vmem:[%s3 + $0xa0] sm:$0xf]
      %v962 = vld [vmem:[%s3 + $0xa4] sm:$0xf]
      %v963 = vld [vmem:[%s3 + $0xa8] sm:$0xf]
      %v964 = vld [vmem:[%s3 + $0xac] sm:$0xf]
      %v965 = vld [vmem:[%s3 + $0xb0] sm:$0xf]
      %v966 = vld [vmem:[%s3 + $0xb4] sm:$0xf]
      %v967 = vld [vmem:[%s3 + $0xb8] sm:$0xf]
      %v968 = vld [vmem:[%s3 + $0xbc] sm:$0xf]
      %v969 = vld [vmem:[%s3 + $0xc0] sm:$0xf]
      %v970 = vld [vmem:[%s3 + $0xc4] sm:$0xf]
      %v971 = vld [vmem:[%s3 + $0xc8] sm:$0xf]
      %v972 = vld [vmem:[%s3 + $0xcc] sm:$0xf]
      %v973 = vld [vmem:[%s3 + $0xd0] sm:$0xf]
      %v974 = vld [vmem:[%s3 + $0xd4] sm:$0xf]
      %v975 = vld [vmem:[%s3 + $0xd8] sm:$0xf]
      %v976 = vld [vmem:[%s3 + $0xdc] sm:$0xf]
      %v977 = vld [vmem:[%s3 + $0xe0] sm:$0xf]
      %v978 = vld [vmem:[%s3 + $0xe4] sm:$0xf]
      %v979 = vld [vmem:[%s3 + $0xe8] sm:$0xf]
      %v980 = vld [vmem:[%s3 + $0xec] sm:$0xf]
      %v981 = vld [vmem:[%s3 + $0xf0] sm:$0xf]
      %v982 = vld [vmem:[%s3 + $0xf4] sm:$0xf]
      %v983 = vld [vmem:[%s3 + $0xf8] sm:$0xf]
      %v984 = vld [vmem:[%s3 + $0xfc] sm:$0xf]
      %v985 = vld [vmem:[%s3 + $0x100] sm:$0xf]
      %v986 = vld [vmem:[%s3 + $0x104] sm:$0xf]
      %v987 = vld [vmem:[%s3 + $0x108] sm:$0xf]
      %v988 = vld [vmem:[%s3 + $0x10c] sm:$0xf]
      %v989 = vld [vmem:[%s3 + $0x110] sm:$0xf]
      %v990 = vld [vmem:[%s3 + $0x114] sm:$0xf]
      %v991 = vld [vmem:[%s3 + $0x118] sm:$0xf]
      %v992 = vld [vmem:[%s3 + $0x11c] sm:$0xf]
      %v993 = vld [vmem:[%s3 + $0x120] sm:$0xf]
      %v994 = vld [vmem:[%s3 + $0x124] sm:$0xf]
      %v995 = vld [vmem:[%s3 + $0x128] sm:$0xf]
      %v996 = vld [vmem:[%s3 + $0x12c] sm:$0xf]
      %v997 = vld [vmem:[%s3 + $0x130] sm:$0xf]
      %v998 = vld [vmem:[%s3 + $0x134] sm:$0xf]
      %v999 = vld [vmem:[%s3 + $0x138] sm:$0xf]
      %v1000 = vld [vmem:[%s3 + $0x13c] sm:$0xf]
      %v1001 = vld [vmem:[%s3 + $0x140] sm:$0xf]
      %v1002 = vld [vmem:[%s3 + $0x144] sm:$0xf]
      %v1003 = vld [vmem:[%s3 + $0x148] sm:$0xf]
      %v1004 = vld [vmem:[%s3 + $0x14c] sm:$0xf]
      %v1005 = vld [vmem:[%s3 + $0x150] sm:$0xf]
      %v1006 = vld [vmem:[%s3 + $0x154] sm:$0xf]
      %v1007 = vld [vmem:[%s3 + $0x158] sm:$0xf]
      %v1008 = vld [vmem:[%s3 + $0x15c] sm:$0xf]
      %v1009 = vld [vmem:[%s3 + $0x160] sm:$0xf]
      %v1010 = vld [vmem:[%s3 + $0x164] sm:$0xf]
      %v1011 = vld [vmem:[%s3 + $0x168] sm:$0xf]
      %v1012 = vld [vmem:[%s3 + $0x16c] sm:$0xf]
      %v1013 = vld [vmem:[%s3 + $0x170] sm:$0xf]
      %v1014 = vld [vmem:[%s3 + $0x174] sm:$0xf]
      %v1015 = vld [vmem:[%s3 + $0x178] sm:$0xf]
      %v1016 = vld [vmem:[%s3 + $0x17c] sm:$0xf]
      %v1017 = vld [vmem:[%s3 + $0x180] sm:$0xf]
      %v1018 = vld [vmem:[%s3 + $0x184] sm:$0xf]
      %v1019 = vld [vmem:[%s3 + $0x188] sm:$0xf]
      %v1020 = vld [vmem:[%s3 + $0x18c] sm:$0xf]
      %v1021 = vld [vmem:[%s3 + $0x190] sm:$0xf]
      %v1022 = vld [vmem:[%s3 + $0x194] sm:$0xf]
      %v1023 = vld [vmem:[%s3 + $0x198] sm:$0xf]
      %v1024 = vld [vmem:[%s3 + $0x19c] sm:$0xf]
      %v1025 = vld [vmem:[%s3 + $0x1a0] sm:$0xf]
      %v1026 = vld [vmem:[%s3 + $0x1a4] sm:$0xf]
      %v1027 = vld [vmem:[%s3 + $0x1a8] sm:$0xf]
      %v1028 = vld [vmem:[%s3 + $0x1ac] sm:$0xf]
      %v1029 = vld [vmem:[%s3 + $0x1b0] sm:$0xf]
      %v1030 = vld [vmem:[%s3 + $0x1b4] sm:$0xf]
      %v1031 = vld [vmem:[%s3 + $0x1b8] sm:$0xf]
      %v1032 = vld [vmem:[%s3 + $0x1bc] sm:$0xf]
      %v1033 = vld [vmem:[%s3 + $0x1c0] sm:$0xf]
      %v1034 = vld [vmem:[%s3 + $0x1c4] sm:$0xf]
      %v1035 = vld [vmem:[%s3 + $0x1c8] sm:$0xf]
      %v1036 = vld [vmem:[%s3 + $0x1cc] sm:$0xf]
      %v1037 = vld [vmem:[%s3 + $0x1d0] sm:$0xf]
      %v1038 = vld [vmem:[%s3 + $0x1d4] sm:$0xf]
      %v1039 = vld [vmem:[%s3 + $0x1d8] sm:$0xf]
      %v1040 = vld [vmem:[%s3 + $0x1dc] sm:$0xf]
      %v1041 = vld [vmem:[%s3 + $0x1e0] sm:$0xf]
      %v1042 = vld [vmem:[%s3 + $0x1e4] sm:$0xf]
      %v1043 = vld [vmem:[%s3 + $0x1e8] sm:$0xf]
      %v1044 = vld [vmem:[%s3 + $0x1ec] sm:$0xf]
      %v1045 = vld [vmem:[%s3 + $0x1f0] sm:$0xf]
      %v1046 = vld [vmem:[%s3 + $0x1f4] sm:$0xf]
      %v1047 = vld [vmem:[%s3 + $0x1f8] sm:$0xf]
      %v1048 = vld [vmem:[%s3 + $0x1fc] sm:$0xf]
      %v1049 = vld [vmem:[%s3 + $0x200] sm:$0xf]
      %v1050 = vld [vmem:[%s3 + $0x204] sm:$0xf]
      %v1051 = vld [vmem:[%s3 + $0x208] sm:$0xf]
      %v1052 = vld [vmem:[%s3 + $0x20c] sm:$0xf]
      %v1053 = vld [vmem:[%s3 + $0x210] sm:$0xf]
      %v1054 = vld [vmem:[%s3 + $0x214] sm:$0xf]
      %v1055 = vld [vmem:[%s3 + $0x218] sm:$0xf]
      %v1056 = vld [vmem:[%s3 + $0x21c] sm:$0xf]
      %v1057 = vld [vmem:[%s3 + $0x220] sm:$0xf]
      %v1058 = vld [vmem:[%s3 + $0x224] sm:$0xf]
      %v1059 = vld [vmem:[%s3 + $0x228] sm:$0xf]
      %v1060 = vld [vmem:[%s3 + $0x22c] sm:$0xf]
      %v1061 = vld [vmem:[%s3 + $0x230] sm:$0xf]
      %v1062 = vld [vmem:[%s3 + $0x234] sm:$0xf]
      %v1063 = vld [vmem:[%s3 + $0x238] sm:$0xf]
      %v1064 = vld [vmem:[%s3 + $0x23c] sm:$0xf]
      %v1209 = vunpack.c.l.b16 %v921
      %v1210 = vunpack.c.l.b16 %v922
      %v1211 = vunpack.c.l.b16 %v923
      %v1212 = vunpack.c.l.b16 %v924
      %v1213 = vunpack.c.l.b16 %v925
      %v1214 = vunpack.c.l.b16 %v926
      %v1215 = vunpack.c.l.b16 %v927
      %v1216 = vunpack.c.l.b16 %v928
      %v1217 = vunpack.c.l.b16 %v929
      %v1218 = vunpack.c.l.b16 %v930
      %v1219 = vunpack.c.l.b16 %v931
      %v1220 = vunpack.c.l.b16 %v932
      %v1221 = vunpack.c.l.b16 %v933
      %v1222 = vunpack.c.l.b16 %v934
      %v1223 = vunpack.c.l.b16 %v935
      %v1224 = vunpack.c.l.b16 %v936
      %v1225 = vunpack.c.l.b16 %v937
      %v1226 = vunpack.c.l.b16 %v938
      %v1227 = vunpack.c.l.b16 %v939
      %v1228 = vunpack.c.l.b16 %v940
      %v1229 = vunpack.c.l.b16 %v941
      %v1230 = vunpack.c.l.b16 %v942
      %v1231 = vunpack.c.l.b16 %v943
      %v1232 = vunpack.c.l.b16 %v944
      %v1233 = vunpack.c.l.b16 %v945
      %v1234 = vunpack.c.l.b16 %v946
      %v1235 = vunpack.c.l.b16 %v947
      %v1236 = vunpack.c.l.b16 %v948
      %v1237 = vunpack.c.l.b16 %v949
      %v1238 = vunpack.c.l.b16 %v950
      %v1239 = vunpack.c.l.b16 %v951
      %v1240 = vunpack.c.l.b16 %v952
      %v1241 = vunpack.c.l.b16 %v953
      %v1242 = vunpack.c.l.b16 %v954
      %v1243 = vunpack.c.l.b16 %v955
      %v1244 = vunpack.c.l.b16 %v956
      %v1245 = vunpack.c.l.b16 %v957
      %v1246 = vunpack.c.l.b16 %v958
      %v1247 = vunpack.c.l.b16 %v959
      %v1248 = vunpack.c.l.b16 %v960
      %v1249 = vunpack.c.l.b16 %v961
      %v1250 = vunpack.c.l.b16 %v962
      %v1251 = vunpack.c.l.b16 %v963
      %v1252 = vunpack.c.l.b16 %v964
      %v1253 = vunpack.c.l.b16 %v965
      %v1254 = vunpack.c.l.b16 %v966
      %v1255 = vunpack.c.l.b16 %v967
      %v1256 = vunpack.c.l.b16 %v968
      %v1257 = vunpack.c.l.b16 %v969
      %v1258 = vunpack.c.l.b16 %v970
      %v1259 = vunpack.c.l.b16 %v971
      %v1260 = vunpack.c.l.b16 %v972
      %v1261 = vunpack.c.l.b16 %v973
      %v1262 = vunpack.c.l.b16 %v974
      %v1263 = vunpack.c.l.b16 %v975
      %v1264 = vunpack.c.l.b16 %v976
      %v1265 = vunpack.c.l.b16 %v977
      %v1266 = vunpack.c.l.b16 %v978
      %v1267 = vunpack.c.l.b16 %v979
      %v1268 = vunpack.c.l.b16 %v980
      %v1269 = vunpack.c.l.b16 %v981
      %v1270 = vunpack.c.l.b16 %v982
      %v1271 = vunpack.c.l.b16 %v983
      %v1272 = vunpack.c.l.b16 %v984
      %v1273 = vunpack.c.l.b16 %v985
      %v1274 = vunpack.c.l.b16 %v986
      %v1275 = vunpack.c.l.b16 %v987
      %v1276 = vunpack.c.l.b16 %v988
      %v1277 = vunpack.c.l.b16 %v989
      %v1278 = vunpack.c.l.b16 %v990
      %v1279 = vunpack.c.l.b16 %v991
      %v1280 = vunpack.c.l.b16 %v992
      %v1281 = vunpack.c.l.b16 %v993
      %v1282 = vunpack.c.l.b16 %v994
      %v1283 = vunpack.c.l.b16 %v995
      %v1284 = vunpack.c.l.b16 %v996
      %v1285 = vunpack.c.l.b16 %v997
      %v1286 = vunpack.c.l.b16 %v998
      %v1287 = vunpack.c.l.b16 %v999
      %v1288 = vunpack.c.l.b16 %v1000
      %v1289 = vunpack.c.l.b16 %v1001
      %v1290 = vunpack.c.l.b16 %v1002
      %v1291 = vunpack.c.l.b16 %v1003
      %v1292 = vunpack.c.l.b16 %v1004
      %v1293 = vunpack.c.l.b16 %v1005
      %v1294 = vunpack.c.l.b16 %v1006
      %v1295 = vunpack.c.l.b16 %v1007
      %v1296 = vunpack.c.l.b16 %v1008
      %v1297 = vunpack.c.l.b16 %v1009
      %v1298 = vunpack.c.l.b16 %v1010
      %v1299 = vunpack.c.l.b16 %v1011
      %v1300 = vunpack.c.l.b16 %v1012
      %v1301 = vunpack.c.l.b16 %v1013
      %v1302 = vunpack.c.l.b16 %v1014
      %v1303 = vunpack.c.l.b16 %v1015
      %v1304 = vunpack.c.l.b16 %v1016
      %v1305 = vunpack.c.l.b16 %v1017
      %v1306 = vunpack.c.l.b16 %v1018
      %v1307 = vunpack.c.l.b16 %v1019
      %v1308 = vunpack.c.l.b16 %v1020
      %v1309 = vunpack.c.l.b16 %v1021
      %v1310 = vunpack.c.l.b16 %v1022
      %v1311 = vunpack.c.l.b16 %v1023
      %v1312 = vunpack.c.l.b16 %v1024
      %v1313 = vunpack.c.l.b16 %v1025
      %v1314 = vunpack.c.l.b16 %v1026
      %v1315 = vunpack.c.l.b16 %v1027
      %v1316 = vunpack.c.l.b16 %v1028
      %v1317 = vunpack.c.l.b16 %v1029
      %v1318 = vunpack.c.l.b16 %v1030
      %v1319 = vunpack.c.l.b16 %v1031
      %v1320 = vunpack.c.l.b16 %v1032
      %v1321 = vunpack.c.l.b16 %v1033
      %v1322 = vunpack.c.l.b16 %v1034
      %v1323 = vunpack.c.l.b16 %v1035
      %v1324 = vunpack.c.l.b16 %v1036
      %v1325 = vunpack.c.l.b16 %v1037
      %v1326 = vunpack.c.l.b16 %v1038
      %v1327 = vunpack.c.l.b16 %v1039
      %v1328 = vunpack.c.l.b16 %v1040
      %v1329 = vunpack.c.l.b16 %v1041
      %v1330 = vunpack.c.l.b16 %v1042
      %v1331 = vunpack.c.l.b16 %v1043
      %v1332 = vunpack.c.l.b16 %v1044
      %v1333 = vunpack.c.l.b16 %v1045
      %v1334 = vunpack.c.l.b16 %v1046
      %v1335 = vunpack.c.l.b16 %v1047
      %v1336 = vunpack.c.l.b16 %v1048
      %v1337 = vunpack.c.l.b16 %v1049
      %v1338 = vunpack.c.l.b16 %v1050
      %v1339 = vunpack.c.l.b16 %v1051
      %v1340 = vunpack.c.l.b16 %v1052
      %v1341 = vunpack.c.l.b16 %v1053
      %v1342 = vunpack.c.l.b16 %v1054
      %v1343 = vunpack.c.l.b16 %v1055
      %v1344 = vunpack.c.l.b16 %v1056
      %v1345 = vunpack.c.l.b16 %v1057
      %v1346 = vunpack.c.l.b16 %v1058
      %v1347 = vunpack.c.l.b16 %v1059
      %v1348 = vunpack.c.l.b16 %v1060
      %v1349 = vunpack.c.l.b16 %v1061
      %v1350 = vunpack.c.l.b16 %v1062
      %v1351 = vunpack.c.l.b16 %v1063
      %v1352 = vunpack.c.l.b16 %v1064
      %v1353 = vpack.c.b16 %v1210, %v1209
      %v1354 = vpack.c.b16 %v1212, %v1211
      %v1355 = vpack.c.b16 %v1214, %v1213
      %v1356 = vpack.c.b16 %v1216, %v1215
      %v1357 = vpack.c.b16 %v1218, %v1217
      %v1358 = vpack.c.b16 %v1220, %v1219
      %v1359 = vpack.c.b16 %v1222, %v1221
      %v1360 = vpack.c.b16 %v1224, %v1223
      %v1361 = vpack.c.b16 %v1226, %v1225
      %v1362 = vpack.c.b16 %v1228, %v1227
      %v1363 = vpack.c.b16 %v1230, %v1229
      %v1364 = vpack.c.b16 %v1232, %v1231
      %v1365 = vpack.c.b16 %v1234, %v1233
      %v1366 = vpack.c.b16 %v1236, %v1235
      %v1367 = vpack.c.b16 %v1238, %v1237
      %v1368 = vpack.c.b16 %v1240, %v1239
      %v1369 = vpack.c.b16 %v1242, %v1241
      %v1370 = vpack.c.b16 %v1244, %v1243
      %v1371 = vpack.c.b16 %v1246, %v1245
      %v1372 = vpack.c.b16 %v1248, %v1247
      %v1373 = vpack.c.b16 %v1250, %v1249
      %v1374 = vpack.c.b16 %v1252, %v1251
      %v1375 = vpack.c.b16 %v1254, %v1253
      %v1376 = vpack.c.b16 %v1256, %v1255
      %v1377 = vpack.c.b16 %v1258, %v1257
      %v1378 = vpack.c.b16 %v1260, %v1259
      %v1379 = vpack.c.b16 %v1262, %v1261
      %v1380 = vpack.c.b16 %v1264, %v1263
      %v1381 = vpack.c.b16 %v1266, %v1265
      %v1382 = vpack.c.b16 %v1268, %v1267
      %v1383 = vpack.c.b16 %v1270, %v1269
      %v1384 = vpack.c.b16 %v1272, %v1271
      %v1385 = vpack.c.b16 %v1274, %v1273
      %v1386 = vpack.c.b16 %v1276, %v1275
      %v1387 = vpack.c.b16 %v1278, %v1277
      %v1388 = vpack.c.b16 %v1280, %v1279
      %v1389 = vpack.c.b16 %v1282, %v1281
      %v1390 = vpack.c.b16 %v1284, %v1283
      %v1391 = vpack.c.b16 %v1286, %v1285
      %v1392 = vpack.c.b16 %v1288, %v1287
      %v1393 = vpack.c.b16 %v1290, %v1289
      %v1394 = vpack.c.b16 %v1292, %v1291
      %v1395 = vpack.c.b16 %v1294, %v1293
      %v1396 = vpack.c.b16 %v1296, %v1295
      %v1397 = vpack.c.b16 %v1298, %v1297
      %v1398 = vpack.c.b16 %v1300, %v1299
      %v1399 = vpack.c.b16 %v1302, %v1301
      %v1400 = vpack.c.b16 %v1304, %v1303
      %v1401 = vpack.c.b16 %v1306, %v1305
      %v1402 = vpack.c.b16 %v1308, %v1307
      %v1403 = vpack.c.b16 %v1310, %v1309
      %v1404 = vpack.c.b16 %v1312, %v1311
      %v1405 = vpack.c.b16 %v1314, %v1313
      %v1406 = vpack.c.b16 %v1316, %v1315
      %v1407 = vpack.c.b16 %v1318, %v1317
      %v1408 = vpack.c.b16 %v1320, %v1319
      %v1409 = vpack.c.b16 %v1322, %v1321
      %v1410 = vpack.c.b16 %v1324, %v1323
      %v1411 = vpack.c.b16 %v1326, %v1325
      %v1412 = vpack.c.b16 %v1328, %v1327
      %v1413 = vpack.c.b16 %v1330, %v1329
      %v1414 = vpack.c.b16 %v1332, %v1331
      %v1415 = vpack.c.b16 %v1334, %v1333
      %v1416 = vpack.c.b16 %v1336, %v1335
      %v1417 = vpack.c.b16 %v1338, %v1337
      %v1418 = vpack.c.b16 %v1340, %v1339
      %v1419 = vpack.c.b16 %v1342, %v1341
      %v1420 = vpack.c.b16 %v1344, %v1343
      %v1421 = vpack.c.b16 %v1346, %v1345
      %v1422 = vpack.c.b16 %v1348, %v1347
      %v1423 = vpack.c.b16 %v1350, %v1349
      %v1424 = vpack.c.b16 %v1352, %v1351
      %1497 = vmatprep.subr.bf16.mxu0 0
      %1498 = vmatpush1.bf16.msra.mxu0 %v1353
      %1499 = vmatprep.subr.bf16.mxu0 0
      %1500 = vmatpush1.bf16.msra.mxu0 %v1354
      %1501 = vmatprep.subr.bf16.mxu0 0
      %1502 = vmatpush1.bf16.msra.mxu0 %v1355
      %1503 = vmatprep.subr.bf16.mxu0 0
      %1504 = vmatpush1.bf16.msra.mxu0 %v1356
      %1505 = vmatprep.subr.bf16.mxu0 0
      %1506 = vmatpush1.bf16.msra.mxu0 %v1357
      %1507 = vmatprep.subr.bf16.mxu0 0
      %1508 = vmatpush1.bf16.msra.mxu0 %v1358
      %1509 = vmatprep.subr.bf16.mxu0 0
      %1510 = vmatpush1.bf16.msra.mxu0 %v1359
      %1511 = vmatprep.subr.bf16.mxu0 0
      %1512 = vmatpush1.bf16.msra.mxu0 %v1360
      %1513 = vmatprep.subr.bf16.mxu0 0
      %1514 = vmatpush1.bf16.msra.mxu0 %v1361
      %1515 = vmatprep.subr.bf16.mxu0 0
      %1516 = vmatpush1.bf16.msra.mxu0 %v1362
      %1517 = vmatprep.subr.bf16.mxu0 0
      %1518 = vmatpush1.bf16.msra.mxu0 %v1363
      %1519 = vmatprep.subr.bf16.mxu0 0
      %1520 = vmatpush1.bf16.msra.mxu0 %v1364
      %1521 = vmatprep.subr.bf16.mxu0 0
      %1522 = vmatpush1.bf16.msra.mxu0 %v1365
      %1523 = vmatprep.subr.bf16.mxu0 0
      %1524 = vmatpush1.bf16.msra.mxu0 %v1366
      %1525 = vmatprep.subr.bf16.mxu0 0
      %1526 = vmatpush1.bf16.msra.mxu0 %v1367
      %1527 = vmatprep.subr.bf16.mxu0 0
      %1528 = vmatpush1.bf16.msra.mxu0 %v1368
      %1529 = vmatprep.mubr.bf16.mxu0 %v778
      %1530 = vmatmul.mubr.bf16.gmra.mrb[0].mxu0 %v777
      %v1531 = vpop.f32.mrb[0].mxu0
      %v1532 = vadd.f32 0.0, %v1531
      %v1533 = vpop.f32.mrb[0].mxu0
      %v1534 = vpop.f32.mrb[0].mxu0
      %v1535 = vadd.f32 0.0, %v1534
      %v1536 = vpop.f32.mrb[0].mxu0
      %1537 = vmatprep.mubr.bf16.mxu0 %v787
      %1538 = vmatmul.mubr.bf16.gmra.mrb[0].mxu0 %v786
      %v1539 = vpop.f32.mrb[0].mxu0
      %v1540 = vadd.f32 0.0, %v1539
      %v1541 = vpop.f32.mrb[0].mxu0
      %v1542 = vpop.f32.mrb[0].mxu0
      %v1543 = vadd.f32 0.0, %v1542
      %v1544 = vpop.f32.mrb[0].mxu0
      %1545 = vmatprep.mubr.bf16.mxu0 %v796
      %1546 = vmatmul.mubr.bf16.gmra.mrb[0].mxu0 %v795
      %v1547 = vpop.f32.mrb[0].mxu0
      %v1548 = vadd.f32 0.0, %v1547
      %v1549 = vpop.f32.mrb[0].mxu0
      %v1550 = vpop.f32.mrb[0].mxu0
      %v1551 = vadd.f32 0.0, %v1550
      %v1552 = vpop.f32.mrb[0].mxu0
      %1553 = vmatprep.mubr.bf16.mxu0 %v805
      %1554 = vmatmul.mubr.bf16.gmra.mrb[0].mxu0 %v804
      %v1555 = vpop.f32.mrb[0].mxu0
      %v1556 = vadd.f32 0.0, %v1555
      %v1557 = vpop.f32.mrb[0].mxu0
      %v1558 = vpop.f32.mrb[0].mxu0
      %v1559 = vadd.f32 0.0, %v1558
      %v1560 = vpop.f32.mrb[0].mxu0
      %1561 = vmatprep.mubr.bf16.mxu0 %v814
      %1562 = vmatmul.mubr.bf16.gmra.mrb[0].mxu0 %v813
      %v1563 = vpop.f32.mrb[0].mxu0
      %v1564 = vadd.f32 0.0, %v1563
      %v1565 = vpop.f32.mrb[0].mxu0
      %v1566 = vpop.f32.mrb[0].mxu0
      %v1567 = vadd.f32 0.0, %v1566
      %v1568 = vpop.f32.mrb[0].mxu0
      %1569 = vmatprep.mubr.bf16.mxu0 %v823
      %1570 = vmatmul.mubr.bf16.gmra.mrb[0].mxu0 %v822
      %v1571 = vpop.f32.mrb[0].mxu0
      %v1572 = vadd.f32 0.0, %v1571
      %v1573 = vpop.f32.mrb[0].mxu0
      %v1574 = vpop.f32.mrb[0].mxu0
      %v1575 = vadd.f32 0.0, %v1574
      %v1576 = vpop.f32.mrb[0].mxu0
      %1577 = vmatprep.mubr.bf16.mxu0 %v832
      %1578 = vmatmul.mubr.bf16.gmra.mrb[0].mxu0 %v831
      %v1579 = vpop.f32.mrb[0].mxu0
      %v1580 = vadd.f32 0.0, %v1579
      %v1581 = vpop.f32.mrb[0].mxu0
      %v1582 = vpop.f32.mrb[0].mxu0
      %v1583 = vadd.f32 0.0, %v1582
      %v1584 = vpop.f32.mrb[0].mxu0
      %1585 = vmatprep.mubr.bf16.mxu0 %v841
      %1586 = vmatmul.mubr.bf16.gmra.mrb[0].mxu0 %v840
      %v1587 = vpop.f32.mrb[0].mxu0
      %v1588 = vadd.f32 0.0, %v1587
      %v1589 = vpop.f32.mrb[0].mxu0
      %v1590 = vpop.f32.mrb[0].mxu0
      %v1591 = vadd.f32 0.0, %v1590
      %v1592 = vpop.f32.mrb[0].mxu0
      %1593 = vmatprep.mubr.bf16.mxu0 %v850
      %1594 = vmatmul.mubr.bf16.gmra.mrb[0].mxu0 %v849
      %v1595 = vpop.f32.mrb[0].mxu0
      %v1596 = vadd.f32 0.0, %v1595
      %v1597 = vpop.f32.mrb[0].mxu0
      %v1598 = vpop.f32.mrb[0].mxu0
      %v1599 = vadd.f32 0.0, %v1598
      %v1600 = vpop.f32.mrb[0].mxu0
      %1601 = vmatprep.mubr.bf16.mxu0 %v859
      %1602 = vmatmul.mubr.bf16.gmra.mrb[0].mxu0 %v858
      %v1603 = vpop.f32.mrb[0].mxu0
      %v1604 = vadd.f32 0.0, %v1603
      %v1605 = vpop.f32.mrb[0].mxu0
      %v1606 = vpop.f32.mrb[0].mxu0
      %v1607 = vadd.f32 0.0, %v1606
      %v1608 = vpop.f32.mrb[0].mxu0
      %1609 = vmatprep.mubr.bf16.mxu0 %v868
      %1610 = vmatmul.mubr.bf16.gmra.mrb[0].mxu0 %v867
      %v1611 = vpop.f32.mrb[0].mxu0
      %v1612 = vadd.f32 0.0, %v1611
      %v1613 = vpop.f32.mrb[0].mxu0
      %v1614 = vpop.f32.mrb[0].mxu0
      %v1615 = vadd.f32 0.0, %v1614
      %v1616 = vpop.f32.mrb[0].mxu0
      %1617 = vmatprep.mubr.bf16.mxu0 %v877
      %1618 = vmatmul.mubr.bf16.gmra.mrb[0].mxu0 %v876
      %v1619 = vpop.f32.mrb[0].mxu0
      %v1620 = vadd.f32 0.0, %v1619
      %v1621 = vpop.f32.mrb[0].mxu0
      %v1622 = vpop.f32.mrb[0].mxu0
      %v1623 = vadd.f32 0.0, %v1622
      %v1624 = vpop.f32.mrb[0].mxu0
      %1625 = vmatprep.mubr.bf16.mxu0 %v886
      %1626 = vmatmul.mubr.bf16.gmra.mrb[0].mxu0 %v885
      %v1627 = vpop.f32.mrb[0].mxu0
      %v1628 = vadd.f32 0.0, %v1627
      %v1629 = vpop.f32.mrb[0].mxu0
      %v1630 = vpop.f32.mrb[0].mxu0
      %v1631 = vadd.f32 0.0, %v1630
      %v1632 = vpop.f32.mrb[0].mxu0
      %1633 = vmatprep.mubr.bf16.mxu0 %v895
      %1634 = vmatmul.mubr.bf16.gmra.mrb[0].mxu0 %v894
      %v1635 = vpop.f32.mrb[0].mxu0
      %v1636 = vadd.f32 0.0, %v1635
      %v1637 = vpop.f32.mrb[0].mxu0
      %v1638 = vpop.f32.mrb[0].mxu0
      %v1639 = vadd.f32 0.0, %v1638
      %v1640 = vpop.f32.mrb[0].mxu0
      %1641 = vmatprep.mubr.bf16.mxu0 %v904
      %1642 = vmatmul.mubr.bf16.gmra.mrb[0].mxu0 %v903
      %v1643 = vpop.f32.mrb[0].mxu0
      %v1644 = vadd.f32 0.0, %v1643
      %v1645 = vpop.f32.mrb[0].mxu0
      %v1646 = vpop.f32.mrb[0].mxu0
      %v1647 = vadd.f32 0.0, %v1646
      %v1648 = vpop.f32.mrb[0].mxu0
      %1649 = vmatprep.mubr.bf16.mxu0 %v913
      %1650 = vmatmul.mubr.bf16.gmra.mrb[0].mxu0 %v912
      %v1651 = vpop.f32.mrb[0].mxu0
      %v1652 = vadd.f32 0.0, %v1651
      %v1653 = vpop.f32.mrb[0].mxu0
      %v1654 = vpop.f32.mrb[0].mxu0
      %v1655 = vadd.f32 0.0, %v1654
      %v1656 = vpop.f32.mrb[0].mxu0
      %1657 = vdwg.mxu0
      %1658 = vmatprep.subr.bf16.mxu0 0
      %1659 = vmatpush1.bf16.msra.mxu0 %v1369
      %1660 = vmatprep.subr.bf16.mxu0 0
      %1661 = vmatpush1.bf16.msra.mxu0 %v1370
      %1662 = vmatprep.subr.bf16.mxu0 0
      %1663 = vmatpush1.bf16.msra.mxu0 %v1371
      %1664 = vmatprep.subr.bf16.mxu0 0
      %1665 = vmatpush1.bf16.msra.mxu0 %v1372
      %1666 = vmatprep.subr.bf16.mxu0 0
      %1667 = vmatpush1.bf16.msra.mxu0 %v1373
      %1668 = vmatprep.subr.bf16.mxu0 0
      %1669 = vmatpush1.bf16.msra.mxu0 %v1374
      %1670 = vmatprep.subr.bf16.mxu0 0
      %1671 = vmatpush1.bf16.msra.mxu0 %v1375
      %1672 = vmatprep.subr.bf16.mxu0 0
      %1673 = vmatpush1.bf16.msra.mxu0 %v1376
      %1674 = vmatprep.subr.bf16.mxu0 0
      %1675 = vmatpush1.bf16.msra.mxu0 %v1377
      %1676 = vmatprep.subr.bf16.mxu0 0
      %1677 = vmatpush1.bf16.msra.mxu0 %v1378
      %1678 = vmatprep.subr.bf16.mxu0 0
      %1679 = vmatpush1.bf16.msra.mxu0 %v1379
      %1680 = vmatprep.subr.bf16.mxu0 0
      %1681 = vmatpush1.bf16.msra.mxu0 %v1380
      %1682 = vmatprep.subr.bf16.mxu0 0
      %1683 = vmatpush1.bf16.msra.mxu0 %v1381
      %1684 = vmatprep.subr.bf16.mxu0 0
      %1685 = vmatpush1.bf16.msra.mxu0 %v1382
      %1686 = vmatprep.subr.bf16.mxu0 0
      %1687 = vmatpush1.bf16.msra.mxu0 %v1383
      %1688 = vmatprep.subr.bf16.mxu0 0
      %1689 = vmatpush1.bf16.msra.mxu0 %v1384
      %1690 = vmatprep.mubr.bf16.mxu0 %v780
      %1691 = vmatmul.mubr.bf16.gmra.mrb[0].mxu0 %v779
      %v1692 = vpop.f32.mrb[0].mxu0
      %v1693 = vadd.f32 %v1532, %v1692
      %v1694 = vpop.f32.mrb[0].mxu0
      %v1695 = vpop.f32.mrb[0].mxu0
      %v1696 = vadd.f32 %v1535, %v1695
      %v1697 = vpop.f32.mrb[0].mxu0
      %1698 = vmatprep.mubr.bf16.mxu0 %v789
      %1699 = vmatmul.mubr.bf16.gmra.mrb[0].mxu0 %v788
      %v1700 = vpop.f32.mrb[0].mxu0
      %v1701 = vadd.f32 %v1540, %v1700
      %v1702 = vpop.f32.mrb[0].mxu0
      %v1703 = vpop.f32.mrb[0].mxu0
      %v1704 = vadd.f32 %v1543, %v1703
      %v1705 = vpop.f32.mrb[0].mxu0
      %1706 = vmatprep.mubr.bf16.mxu0 %v798
      %1707 = vmatmul.mubr.bf16.gmra.mrb[0].mxu0 %v797
      %v1708 = vpop.f32.mrb[0].mxu0
      %v1709 = vadd.f32 %v1548, %v1708
      %v1710 = vpop.f32.mrb[0].mxu0
      %v1711 = vpop.f32.mrb[0].mxu0
      %v1712 = vadd.f32 %v1551, %v1711
      %v1713 = vpop.f32.mrb[0].mxu0
      %1714 = vmatprep.mubr.bf16.mxu0 %v807
      %1715 = vmatmul.mubr.bf16.gmra.mrb[0].mxu0 %v806
      %v1716 = vpop.f32.mrb[0].mxu0
      %v1717 = vadd.f32 %v1556, %v1716
      %v1718 = vpop.f32.mrb[0].mxu0
      %v1719 = vpop.f32.mrb[0].mxu0
      %v1720 = vadd.f32 %v1559, %v1719
      %v1721 = vpop.f32.mrb[0].mxu0
      %1722 = vmatprep.mubr.bf16.mxu0 %v816
      %1723 = vmatmul.mubr.bf16.gmra.mrb[0].mxu0 %v815
      %v1724 = vpop.f32.mrb[0].mxu0
      %v1725 = vadd.f32 %v1564, %v1724
      %v1726 = vpop.f32.mrb[0].mxu0
      %v1727 = vpop.f32.mrb[0].mxu0
      %v1728 = vadd.f32 %v1567, %v1727
      %v1729 = vpop.f32.mrb[0].mxu0
      %1730 = vmatprep.mubr.bf16.mxu0 %v825
      %1731 = vmatmul.mubr.bf16.gmra.mrb[0].mxu0 %v824
      %v1732 = vpop.f32.mrb[0].mxu0
      %v1733 = vadd.f32 %v1572, %v1732
      %v1734 = vpop.f32.mrb[0].mxu0
      %v1735 = vpop.f32.mrb[0].mxu0
      %v1736 = vadd.f32 %v1575, %v1735
      %v1737 = vpop.f32.mrb[0].mxu0
      %1738 = vmatprep.mubr.bf16.mxu0 %v834
      %1739 = vmatmul.mubr.bf16.gmra.mrb[0].mxu0 %v833
      %v1740 = vpop.f32.mrb[0].mxu0
      %v1741 = vadd.f32 %v1580, %v1740
      %v1742 = vpop.f32.mrb[0].mxu0
      %v1743 = vpop.f32.mrb[0].mxu0
      %v1744 = vadd.f32 %v1583, %v1743
      %v1745 = vpop.f32.mrb[0].mxu0
      %1746 = vmatprep.mubr.bf16.mxu0 %v843
      %1747 = vmatmul.mubr.bf16.gmra.mrb[0].mxu0 %v842
      %v1748 = vpop.f32.mrb[0].mxu0
      %v1749 = vadd.f32 %v1588, %v1748
      %v1750 = vpop.f32.mrb[0].mxu0
      %v1751 = vpop.f32.mrb[0].mxu0
      %v1752 = vadd.f32 %v1591, %v1751
      %v1753 = vpop.f32.mrb[0].mxu0
      %1754 = vmatprep.mubr.bf16.mxu0 %v852
      %1755 = vmatmul.mubr.bf16.gmra.mrb[0].mxu0 %v851
      %v1756 = vpop.f32.mrb[0].mxu0
      %v1757 = vadd.f32 %v1596, %v1756
      %v1758 = vpop.f32.mrb[0].mxu0
      %v1759 = vpop.f32.mrb[0].mxu0
      %v1760 = vadd.f32 %v1599, %v1759
      %v1761 = vpop.f32.mrb[0].mxu0
      %1762 = vmatprep.mubr.bf16.mxu0 %v861
      %1763 = vmatmul.mubr.bf16.gmra.mrb[0].mxu0 %v860
      %v1764 = vpop.f32.mrb[0].mxu0
      %v1765 = vadd.f32 %v1604, %v1764
      %v1766 = vpop.f32.mrb[0].mxu0
      %v1767 = vpop.f32.mrb[0].mxu0
      %v1768 = vadd.f32 %v1607, %v1767
      %v1769 = vpop.f32.mrb[0].mxu0
      %1770 = vmatprep.mubr.bf16.mxu0 %v870
      %1771 = vmatmul.mubr.bf16.gmra.mrb[0].mxu0 %v869
      %v1772 = vpop.f32.mrb[0].mxu0
      %v1773 = vadd.f32 %v1612, %v1772
      %v1774 = vpop.f32.mrb[0].mxu0
      %v1775 = vpop.f32.mrb[0].mxu0
      %v1776 = vadd.f32 %v1615, %v1775
      %v1777 = vpop.f32.mrb[0].mxu0
      %1778 = vmatprep.mubr.bf16.mxu0 %v879
      %1779 = vmatmul.mubr.bf16.gmra.mrb[0].mxu0 %v878
      %v1780 = vpop.f32.mrb[0].mxu0
      %v1781 = vadd.f32 %v1620, %v1780
      %v1782 = vpop.f32.mrb[0].mxu0
      %v1783 = vpop.f32.mrb[0].mxu0
      %v1784 = vadd.f32 %v1623, %v1783
      %v1785 = vpop.f32.mrb[0].mxu0
      %1786 = vmatprep.mubr.bf16.mxu0 %v888
      %1787 = vmatmul.mubr.bf16.gmra.mrb[0].mxu0 %v887
      %v1788 = vpop.f32.mrb[0].mxu0
      %v1789 = vadd.f32 %v1628, %v1788
      %v1790 = vpop.f32.mrb[0].mxu0
      %v1791 = vpop.f32.mrb[0].mxu0
      %v1792 = vadd.f32 %v1631, %v1791
      %v1793 = vpop.f32.mrb[0].mxu0
      %1794 = vmatprep.mubr.bf16.mxu0 %v897
      %1795 = vmatmul.mubr.bf16.gmra.mrb[0].mxu0 %v896
      %v1796 = vpop.f32.mrb[0].mxu0
      %v1797 = vadd.f32 %v1636, %v1796
      %v1798 = vpop.f32.mrb[0].mxu0
      %v1799 = vpop.f32.mrb[0].mxu0
      %v1800 = vadd.f32 %v1639, %v1799
      %v1801 = vpop.f32.mrb[0].mxu0
      %1802 = vmatprep.mubr.bf16.mxu0 %v906
      %1803 = vmatmul.mubr.bf16.gmra.mrb[0].mxu0 %v905
      %v1804 = vpop.f32.mrb[0].mxu0
      %v1805 = vadd.f32 %v1644, %v1804
      %v1806 = vpop.f32.mrb[0].mxu0
      %v1807 = vpop.f32.mrb[0].mxu0
      %v1808 = vadd.f32 %v1647, %v1807
      %v1809 = vpop.f32.mrb[0].mxu0
      %1810 = vmatprep.mubr.bf16.mxu0 %v915
      %1811 = vmatmul.mubr.bf16.gmra.mrb[0].mxu0 %v914
      %v1812 = vpop.f32.mrb[0].mxu0
      %v1813 = vadd.f32 %v1652, %v1812
      %v1814 = vpop.f32.mrb[0].mxu0
      %v1815 = vpop.f32.mrb[0].mxu0
      %v1816 = vadd.f32 %v1655, %v1815
      %v1817 = vpop.f32.mrb[0].mxu0
      %1818 = vdwg.mxu0
      %1819 = vmatprep.subr.bf16.mxu0 0
      %1820 = vmatpush1.bf16.msra.mxu0 %v1385
      %1821 = vmatprep.subr.bf16.mxu0 0
      %1822 = vmatpush1.bf16.msra.mxu0 %v1386
      %1823 = vmatprep.subr.bf16.mxu0 0
      %1824 = vmatpush1.bf16.msra.mxu0 %v1387
      %1825 = vmatprep.subr.bf16.mxu0 0
      %1826 = vmatpush1.bf16.msra.mxu0 %v1388
      %1827 = vmatprep.subr.bf16.mxu0 0
      %1828 = vmatpush1.bf16.msra.mxu0 %v1389
      %1829 = vmatprep.subr.bf16.mxu0 0
      %1830 = vmatpush1.bf16.msra.mxu0 %v1390
      %1831 = vmatprep.subr.bf16.mxu0 0
      %1832 = vmatpush1.bf16.msra.mxu0 %v1391
      %1833 = vmatprep.subr.bf16.mxu0 0
      %1834 = vmatpush1.bf16.msra.mxu0 %v1392
      %1835 = vmatprep.subr.bf16.mxu0 0
      %1836 = vmatpush1.bf16.msra.mxu0 %v1393
      %1837 = vmatprep.subr.bf16.mxu0 0
      %1838 = vmatpush1.bf16.msra.mxu0 %v1394
      %1839 = vmatprep.subr.bf16.mxu0 0
      %1840 = vmatpush1.bf16.msra.mxu0 %v1395
      %1841 = vmatprep.subr.bf16.mxu0 0
      %1842 = vmatpush1.bf16.msra.mxu0 %v1396
      %1843 = vmatprep.subr.bf16.mxu0 0
      %1844 = vmatpush1.bf16.msra.mxu0 %v1397
      %1845 = vmatprep.subr.bf16.mxu0 0
      %1846 = vmatpush1.bf16.msra.mxu0 %v1398
      %1847 = vmatprep.subr.bf16.mxu0 0
      %1848 = vmatpush1.bf16.msra.mxu0 %v1399
      %1849 = vmatprep.subr.bf16.mxu0 0
      %1850 = vmatpush1.bf16.msra.mxu0 %v1400
      %1851 = vmatprep.mubr.bf16.mxu0 %v782
      %1852 = vmatmul.mubr.bf16.gmra.mrb[0].mxu0 %v781
      %v1853 = vpop.f32.mrb[0].mxu0
      %v1854 = vadd.f32 %v1693, %v1853
      %v1855 = vpop.f32.mrb[0].mxu0
      %v1856 = vpop.f32.mrb[0].mxu0
      %v1857 = vadd.f32 %v1696, %v1856
      %v1858 = vpop.f32.mrb[0].mxu0
      %1859 = vmatprep.mubr.bf16.mxu0 %v791
      %1860 = vmatmul.mubr.bf16.gmra.mrb[0].mxu0 %v790
      %v1861 = vpop.f32.mrb[0].mxu0
      %v1862 = vadd.f32 %v1701, %v1861
      %v1863 = vpop.f32.mrb[0].mxu0
      %v1864 = vpop.f32.mrb[0].mxu0
      %v1865 = vadd.f32 %v1704, %v1864
      %v1866 = vpop.f32.mrb[0].mxu0
      %1867 = vmatprep.mubr.bf16.mxu0 %v800
      %1868 = vmatmul.mubr.bf16.gmra.mrb[0].mxu0 %v799
      %v1869 = vpop.f32.mrb[0].mxu0
      %v1870 = vadd.f32 %v1709, %v1869
      %v1871 = vpop.f32.mrb[0].mxu0
      %v1872 = vpop.f32.mrb[0].mxu0
      %v1873 = vadd.f32 %v1712, %v1872
      %v1874 = vpop.f32.mrb[0].mxu0
      %1875 = vmatprep.mubr.bf16.mxu0 %v809
      %1876 = vmatmul.mubr.bf16.gmra.mrb[0].mxu0 %v808
      %v1877 = vpop.f32.mrb[0].mxu0
      %v1878 = vadd.f32 %v1717, %v1877
      %v1879 = vpop.f32.mrb[0].mxu0
      %v1880 = vpop.f32.mrb[0].mxu0
      %v1881 = vadd.f32 %v1720, %v1880
      %v1882 = vpop.f32.mrb[0].mxu0
      %1883 = vmatprep.mubr.bf16.mxu0 %v818
      %1884 = vmatmul.mubr.bf16.gmra.mrb[0].mxu0 %v817
      %v1885 = vpop.f32.mrb[0].mxu0
      %v1886 = vadd.f32 %v1725, %v1885
      %v1887 = vpop.f32.mrb[0].mxu0
      %v1888 = vpop.f32.mrb[0].mxu0
      %v1889 = vadd.f32 %v1728, %v1888
      %v1890 = vpop.f32.mrb[0].mxu0
      %1891 = vmatprep.mubr.bf16.mxu0 %v827
      %1892 = vmatmul.mubr.bf16.gmra.mrb[0].mxu0 %v826
      %v1893 = vpop.f32.mrb[0].mxu0
      %v1894 = vadd.f32 %v1733, %v1893
      %v1895 = vpop.f32.mrb[0].mxu0
      %v1896 = vpop.f32.mrb[0].mxu0
      %v1897 = vadd.f32 %v1736, %v1896
      %v1898 = vpop.f32.mrb[0].mxu0
      %1899 = vmatprep.mubr.bf16.mxu0 %v836
      %1900 = vmatmul.mubr.bf16.gmra.mrb[0].mxu0 %v835
      %v1901 = vpop.f32.mrb[0].mxu0
      %v1902 = vadd.f32 %v1741, %v1901
      %v1903 = vpop.f32.mrb[0].mxu0
      %v1904 = vpop.f32.mrb[0].mxu0
      %v1905 = vadd.f32 %v1744, %v1904
      %v1906 = vpop.f32.mrb[0].mxu0
      %1907 = vmatprep.mubr.bf16.mxu0 %v845
      %1908 = vmatmul.mubr.bf16.gmra.mrb[0].mxu0 %v844
      %v1909 = vpop.f32.mrb[0].mxu0
      %v1910 = vadd.f32 %v1749, %v1909
      %v1911 = vpop.f32.mrb[0].mxu0
      %v1912 = vpop.f32.mrb[0].mxu0
      %v1913 = vadd.f32 %v1752, %v1912
      %v1914 = vpop.f32.mrb[0].mxu0
      %1915 = vmatprep.mubr.bf16.mxu0 %v854
      %1916 = vmatmul.mubr.bf16.gmra.mrb[0].mxu0 %v853
      %v1917 = vpop.f32.mrb[0].mxu0
      %v1918 = vadd.f32 %v1757, %v1917
      %v1919 = vpop.f32.mrb[0].mxu0
      %v1920 = vpop.f32.mrb[0].mxu0
      %v1921 = vadd.f32 %v1760, %v1920
      %v1922 = vpop.f32.mrb[0].mxu0
      %1923 = vmatprep.mubr.bf16.mxu0 %v863
      %1924 = vmatmul.mubr.bf16.gmra.mrb[0].mxu0 %v862
      %v1925 = vpop.f32.mrb[0].mxu0
      %v1926 = vadd.f32 %v1765, %v1925
      %v1927 = vpop.f32.mrb[0].mxu0
      %v1928 = vpop.f32.mrb[0].mxu0
      %v1929 = vadd.f32 %v1768, %v1928
      %v1930 = vpop.f32.mrb[0].mxu0
      %1931 = vmatprep.mubr.bf16.mxu0 %v872
      %1932 = vmatmul.mubr.bf16.gmra.mrb[0].mxu0 %v871
      %v1933 = vpop.f32.mrb[0].mxu0
      %v1934 = vadd.f32 %v1773, %v1933
      %v1935 = vpop.f32.mrb[0].mxu0
      %v1936 = vpop.f32.mrb[0].mxu0
      %v1937 = vadd.f32 %v1776, %v1936
      %v1938 = vpop.f32.mrb[0].mxu0
      %1939 = vmatprep.mubr.bf16.mxu0 %v881
      %1940 = vmatmul.mubr.bf16.gmra.mrb[0].mxu0 %v880
      %v1941 = vpop.f32.mrb[0].mxu0
      %v1942 = vadd.f32 %v1781, %v1941
      %v1943 = vpop.f32.mrb[0].mxu0
      %v1944 = vpop.f32.mrb[0].mxu0
      %v1945 = vadd.f32 %v1784, %v1944
      %v1946 = vpop.f32.mrb[0].mxu0
      %1947 = vmatprep.mubr.bf16.mxu0 %v890
      %1948 = vmatmul.mubr.bf16.gmra.mrb[0].mxu0 %v889
      %v1949 = vpop.f32.mrb[0].mxu0
      %v1950 = vadd.f32 %v1789, %v1949
      %v1951 = vpop.f32.mrb[0].mxu0
      %v1952 = vpop.f32.mrb[0].mxu0
      %v1953 = vadd.f32 %v1792, %v1952
      %v1954 = vpop.f32.mrb[0].mxu0
      %1955 = vmatprep.mubr.bf16.mxu0 %v899
      %1956 = vmatmul.mubr.bf16.gmra.mrb[0].mxu0 %v898
      %v1957 = vpop.f32.mrb[0].mxu0
      %v1958 = vadd.f32 %v1797, %v1957
      %v1959 = vpop.f32.mrb[0].mxu0
      %v1960 = vpop.f32.mrb[0].mxu0
      %v1961 = vadd.f32 %v1800, %v1960
      %v1962 = vpop.f32.mrb[0].mxu0
      %1963 = vmatprep.mubr.bf16.mxu0 %v908
      %1964 = vmatmul.mubr.bf16.gmra.mrb[0].mxu0 %v907
      %v1965 = vpop.f32.mrb[0].mxu0
      %v1966 = vadd.f32 %v1805, %v1965
      %v1967 = vpop.f32.mrb[0].mxu0
      %v1968 = vpop.f32.mrb[0].mxu0
      %v1969 = vadd.f32 %v1808, %v1968
      %v1970 = vpop.f32.mrb[0].mxu0
      %1971 = vmatprep.mubr.bf16.mxu0 %v917
      %1972 = vmatmul.mubr.bf16.gmra.mrb[0].mxu0 %v916
      %v1973 = vpop.f32.mrb[0].mxu0
      %v1974 = vadd.f32 %v1813, %v1973
      %v1975 = vpop.f32.mrb[0].mxu0
      %v1976 = vpop.f32.mrb[0].mxu0
      %v1977 = vadd.f32 %v1816, %v1976
      %v1978 = vpop.f32.mrb[0].mxu0
      %1979 = vdwg.mxu0
      %1980 = vmatprep.subr.bf16.mxu0 0
      %1981 = vmatpush1.bf16.msra.mxu0 %v1401
      %1982 = vmatprep.subr.bf16.mxu0 0
      %1983 = vmatpush1.bf16.msra.mxu0 %v1402
      %1984 = vmatprep.subr.bf16.mxu0 0
      %1985 = vmatpush1.bf16.msra.mxu0 %v1403
      %1986 = vmatprep.subr.bf16.mxu0 0
      %1987 = vmatpush1.bf16.msra.mxu0 %v1404
      %1988 = vmatprep.subr.bf16.mxu0 0
      %1989 = vmatpush1.bf16.msra.mxu0 %v1405
      %1990 = vmatprep.subr.bf16.mxu0 0
      %1991 = vmatpush1.bf16.msra.mxu0 %v1406
      %1992 = vmatprep.subr.bf16.mxu0 0
      %1993 = vmatpush1.bf16.msra.mxu0 %v1407
      %1994 = vmatprep.subr.bf16.mxu0 0
      %1995 = vmatpush1.bf16.msra.mxu0 %v1408
      %1996 = vmatprep.subr.bf16.mxu0 0
      %1997 = vmatpush1.bf16.msra.mxu0 %v1409
      %1998 = vmatprep.subr.bf16.mxu0 0
      %1999 = vmatpush1.bf16.msra.mxu0 %v1410
      %2000 = vmatprep.subr.bf16.mxu0 0
      %2001 = vmatpush1.bf16.msra.mxu0 %v1411
      %2002 = vmatprep.subr.bf16.mxu0 0
      %2003 = vmatpush1.bf16.msra.mxu0 %v1412
      %2004 = vmatprep.subr.bf16.mxu0 0
      %2005 = vmatpush1.bf16.msra.mxu0 %v1413
      %2006 = vmatprep.subr.bf16.mxu0 0
      %2007 = vmatpush1.bf16.msra.mxu0 %v1414
      %2008 = vmatprep.subr.bf16.mxu0 0
      %2009 = vmatpush1.bf16.msra.mxu0 %v1415
      %2010 = vmatprep.subr.bf16.mxu0 0
      %2011 = vmatpush1.bf16.msra.mxu0 %v1416
      %2012 = vmatprep.mubr.bf16.mxu0 %v784
      %2013 = vmatmul.mubr.bf16.gmra.mrb[0].mxu0 %v783
      %v2014 = vpop.f32.mrb[0].mxu0
      %v2015 = vadd.f32 %v1854, %v2014
      %v2016 = vpop.f32.mrb[0].mxu0
      %v2017 = vpop.f32.mrb[0].mxu0
      %v2018 = vadd.f32 %v1857, %v2017
      %v2019 = vpop.f32.mrb[0].mxu0
      %2020 = vmatprep.mubr.bf16.mxu0 %v793
      %2021 = vmatmul.mubr.bf16.gmra.mrb[0].mxu0 %v792
      %v2022 = vpop.f32.mrb[0].mxu0
      %v2023 = vadd.f32 %v1862, %v2022
      %v2024 = vpop.f32.mrb[0].mxu0
      %v2025 = vpop.f32.mrb[0].mxu0
      %v2026 = vadd.f32 %v1865, %v2025
      %v2027 = vpop.f32.mrb[0].mxu0
      %2028 = vmatprep.mubr.bf16.mxu0 %v802
      %2029 = vmatmul.mubr.bf16.gmra.mrb[0].mxu0 %v801
      %v2030 = vpop.f32.mrb[0].mxu0
      %v2031 = vadd.f32 %v1870, %v2030
      %v2032 = vpop.f32.mrb[0].mxu0
      %v2033 = vpop.f32.mrb[0].mxu0
      %v2034 = vadd.f32 %v1873, %v2033
      %v2035 = vpop.f32.mrb[0].mxu0
      %2036 = vmatprep.mubr.bf16.mxu0 %v811
      %2037 = vmatmul.mubr.bf16.gmra.mrb[0].mxu0 %v810
      %v2038 = vpop.f32.mrb[0].mxu0
      %v2039 = vadd.f32 %v1878, %v2038
      %v2040 = vpop.f32.mrb[0].mxu0
      %v2041 = vpop.f32.mrb[0].mxu0
      %v2042 = vadd.f32 %v1881, %v2041
      %v2043 = vpop.f32.mrb[0].mxu0
      %2044 = vmatprep.mubr.bf16.mxu0 %v820
      %2045 = vmatmul.mubr.bf16.gmra.mrb[0].mxu0 %v819
      %v2046 = vpop.f32.mrb[0].mxu0
      %v2047 = vadd.f32 %v1886, %v2046
      %v2048 = vpop.f32.mrb[0].mxu0
      %v2049 = vpop.f32.mrb[0].mxu0
      %v2050 = vadd.f32 %v1889, %v2049
      %v2051 = vpop.f32.mrb[0].mxu0
      %2052 = vmatprep.mubr.bf16.mxu0 %v829
      %2053 = vmatmul.mubr.bf16.gmra.mrb[0].mxu0 %v828
      %v2054 = vpop.f32.mrb[0].mxu0
      %v2055 = vadd.f32 %v1894, %v2054
      %v2056 = vpop.f32.mrb[0].mxu0
      %v2057 = vpop.f32.mrb[0].mxu0
      %v2058 = vadd.f32 %v1897, %v2057
      %v2059 = vpop.f32.mrb[0].mxu0
      %2060 = vmatprep.mubr.bf16.mxu0 %v838
      %2061 = vmatmul.mubr.bf16.gmra.mrb[0].mxu0 %v837
      %v2062 = vpop.f32.mrb[0].mxu0
      %v2063 = vadd.f32 %v1902, %v2062
      %v2064 = vpop.f32.mrb[0].mxu0
      %v2065 = vpop.f32.mrb[0].mxu0
      %v2066 = vadd.f32 %v1905, %v2065
      %v2067 = vpop.f32.mrb[0].mxu0
      %2068 = vmatprep.mubr.bf16.mxu0 %v847
      %2069 = vmatmul.mubr.bf16.gmra.mrb[0].mxu0 %v846
      %v2070 = vpop.f32.mrb[0].mxu0
      %v2071 = vadd.f32 %v1910, %v2070
      %v2072 = vpop.f32.mrb[0].mxu0
      %v2073 = vpop.f32.mrb[0].mxu0
      %v2074 = vadd.f32 %v1913, %v2073
      %v2075 = vpop.f32.mrb[0].mxu0
      %2076 = vmatprep.mubr.bf16.mxu0 %v856
      %2077 = vmatmul.mubr.bf16.gmra.mrb[0].mxu0 %v855
      %v2078 = vpop.f32.mrb[0].mxu0
      %v2079 = vadd.f32 %v1918, %v2078
      %v2080 = vpop.f32.mrb[0].mxu0
      %v2081 = vpop.f32.mrb[0].mxu0
      %v2082 = vadd.f32 %v1921, %v2081
      %v2083 = vpop.f32.mrb[0].mxu0
      %2084 = vmatprep.mubr.bf16.mxu0 %v865
      %2085 = vmatmul.mubr.bf16.gmra.mrb[0].mxu0 %v864
      %v2086 = vpop.f32.mrb[0].mxu0
      %v2087 = vadd.f32 %v1926, %v2086
      %v2088 = vpop.f32.mrb[0].mxu0
      %v2089 = vpop.f32.mrb[0].mxu0
      %v2090 = vadd.f32 %v1929, %v2089
      %v2091 = vpop.f32.mrb[0].mxu0
      %2092 = vmatprep.mubr.bf16.mxu0 %v874
      %2093 = vmatmul.mubr.bf16.gmra.mrb[0].mxu0 %v873
      %v2094 = vpop.f32.mrb[0].mxu0
      %v2095 = vadd.f32 %v1934, %v2094
      %v2096 = vpop.f32.mrb[0].mxu0
      %v2097 = vpop.f32.mrb[0].mxu0
      %v2098 = vadd.f32 %v1937, %v2097
      %v2099 = vpop.f32.mrb[0].mxu0
      %2100 = vmatprep.mubr.bf16.mxu0 %v883
      %2101 = vmatmul.mubr.bf16.gmra.mrb[0].mxu0 %v882
      %v2102 = vpop.f32.mrb[0].mxu0
      %v2103 = vadd.f32 %v1942, %v2102
      %v2104 = vpop.f32.mrb[0].mxu0
      %v2105 = vpop.f32.mrb[0].mxu0
      %v2106 = vadd.f32 %v1945, %v2105
      %v2107 = vpop.f32.mrb[0].mxu0
      %2108 = vmatprep.mubr.bf16.mxu0 %v892
      %2109 = vmatmul.mubr.bf16.gmra.mrb[0].mxu0 %v891
      %v2110 = vpop.f32.mrb[0].mxu0
      %v2111 = vadd.f32 %v1950, %v2110
      %v2112 = vpop.f32.mrb[0].mxu0
      %v2113 = vpop.f32.mrb[0].mxu0
      %v2114 = vadd.f32 %v1953, %v2113
      %v2115 = vpop.f32.mrb[0].mxu0
      %2116 = vmatprep.mubr.bf16.mxu0 %v901
      %2117 = vmatmul.mubr.bf16.gmra.mrb[0].mxu0 %v900
      %v2118 = vpop.f32.mrb[0].mxu0
      %v2119 = vadd.f32 %v1958, %v2118
      %v2120 = vpop.f32.mrb[0].mxu0
      %v2121 = vpop.f32.mrb[0].mxu0
      %v2122 = vadd.f32 %v1961, %v2121
      %v2123 = vpop.f32.mrb[0].mxu0
      %2124 = vmatprep.mubr.bf16.mxu0 %v910
      %2125 = vmatmul.mubr.bf16.gmra.mrb[0].mxu0 %v909
      %v2126 = vpop.f32.mrb[0].mxu0
      %v2127 = vadd.f32 %v1966, %v2126
      %v2128 = vpop.f32.mrb[0].mxu0
      %v2129 = vpop.f32.mrb[0].mxu0
      %v2130 = vadd.f32 %v1969, %v2129
      %v2131 = vpop.f32.mrb[0].mxu0
      %2132 = vmatprep.mubr.bf16.mxu0 %v919
      %2133 = vmatmul.mubr.bf16.gmra.mrb[0].mxu0 %v918
      %v2134 = vpop.f32.mrb[0].mxu0
      %v2135 = vadd.f32 %v1974, %v2134
      %v2136 = vpop.f32.mrb[0].mxu0
      %v2137 = vpop.f32.mrb[0].mxu0
      %v2138 = vadd.f32 %v1977, %v2137
      %v2139 = vpop.f32.mrb[0].mxu0
      %2140 = vdwg.mxu0
      %2141 = vmatprep.subr.bf16.mxu0 0
      %2142 = vmatpush1.bf16.msra.mxu0 %v1417
      %2143 = vmatprep.subr.bf16.mxu0 0
      %2144 = vmatpush1.bf16.msra.mxu0 %v1418
      %2145 = vmatprep.subr.bf16.mxu0 0
      %2146 = vmatpush1.bf16.msra.mxu0 %v1419
      %2147 = vmatprep.subr.bf16.mxu0 0
      %2148 = vmatpush1.bf16.msra.mxu0 %v1420
      %2149 = vmatprep.subr.bf16.mxu0 0
      %2150 = vmatpush1.bf16.msra.mxu0 %v1421
      %2151 = vmatprep.subr.bf16.mxu0 0
      %2152 = vmatpush1.bf16.msra.mxu0 %v1422
      %2153 = vmatprep.subr.bf16.mxu0 0
      %2154 = vmatpush1.bf16.msra.mxu0 %v1423
      %2155 = vmatprep.subr.bf16.mxu0 0
      %2156 = vmatpush1.bf16.msra.mxu0 %v1424
      %2157 = vmatprep.subr.bf16.mxu0 0
      %2158 = vmatpush1.bf16.msra.mxu0 0
      %2159 = vmatprep.subr.bf16.mxu0 0
      %2160 = vmatpush1.bf16.msra.mxu0 0
      %2161 = vmatprep.subr.bf16.mxu0 0
      %2162 = vmatpush1.bf16.msra.mxu0 0
      %2163 = vmatprep.subr.bf16.mxu0 0
      %2164 = vmatpush1.bf16.msra.mxu0 0
      %2165 = vmatprep.subr.bf16.mxu0 0
      %2166 = vmatpush1.bf16.msra.mxu0 0
      %2167 = vmatprep.subr.bf16.mxu0 0
      %2168 = vmatpush1.bf16.msra.mxu0 0
      %2169 = vmatprep.subr.bf16.mxu0 0
      %2170 = vmatpush1.bf16.msra.mxu0 0
      %2171 = vmatprep.subr.bf16.mxu0 0
      %2172 = vmatpush1.bf16.msra.mxu0 0
      %2173 = vmatprep.mubr.bf16.mxu0 0
      %2174 = vmatmul.mubr.bf16.gmra.mrb[0].mxu0 %v785
      %v2175 = vpop.f32.mrb[0].mxu0
      %v2176 = vadd.f32 %v2015, %v2175
      %v2177 = vpop.f32.mrb[0].mxu0
      %v2178 = vpop.f32.mrb[0].mxu0
      %v2179 = vadd.f32 %v2018, %v2178
      %v2180 = vpop.f32.mrb[0].mxu0
      %2181 = vmatprep.mubr.bf16.mxu0 0
      %2182 = vmatmul.mubr.bf16.gmra.mrb[0].mxu0 %v794
      %v2183 = vpop.f32.mrb[0].mxu0
      %v2184 = vadd.f32 %v2023, %v2183
      %v2185 = vpop.f32.mrb[0].mxu0
      %v2186 = vpop.f32.mrb[0].mxu0
      %v2187 = vadd.f32 %v2026, %v2186
      %v2188 = vpop.f32.mrb[0].mxu0
      %2189 = vmatprep.mubr.bf16.mxu0 0
      %2190 = vmatmul.mubr.bf16.gmra.mrb[0].mxu0 %v803
      %v2191 = vpop.f32.mrb[0].mxu0
      %v2192 = vadd.f32 %v2031, %v2191
      %v2193 = vpop.f32.mrb[0].mxu0
      %v2194 = vpop.f32.mrb[0].mxu0
      %v2195 = vadd.f32 %v2034, %v2194
      %v2196 = vpop.f32.mrb[0].mxu0
      %2197 = vmatprep.mubr.bf16.mxu0 0
      %2198 = vmatmul.mubr.bf16.gmra.mrb[0].mxu0 %v812
      %v2199 = vpop.f32.mrb[0].mxu0
      %v2200 = vadd.f32 %v2039, %v2199
      %v2201 = vpop.f32.mrb[0].mxu0
      %v2202 = vpop.f32.mrb[0].mxu0
      %v2203 = vadd.f32 %v2042, %v2202
      %v2204 = vpop.f32.mrb[0].mxu0
      %2205 = vmatprep.mubr.bf16.mxu0 0
      %2206 = vmatmul.mubr.bf16.gmra.mrb[0].mxu0 %v821
      %v2207 = vpop.f32.mrb[0].mxu0
      %v2208 = vadd.f32 %v2047, %v2207
      %v2209 = vpop.f32.mrb[0].mxu0
      %v2210 = vpop.f32.mrb[0].mxu0
      %v2211 = vadd.f32 %v2050, %v2210
      %v2212 = vpop.f32.mrb[0].mxu0
      %2213 = vmatprep.mubr.bf16.mxu0 0
      %2214 = vmatmul.mubr.bf16.gmra.mrb[0].mxu0 %v830
      %v2215 = vpop.f32.mrb[0].mxu0
      %v2216 = vadd.f32 %v2055, %v2215
      %v2217 = vpop.f32.mrb[0].mxu0
      %v2218 = vpop.f32.mrb[0].mxu0
      %v2219 = vadd.f32 %v2058, %v2218
      %v2220 = vpop.f32.mrb[0].mxu0
      %2221 = vmatprep.mubr.bf16.mxu0 0
      %2222 = vmatmul.mubr.bf16.gmra.mrb[0].mxu0 %v839
      %v2223 = vpop.f32.mrb[0].mxu0
      %v2224 = vadd.f32 %v2063, %v2223
      %v2225 = vpop.f32.mrb[0].mxu0
      %v2226 = vpop.f32.mrb[0].mxu0
      %v2227 = vadd.f32 %v2066, %v2226
      %v2228 = vpop.f32.mrb[0].mxu0
      %2229 = vmatprep.mubr.bf16.mxu0 0
      %2230 = vmatmul.mubr.bf16.gmra.mrb[0].mxu0 %v848
      %v2231 = vpop.f32.mrb[0].mxu0
      %v2232 = vadd.f32 %v2071, %v2231
      %v2233 = vpop.f32.mrb[0].mxu0
      %v2234 = vpop.f32.mrb[0].mxu0
      %v2235 = vadd.f32 %v2074, %v2234
      %v2236 = vpop.f32.mrb[0].mxu0
      %2237 = vmatprep.mubr.bf16.mxu0 0
      %2238 = vmatmul.mubr.bf16.gmra.mrb[0].mxu0 %v857
      %v2239 = vpop.f32.mrb[0].mxu0
      %v2240 = vadd.f32 %v2079, %v2239
      %v2241 = vpop.f32.mrb[0].mxu0
      %v2242 = vpop.f32.mrb[0].mxu0
      %v2243 = vadd.f32 %v2082, %v2242
      %v2244 = vpop.f32.mrb[0].mxu0
      %2245 = vmatprep.mubr.bf16.mxu0 0
      %2246 = vmatmul.mubr.bf16.gmra.mrb[0].mxu0 %v866
      %v2247 = vpop.f32.mrb[0].mxu0
      %v2248 = vadd.f32 %v2087, %v2247
      %v2249 = vpop.f32.mrb[0].mxu0
      %v2250 = vpop.f32.mrb[0].mxu0
      %v2251 = vadd.f32 %v2090, %v2250
      %v2252 = vpop.f32.mrb[0].mxu0
      %2253 = vmatprep.mubr.bf16.mxu0 0
      %2254 = vmatmul.mubr.bf16.gmra.mrb[0].mxu0 %v875
      %v2255 = vpop.f32.mrb[0].mxu0
      %v2256 = vadd.f32 %v2095, %v2255
      %v2257 = vpop.f32.mrb[0].mxu0
      %v2258 = vpop.f32.mrb[0].mxu0
      %v2259 = vadd.f32 %v2098, %v2258
      %v2260 = vpop.f32.mrb[0].mxu0
      %2261 = vmatprep.mubr.bf16.mxu0 0
      %2262 = vmatmul.mubr.bf16.gmra.mrb[0].mxu0 %v884
      %v2263 = vpop.f32.mrb[0].mxu0
      %v2264 = vadd.f32 %v2103, %v2263
      %v2265 = vpop.f32.mrb[0].mxu0
      %v2266 = vpop.f32.mrb[0].mxu0
      %v2267 = vadd.f32 %v2106, %v2266
      %v2268 = vpop.f32.mrb[0].mxu0
      %2269 = vmatprep.mubr.bf16.mxu0 0
      %2270 = vmatmul.mubr.bf16.gmra.mrb[0].mxu0 %v893
      %v2271 = vpop.f32.mrb[0].mxu0
      %v2272 = vadd.f32 %v2111, %v2271
      %v2273 = vpop.f32.mrb[0].mxu0
      %v2274 = vpop.f32.mrb[0].mxu0
      %v2275 = vadd.f32 %v2114, %v2274
      %v2276 = vpop.f32.mrb[0].mxu0
      %2277 = vmatprep.mubr.bf16.mxu0 0
      %2278 = vmatmul.mubr.bf16.gmra.mrb[0].mxu0 %v902
      %v2279 = vpop.f32.mrb[0].mxu0
      %v2280 = vadd.f32 %v2119, %v2279
      %v2281 = vpop.f32.mrb[0].mxu0
      %v2282 = vpop.f32.mrb[0].mxu0
      %v2283 = vadd.f32 %v2122, %v2282
      %v2284 = vpop.f32.mrb[0].mxu0
      %2285 = vmatprep.mubr.bf16.mxu0 0
      %2286 = vmatmul.mubr.bf16.gmra.mrb[0].mxu0 %v911
      %v2287 = vpop.f32.mrb[0].mxu0
      %v2288 = vadd.f32 %v2127, %v2287
      %v2289 = vpop.f32.mrb[0].mxu0
      %v2290 = vpop.f32.mrb[0].mxu0
      %v2291 = vadd.f32 %v2130, %v2290
      %v2292 = vpop.f32.mrb[0].mxu0
      %2293 = vmatprep.mubr.bf16.mxu0 0
      %2294 = vmatmul.mubr.bf16.gmra.mrb[0].mxu0 %v920
      %v2295 = vpop.f32.mrb[0].mxu0
      %v2296 = vadd.f32 %v2135, %v2295
      %v2297 = vpop.f32.mrb[0].mxu0
      %v2298 = vpop.f32.mrb[0].mxu0
      %v2299 = vadd.f32 %v2138, %v2298
      %v2300 = vpop.f32.mrb[0].mxu0
      %2301 = vdwg.mxu0
      %2302 = vst [vmem:[%s262] sm:$0xff] %v2176
      %2303 = vst [vmem:[%s262 + $0x8] sm:$0xff] %v2179
      %2304 = vst [vmem:[%s262 + $0x10] sm:$0xff] %v2184
      %2305 = vst [vmem:[%s262 + $0x18] sm:$0xff] %v2187
      %2306 = vst [vmem:[%s262 + $0x20] sm:$0xff] %v2192
      %2307 = vst [vmem:[%s262 + $0x28] sm:$0xff] %v2195
      %2308 = vst [vmem:[%s262 + $0x30] sm:$0xff] %v2200
      %2309 = vst [vmem:[%s262 + $0x38] sm:$0xff] %v2203
      %2310 = vst [vmem:[%s262 + $0x40] sm:$0xff] %v2208
      %2311 = vst [vmem:[%s262 + $0x48] sm:$0xff] %v2211
      %2312 = vst [vmem:[%s262 + $0x50] sm:$0xff] %v2216
      %2313 = vst [vmem:[%s262 + $0x58] sm:$0xff] %v2219
      %2314 = vst [vmem:[%s262 + $0x60] sm:$0xff] %v2224
      %2315 = vst [vmem:[%s262 + $0x68] sm:$0xff] %v2227
      %2316 = vst [vmem:[%s262 + $0x70] sm:$0xff] %v2232
      %2317 = vst [vmem:[%s262 + $0x78] sm:$0xff] %v2235
      %2318 = vst [vmem:[%s262 + $0x80] sm:$0xff] %v2240
      %2319 = vst [vmem:[%s262 + $0x88] sm:$0xff] %v2243
      %2320 = vst [vmem:[%s262 + $0x90] sm:$0xff] %v2248
      %2321 = vst [vmem:[%s262 + $0x98] sm:$0xff] %v2251
      %2322 = vst [vmem:[%s262 + $0xa0] sm:$0xff] %v2256
      %2323 = vst [vmem:[%s262 + $0xa8] sm:$0xff] %v2259
      %2324 = vst [vmem:[%s262 + $0xb0] sm:$0xff] %v2264
      %2325 = vst [vmem:[%s262 + $0xb8] sm:$0xff] %v2267
      %2326 = vst [vmem:[%s262 + $0xc0] sm:$0xff] %v2272
      %2327 = vst [vmem:[%s262 + $0xc8] sm:$0xff] %v2275
      %2328 = vst [vmem:[%s262 + $0xd0] sm:$0xff] %v2280
      %2329 = vst [vmem:[%s262 + $0xd8] sm:$0xff] %v2283
      %2330 = vst [vmem:[%s262 + $0xe0] sm:$0xff] %v2288
      %2331 = vst [vmem:[%s262 + $0xe8] sm:$0xff] %v2291
      %2332 = vst [vmem:[%s262 + $0xf0] sm:$0xff] %v2296
      %2333 = vst [vmem:[%s262 + $0xf8] sm:$0xff] %v2299
      %v2334 = vadd.f32 %v2176, %v2179
      %v2335 = vadd.f32 %v2334, %v2184
      %v2336 = vadd.f32 %v2335, %v2187
      %v2337 = vadd.f32 %v2336, %v2192
      %v2338 = vadd.f32 %v2337, %v2195
      %v2339 = vadd.f32 %v2338, %v2200
      %v2340 = vadd.f32 %v2339, %v2203
      %v2341 = vadd.f32 %v2340, %v2208
      %v2342 = vadd.f32 %v2341, %v2211
      %v2343 = vadd.f32 %v2342, %v2216
      %v2344 = vadd.f32 %v2343, %v2219
      %v2345 = vadd.f32 %v2344, %v2224
      %v2346 = vadd.f32 %v2345, %v2227
      %v2347 = vadd.f32 %v2346, %v2232
      %v2348 = vadd.f32 %v2347, %v2235
      %v2349 = vadd.f32 %v2348, %v2240
      %v2350 = vadd.f32 %v2349, %v2243
      %v2351 = vadd.f32 %v2350, %v2248
      %v2352 = vadd.f32 %v2351, %v2251
      %v2353 = vadd.f32 %v2352, %v2256
      %v2354 = vadd.f32 %v2353, %v2259
      %v2355 = vadd.f32 %v2354, %v2264
      %v2356 = vadd.f32 %v2355, %v2267
      %v2357 = vadd.f32 %v2356, %v2272
      %v2358 = vadd.f32 %v2357, %v2275
      %v2359 = vadd.f32 %v2358, %v2280
      %v2360 = vadd.f32 %v2359, %v2283
      %v2361 = vadd.f32 %v2360, %v2288
      %v2362 = vadd.f32 %v2361, %v2291
      %v2363 = vadd.f32 %v2362, %v2296
      %v2364 = vadd.f32 %v2363, %v2299
      %v2365 = vrot.slane %v2364, 4
      %v2366 = vadd.f32 %v2364, %v2365
      %v2367 = vrot.slane %v2366, 2
      %v2368 = vadd.f32 %v2366, %v2367
      %v2369 = vrot.slane %v2368, 1
      %v2370 = vadd.f32 %v2368, %v2369
      %2371 = vst [vmem:[%s265] sm:$0x1] %v2370
      %v2372 = vmul.f32 %v2176, %v2176
      %v2373 = vmul.f32 %v2179, %v2179
      %v2374 = vmul.f32 %v2184, %v2184
      %v2375 = vmul.f32 %v2187, %v2187
      %v2376 = vmul.f32 %v2192, %v2192
      %v2377 = vmul.f32 %v2195, %v2195
      %v2378 = vmul.f32 %v2200, %v2200
      %v2379 = vmul.f32 %v2203, %v2203
      %v2380 = vmul.f32 %v2208, %v2208
      %v2381 = vmul.f32 %v2211, %v2211
      %v2382 = vmul.f32 %v2216, %v2216
      %v2383 = vmul.f32 %v2219, %v2219
      %v2384 = vmul.f32 %v2224, %v2224
      %v2385 = vmul.f32 %v2227, %v2227
      %v2386 = vmul.f32 %v2232, %v2232
      %v2387 = vmul.f32 %v2235, %v2235
      %v2388 = vmul.f32 %v2240, %v2240
      %v2389 = vmul.f32 %v2243, %v2243
      %v2390 = vmul.f32 %v2248, %v2248
      %v2391 = vmul.f32 %v2251, %v2251
      %v2392 = vmul.f32 %v2256, %v2256
      %v2393 = vmul.f32 %v2259, %v2259
      %v2394 = vmul.f32 %v2264, %v2264
      %v2395 = vmul.f32 %v2267, %v2267
      %v2396 = vmul.f32 %v2272, %v2272
      %v2397 = vmul.f32 %v2275, %v2275
      %v2398 = vmul.f32 %v2280, %v2280
      %v2399 = vmul.f32 %v2283, %v2283
      %v2400 = vmul.f32 %v2288, %v2288
      %v2401 = vmul.f32 %v2291, %v2291
      %v2402 = vmul.f32 %v2296, %v2296
      %v2403 = vmul.f32 %v2299, %v2299
      %v2404 = vadd.f32 %v2372, %v2373
      %v2405 = vadd.f32 %v2404, %v2374
      %v2406 = vadd.f32 %v2405, %v2375
      %v2407 = vadd.f32 %v2406, %v2376
      %v2408 = vadd.f32 %v2407, %v2377
      %v2409 = vadd.f32 %v2408, %v2378
      %v2410 = vadd.f32 %v2409, %v2379
      %v2411 = vadd.f32 %v2410, %v2380
      %v2412 = vadd.f32 %v2411, %v2381
      %v2413 = vadd.f32 %v2412, %v2382
      %v2414 = vadd.f32 %v2413, %v2383
      %v2415 = vadd.f32 %v2414, %v2384
      %v2416 = vadd.f32 %v2415, %v2385
      %v2417 = vadd.f32 %v2416, %v2386
      %v2418 = vadd.f32 %v2417, %v2387
      %v2419 = vadd.f32 %v2418, %v2388
      %v2420 = vadd.f32 %v2419, %v2389
      %v2421 = vadd.f32 %v2420, %v2390
      %v2422 = vadd.f32 %v2421, %v2391
      %v2423 = vadd.f32 %v2422, %v2392
      %v2424 = vadd.f32 %v2423, %v2393
      %v2425 = vadd.f32 %v2424, %v2394
      %v2426 = vadd.f32 %v2425, %v2395
      %v2427 = vadd.f32 %v2426, %v2396
      %v2428 = vadd.f32 %v2427, %v2397
      %v2429 = vadd.f32 %v2428, %v2398
      %v2430 = vadd.f32 %v2429, %v2399
      %v2431 = vadd.f32 %v2430, %v2400
      %v2432 = vadd.f32 %v2431, %v2401
      %v2433 = vadd.f32 %v2432, %v2402
      %v2434 = vadd.f32 %v2433, %v2403
      %v2435 = vrot.slane %v2434, 4
      %v2436 = vadd.f32 %v2434, %v2435
      %v2437 = vrot.slane %v2436, 2
      %v2438 = vadd.f32 %v2436, %v2437
      %v2439 = vrot.slane %v2438, 1
      %v2440 = vadd.f32 %v2438, %v2439
      %2441 = vst [vmem:[%s268] sm:$0x1] %v2440
      %p2442 = scmp.lt.s32.totalorder %s18, 1
      %s2443 = scalar_select %p2442, %s18, 1
      %s2444 = smul.addr %s2443, 32
      %s2445 = smul.addr %s2444, 8
      %s2446 = scalar_lea.vmem %s4, %s2445
      %p2447 = scmp.lt.s32.totalorder %s18, 1
      %s2448 = scalar_select %p2447, %s18, 1
      %s2449 = scalar_lea.vmem %s5, %s2448
      %p2450 = scmp.lt.s32.totalorder %s18, 1
      %s2451 = scalar_select %p2450, %s18, 1
      %s2452 = scalar_lea.vmem %s6, %s2451
      // Predicated region
      $region37: #{bottleneck_pallas.5} parent=35 // pred_check
        %p2453 = pneg %p125
      $region38: #{bottleneck_pallas.5} parent=35 // pred_check_branch
        %2455 = sbr.rel (%p2453) target = $region40
      $region39: #{bottleneck_pallas.5} parent=35 // pred_region
        _
      $region40: #{bottleneck_pallas.5} parent=35 // pred_fallthru
        _
      // Predicated region
      $region41: #{bottleneck_pallas.5} parent=35 // pred_check
        %p2456 = pneg %p151
      $region42: #{bottleneck_pallas.5} parent=35 // pred_check_branch
        %2458 = sbr.rel (%p2456) target = $region44
      $region43: #{bottleneck_pallas.5} parent=35 // pred_region
        _
      $region44: #{bottleneck_pallas.5} parent=35 // pred_fallthru
        _
      // Predicated region
      $region45: #{bottleneck_pallas.5} parent=35 // pred_check
        %p2459 = pneg %p177
      $region46: #{bottleneck_pallas.5} parent=35 // pred_check_branch
        %2461 = sbr.rel (%p2459) target = $region48
      $region47: #{bottleneck_pallas.5} parent=35 // pred_region
        _
      $region48: #{bottleneck_pallas.5} parent=35 // pred_fallthru
        _
    $region36: #{bottleneck_pallas.5} parent=5 // pred_fallthru
      _
    %p2462 = scmp.le.s32.totalorder 2, %s13
    // Predicated region
    $region49: #{bottleneck_pallas.5} parent=5 // pred_check
      %p2463 = pneg %p2462
    $region50: #{bottleneck_pallas.5} parent=5 // pred_check_branch
      %2465 = sbr.rel (%p2463) target = $region52
    $region51: #{bottleneck_pallas.5} parent=5 // pred_region
      %s2466 = ssub.s32 %s13, 2
      // Predicated region
      $region53: #{bottleneck_pallas.5} parent=51 // pred_check
        %p2467 = pneg %p131
      $region54: #{bottleneck_pallas.5} parent=51 // pred_check_branch
        %2469 = sbr.rel (%p2467) target = $region56
      $region55: #{bottleneck_pallas.5} parent=51 // pred_region
        %p2470 = scmp.lt.s32.totalorder %s19, 1
        %s2471 = scalar_select %p2470, %s19, 1
        %s2472 = smul.addr %s2471, 32
        %s2473 = smul.addr %s2472, 8
        %s2474 = scalar_lea.vmem %s4, %s2473
      $region56: #{bottleneck_pallas.5} parent=51 // pred_fallthru
        _
      // Predicated region
      $region57: #{bottleneck_pallas.5} parent=51 // pred_check
        %p2475 = pneg %p157
      $region58: #{bottleneck_pallas.5} parent=51 // pred_check_branch
        %2477 = sbr.rel (%p2475) target = $region60
      $region59: #{bottleneck_pallas.5} parent=51 // pred_region
        %p2478 = scmp.lt.s32.totalorder %s19, 1
        %s2479 = scalar_select %p2478, %s19, 1
        %s2480 = scalar_lea.vmem %s5, %s2479
      $region60: #{bottleneck_pallas.5} parent=51 // pred_fallthru
        _
      // Predicated region
      $region61: #{bottleneck_pallas.5} parent=51 // pred_check
        %p2481 = pneg %p183
      $region62: #{bottleneck_pallas.5} parent=51 // pred_check_branch
        %2483 = sbr.rel (%p2481) target = $region64
      $region63: #{bottleneck_pallas.5} parent=51 // pred_region
        %p2484 = scmp.lt.s32.totalorder %s19, 1
        %s2485 = scalar_select %p2484, %s19, 1
        %s2486 = scalar_lea.vmem %s6, %s2485
      $region64: #{bottleneck_pallas.5} parent=51 // pred_fallthru
        _
    $region52: #{bottleneck_pallas.5} parent=5 // pred_fallthru
      _
  $region6: #{bottleneck_pallas.5} parent=0 // loop_footer
    %s17 = sadd.s32 1, %s13
  $region7: #{bottleneck_pallas.5} parent=0 // loop_footer_branch
    %12 = sbr.rel target = $region3
  $region8: #{bottleneck_pallas.5} parent=0 // loop_exit
    _

</llo_original>
